<compile_context>
chip_gen: v7x
topology: tpu7x:2x2x1
jax: 0.10.0
libtpu: 0.0.40
codegen_flags: <defaults>
</compile_context>

<pallas_src>
import functools

import jax
import jax.numpy as jnp
from jax.experimental import pallas as pl
from jax.experimental.pallas import tpu as pltpu


# ----------------------------------------------------------------------------
# In-kernel helpers
# ----------------------------------------------------------------------------
def _mm(a, b):
    """a @ b with bf16 MXU inputs, f32 accumulation."""
    return jnp.dot(a.astype(jnp.bfloat16), b.astype(jnp.bfloat16),
                   preferred_element_type=jnp.float32)


def _mm_t(a, b):
    """a @ b.T with bf16 MXU inputs, f32 accumulation (no explicit transpose op)."""
    return jax.lax.dot_general(
        a.astype(jnp.bfloat16), b.astype(jnp.bfloat16),
        dimension_numbers=(((1,), (1,)), ((), ())),
        preferred_element_type=jnp.float32)


def _layernorm(x, g, b, eps):
    x = x.astype(jnp.float32)
    mu = jnp.mean(x, axis=-1, keepdims=True)
    xc = x - mu
    var = jnp.mean(xc * xc, axis=-1, keepdims=True)
    return xc * jax.lax.rsqrt(var + eps) * g + b


def _gelu_new(x):
    # GPT2 tanh-approx GELU
    return 0.5 * x * (1.0 + jnp.tanh(0.7978845608028654 * (x + 0.044715 * x * x * x)))


# ----------------------------------------------------------------------------
# Fused forward kernel: one batch element per grid step
# ----------------------------------------------------------------------------
def _policy_transformer_kernel(
        # per-batch data
        x_ref, sam_ref, embb_ref,
        # embedding (block-diag token projection)
        wtok_ref,
        # stacked per-layer GPT2 weights
        ln1g_ref, ln1b_ref, attnw_ref, attnb_ref, projw_ref, projb_ref,
        ln2g_ref, ln2b_ref, fcw_ref, fcb_ref, mlpw_ref, mlpb_ref,
        # final LN + policy head
        lnfg_ref, lnfb_ref, pa1w_ref, pa1b_ref, pa2w_ref, pa2b_ref,
        # outputs
        pred_ref, nll_ref,
        *, n_layer, n_head, seq_len, hidden, head_dim, act_num, state_dim, ln_eps):
    S, H, Dh, A = seq_len, hidden, head_dim, act_num
    f32 = jnp.float32

    x_in = x_ref[0].astype(f32)            # (S, D_in) interleaved raw (s,a,r) rows
    sam = sam_ref[0]                        # (1, S) f32 padding mask (stacked + tail-masked)

    # ---- embeddings: block-diag token matmul + pre-folded (wpe + tok-bias + time) bias
    h = _mm(x_in, wtok_ref[...]) + embb_ref[0]                            # (S, H) f32

    # ---- additive attention bias (causal AND not-padded), built once in VMEM
    row = jax.lax.broadcasted_iota(jnp.int32, (S, S), 0)
    col = jax.lax.broadcasted_iota(jnp.int32, (S, S), 1)
    allowed = jnp.logical_and(col <= row, sam > 0.0)                      # (S, S)
    attn_bias = jnp.where(allowed, 0.0, -1e9).astype(f32)

    scale = 1.0 / (Dh ** 0.5)

    for l in range(n_layer):
        # ---- attention sub-block: LN1 -> QKV -> per-head SDPA -> proj (+residual)
        ln1 = _layernorm(h, ln1g_ref[l], ln1b_ref[l], ln_eps)
        qkv = _mm(ln1, attnw_ref[l]) + attnb_ref[l]                       # (S, 3H) f32
        w_proj = projw_ref[l]                                             # (H, H) bf16
        attn_acc = projb_ref[l]                                           # (1, H) f32
        for hd in range(n_head):
            lo = hd * Dh
            qh = qkv[:, lo:lo + Dh]
            kh = qkv[:, H + lo:H + lo + Dh]
            vh = qkv[:, 2 * H + lo:2 * H + lo + Dh]
            s = _mm_t(qh, kh) * scale + attn_bias                         # (S, S)
            m = jnp.max(s, axis=-1, keepdims=True)
            p = jnp.exp(s - m)
            denom = jnp.sum(p, axis=-1, keepdims=True)
            p = p * pl.reciprocal(denom, approx=True)
            oh = _mm(p, vh)                                               # (S, Dh)
            # concat-free head merge: concat(o_h) @ Wp == sum_h o_h @ Wp[h*Dh:(h+1)*Dh]
            attn_acc = attn_acc + _mm(oh, w_proj[lo:lo + Dh, :])
        h = h + attn_acc                                                  # residual

        # ---- MLP sub-block: LN2 -> fc + gelu -> proj (+residual)
        ln2 = _layernorm(h, ln2g_ref[l], ln2b_ref[l], ln_eps)
        ff = _gelu_new(_mm(ln2, fcw_ref[l]) + fcb_ref[l])                 # (S, 4H)
        h = h + _mm(ff, mlpw_ref[l]) + mlpb_ref[l]                        # residual

    h = _layernorm(h, lnfg_ref[...], lnfb_ref[...], ln_eps)

    # ---- policy head on the last state token (row 3*(T-1) = S-3)
    feat = h[S - 3:S - 2, :]                                              # (1, H)
    h1 = jnp.maximum(_mm(feat, pa1w_ref[...]) + pa1b_ref[...], 0.0)
    logits = _mm(h1, pa2w_ref[...]) + pa2b_ref[...]                       # (1, A)
    pred_ref[0] = logits

    # ---- per-example NLL (log_softmax + nll fused)
    m = jnp.max(logits, axis=-1, keepdims=True)
    lse = m + jnp.log(jnp.sum(jnp.exp(logits - m), axis=-1, keepdims=True))
    logp = logits - lse
    # label = actions[:, -1, 0].long(): it lives at row S-2, column state_dim of x_in
    label_i = x_in[S - 2:S - 1, state_dim:state_dim + 1].astype(jnp.int32)  # (1, 1)
    onehot_a = (jax.lax.broadcasted_iota(jnp.int32, (1, A), 1) == label_i).astype(f32)
    nll_ref[0] = -jnp.sum(onehot_a * logp, axis=-1, keepdims=True)


# ----------------------------------------------------------------------------
# Forward wrapper (eval mode: no dropout / token_mask_prob)
# ----------------------------------------------------------------------------
def policy_transformer_forward(params, cfg, states, actions, rewards, timesteps,
                               attention_mask=None):
    B, T = states.shape[0], states.shape[1]
    H, nH, A, L = cfg["hidden_size"], cfg["n_head"], cfg["act_num"], cfg["n_layer"]
    Sd, Ad = cfg["state_dim"], cfg["act_dim"]
    S = 3 * T
    Dh = H // nH
    D_in = Sd + Ad + 1
    f32 = jnp.float32
    bf16 = jnp.bfloat16

    if attention_mask is None:
        attention_mask = jnp.ones((B, T), f32)

    # ---- tiny host-side packing of RAW inputs (O(B*S*D_in) data only) ----
    feats = jnp.zeros((B, T, 3, D_in), f32)
    feats = feats.at[:, :, 0, :Sd].set(states.astype(f32))
    feats = feats.at[:, :, 1, Sd:Sd + Ad].set(actions.astype(f32))
    feats = feats.at[:, :, 2, Sd + Ad:].set(rewards.astype(f32))
    x_in = feats.reshape(B, S, D_in)                                   # interleaved s,a,r rows

    sam = jnp.repeat(attention_mask.astype(f32), 3, axis=1)
    sam = sam.at[:, -2:].set(0.0).reshape(B, 1, S)                     # mask a_T and r_T

    # ---- parameter packing (stack per-layer weights, fold wpe + token biases + time) ----
    gp = params["gpt2"]
    ls = gp["layers"]
    stack = lambda k: jnp.stack([lay[k] for lay in ls], axis=0)

    w_tok = jnp.concatenate([params["es_w"], params["ea_w"], params["er_w"]],
                            axis=0).astype(bf16)                        # (D_in, H)
    tok_b = jnp.stack([params["es_b"], params["ea_b"], params["er_b"]], axis=0)   # (3, H)
    base_bias = jnp.tile(tok_b, (T, 1)) + gp["wpe"][:S]                           # (S, H)
    ts_rep = jnp.repeat(timesteps.astype(jnp.int32), 3, axis=1)                   # (B, S)
    emb_bias = base_bias[None, :, :] + params["embed_timestep"][ts_rep]           # (B, S, H)

    packed = dict(
        w_tok=w_tok,
        ln1_g=stack("ln1_g")[:, None, :], ln1_b=stack("ln1_b")[:, None, :],
        attn_w=stack("attn_w").astype(bf16), attn_b=stack("attn_b")[:, None, :],
        proj_w=stack("attn_proj_w").astype(bf16), proj_b=stack("attn_proj_b")[:, None, :],
        ln2_g=stack("ln2_g")[:, None, :], ln2_b=stack("ln2_b")[:, None, :],
        fc_w=stack("fc_w").astype(bf16), fc_b=stack("fc_b")[:, None, :],
        mlp_w=stack("mlp_proj_w").astype(bf16), mlp_b=stack("mlp_proj_b")[:, None, :],
        lnf_g=gp["lnf_g"][None, :], lnf_b=gp["lnf_b"][None, :],
        pa1_w=params["pa1_w"].astype(bf16), pa1_b=params["pa1_b"][None, :],
        pa2_w=params["pa2_w"].astype(bf16), pa2_b=params["pa2_b"][None, :],
    )
    param_order = ["w_tok",
                   "ln1_g", "ln1_b", "attn_w", "attn_b", "proj_w", "proj_b",
                   "ln2_g", "ln2_b", "fc_w", "fc_b", "mlp_w", "mlp_b",
                   "lnf_g", "lnf_b", "pa1_w", "pa1_b", "pa2_w", "pa2_b"]
    param_in = [packed[k] for k in param_order]

    def batch_spec(shape):   # block over batch; last two dims = full array dims
        return pl.BlockSpec((1,) + tuple(shape[1:]),
                            lambda b: (b,) + (0,) * (len(shape) - 1))

    def full_spec(shape):    # whole array resident, same block every grid step
        return pl.BlockSpec(tuple(shape), lambda b: (0,) * len(shape))

    in_specs = [batch_spec(x_in.shape), batch_spec(sam.shape), batch_spec(emb_bias.shape)]
    in_specs += [full_spec(packed[k].shape) for k in param_order]

    out_shape = (jax.ShapeDtypeStruct((B, 1, A), f32),
                 jax.ShapeDtypeStruct((B, 1, 1), f32))
    out_specs = (pl.BlockSpec((1, 1, A), lambda b: (b, 0, 0)),
                 pl.BlockSpec((1, 1, 1), lambda b: (b, 0, 0)))

    kernel = functools.partial(
        _policy_transformer_kernel,
        n_layer=L, n_head=nH, seq_len=S, hidden=H, head_dim=Dh,
        act_num=A, state_dim=Sd, ln_eps=1e-5)

    pred, nll = pl.pallas_call(
        kernel,
        grid=(B,),
        out_shape=out_shape,
        in_specs=in_specs,
        out_specs=out_specs,
        compiler_params=pltpu.CompilerParams(
            dimension_semantics=("parallel",)),     # 2-TC sharding on v7x
    )(x_in, sam, emb_bias, *param_in)

    action_pred = pred.reshape(B, A)
    loss = jnp.mean(nll)        # mean NLL over batch (tiny B-element reduction)
    return {"action_pred": action_pred, "loss": loss}


# ----------------------------------------------------------------------------
# Deterministic parameter init (GPT2-style: N(0, 0.02), zero bias, unit LN gain)
# ----------------------------------------------------------------------------
def init_params(key, cfg):
    H = cfg["hidden_size"]
    ks = iter(jax.random.split(key, 128))

    def lin(din, dout):
        return (0.02 * jax.random.normal(next(ks), (din, dout), jnp.float32),
                jnp.zeros((dout,), jnp.float32))

    layers = []
    for _ in range(cfg["n_layer"]):
        aw, ab = lin(H, 3 * H)
        pw, pb = lin(H, H)
        fw, fb = lin(H, 4 * H)
        mw, mb = lin(4 * H, H)
        layers.append(dict(
            ln1_g=jnp.ones((H,), jnp.float32), ln1_b=jnp.zeros((H,), jnp.float32),
            attn_w=aw, attn_b=ab, attn_proj_w=pw, attn_proj_b=pb,
            ln2_g=jnp.ones((H,), jnp.float32), ln2_b=jnp.zeros((H,), jnp.float32),
            fc_w=fw, fc_b=fb, mlp_proj_w=mw, mlp_proj_b=mb,
        ))
    gpt2 = dict(
        wpe=0.02 * jax.random.normal(next(ks), (cfg["n_positions"], H), jnp.float32),
        layers=layers,
        lnf_g=jnp.ones((H,), jnp.float32), lnf_b=jnp.zeros((H,), jnp.float32),
    )
    es_w, es_b = lin(cfg["state_dim"], H)
    ea_w, ea_b = lin(cfg["act_dim"], H)
    er_w, er_b = lin(1, H)
    pa1_w, pa1_b = lin(H, H)
    pa2_w, pa2_b = lin(H, cfg["act_num"])
    return dict(
        gpt2=gpt2,
        es_w=es_w, es_b=es_b, ea_w=ea_w, ea_b=ea_b, er_w=er_w, er_b=er_b,
        embed_timestep=0.02 * jax.random.normal(next(ks), (cfg["max_ep_len"], H), jnp.float32),
        pa1_w=pa1_w, pa1_b=pa1_b, pa2_w=pa2_w, pa2_b=pa2_b,
    )


# ----------------------------------------------------------------------------
if __name__ == "__main__":
    cfg = dict(state_dim=6, act_dim=3, act_num=5, hidden_size=32,
               n_head=4, n_layer=2, max_ep_len=100, n_positions=64)
    B, T = 2, 8

    key = jax.random.PRNGKey(0)
    kp, ks, ka, kr = jax.random.split(key, 4)
    params = init_params(kp, cfg)

    states = jax.random.normal(ks, (B, T, cfg["state_dim"]), jnp.float32)
    actions = jax.random.normal(ka, (B, T, cfg["act_dim"]), jnp.float32)
    # actions[:, -1, 0] is used as the integer class label -> make it valid
    actions = actions.at[:, -1, 0].set(jnp.array([1.0, 3.0], jnp.float32))
    rewards = jax.random.normal(kr, (B, T, 1), jnp.float32)
    timesteps = jnp.tile(jnp.arange(T, dtype=jnp.int32), (B, 1))

    fwd = jax.jit(lambda p, s, a, r, t: policy_transformer_forward(p, cfg, s, a, r, t))
    out = fwd(params, states, actions, rewards, timesteps)
    jax.block_until_ready(out)
    assert out["action_pred"].shape == (B, cfg["act_num"])
    assert out["loss"].shape == ()
    # TODO(synk): training-mode dropout / token_mask_prob not implemented (eval semantics only).
    print("KERNEL_OK")
</pallas_src>

<mosaic_0001>
module attributes {stable_mosaic.version = 11 : i64} {
  func.func @_policy_transformer_kernel(%arg0: i32, %arg1: memref<1x24x10xf32, #tpu.memory_space<vmem>>, %arg2: memref<1x1x24xf32, #tpu.memory_space<vmem>>, %arg3: memref<1x24x32xf32, #tpu.memory_space<vmem>>, %arg4: memref<10x32xbf16, #tpu.memory_space<vmem>>, %arg5: memref<2x1x32xf32, #tpu.memory_space<vmem>>, %arg6: memref<2x1x32xf32, #tpu.memory_space<vmem>>, %arg7: memref<2x32x96xbf16, #tpu.memory_space<vmem>>, %arg8: memref<2x1x96xf32, #tpu.memory_space<vmem>>, %arg9: memref<2x32x32xbf16, #tpu.memory_space<vmem>>, %arg10: memref<2x1x32xf32, #tpu.memory_space<vmem>>, %arg11: memref<2x1x32xf32, #tpu.memory_space<vmem>>, %arg12: memref<2x1x32xf32, #tpu.memory_space<vmem>>, %arg13: memref<2x32x128xbf16, #tpu.memory_space<vmem>>, %arg14: memref<2x1x128xf32, #tpu.memory_space<vmem>>, %arg15: memref<2x128x32xbf16, #tpu.memory_space<vmem>>, %arg16: memref<2x1x32xf32, #tpu.memory_space<vmem>>, %arg17: memref<1x32xf32, #tpu.memory_space<vmem>>, %arg18: memref<1x32xf32, #tpu.memory_space<vmem>>, %arg19: memref<32x32xbf16, #tpu.memory_space<vmem>>, %arg20: memref<1x32xf32, #tpu.memory_space<vmem>>, %arg21: memref<32x5xbf16, #tpu.memory_space<vmem>>, %arg22: memref<1x5xf32, #tpu.memory_space<vmem>>, %arg23: memref<1x1x5xf32, #tpu.memory_space<vmem>>, %arg24: memref<1x1x1xf32, #tpu.memory_space<vmem>>) attributes {dimension_semantics = [#tpu.dimension_semantics<parallel>], iteration_bounds = array<i64: 2>, scalar_prefetch = 0 : i64, scratch_operands = 0 : i64, tpu.core_type = #tpu.core_type<tc>, window_params = [{transform_indices = @transform_0, window_bounds = array<i64: 1, 24, 10>}, {transform_indices = @transform_1, window_bounds = array<i64: 1, 1, 24>}, {transform_indices = @transform_2, window_bounds = array<i64: 1, 24, 32>}, {pipeline_mode = #tpu.pipeline_mode<synchronous>, transform_indices = @transform_3, window_bounds = array<i64: 10, 32>}, {pipeline_mode = #tpu.pipeline_mode<synchronous>, transform_indices = @transform_4, window_bounds = array<i64: 2, 1, 32>}, {pipeline_mode = #tpu.pipeline_mode<synchronous>, transform_indices = @transform_5, window_bounds = array<i64: 2, 1, 32>}, {pipeline_mode = #tpu.pipeline_mode<synchronous>, transform_indices = @transform_6, window_bounds = array<i64: 2, 32, 96>}, {pipeline_mode = #tpu.pipeline_mode<synchronous>, transform_indices = @transform_7, window_bounds = array<i64: 2, 1, 96>}, {pipeline_mode = #tpu.pipeline_mode<synchronous>, transform_indices = @transform_8, window_bounds = array<i64: 2, 32, 32>}, {pipeline_mode = #tpu.pipeline_mode<synchronous>, transform_indices = @transform_9, window_bounds = array<i64: 2, 1, 32>}, {pipeline_mode = #tpu.pipeline_mode<synchronous>, transform_indices = @transform_10, window_bounds = array<i64: 2, 1, 32>}, {pipeline_mode = #tpu.pipeline_mode<synchronous>, transform_indices = @transform_11, window_bounds = array<i64: 2, 1, 32>}, {pipeline_mode = #tpu.pipeline_mode<synchronous>, transform_indices = @transform_12, window_bounds = array<i64: 2, 32, 128>}, {pipeline_mode = #tpu.pipeline_mode<synchronous>, transform_indices = @transform_13, window_bounds = array<i64: 2, 1, 128>}, {pipeline_mode = #tpu.pipeline_mode<synchronous>, transform_indices = @transform_14, window_bounds = array<i64: 2, 128, 32>}, {pipeline_mode = #tpu.pipeline_mode<synchronous>, transform_indices = @transform_15, window_bounds = array<i64: 2, 1, 32>}, {pipeline_mode = #tpu.pipeline_mode<synchronous>, transform_indices = @transform_16, window_bounds = array<i64: 1, 32>}, {pipeline_mode = #tpu.pipeline_mode<synchronous>, transform_indices = @transform_17, window_bounds = array<i64: 1, 32>}, {pipeline_mode = #tpu.pipeline_mode<synchronous>, transform_indices = @transform_18, window_bounds = array<i64: 32, 32>}, {pipeline_mode = #tpu.pipeline_mode<synchronous>, transform_indices = @transform_19, window_bounds = array<i64: 1, 32>}, {pipeline_mode = #tpu.pipeline_mode<synchronous>, transform_indices = @transform_20, window_bounds = array<i64: 32, 5>}, {pipeline_mode = #tpu.pipeline_mode<synchronous>, transform_indices = @transform_21, window_bounds = array<i64: 1, 5>}, {transform_indices = @transform_22, window_bounds = array<i64: 1, 1, 5>}, {transform_indices = @transform_23, window_bounds = array<i64: 1, 1, 1>}]} {
    %c0 = arith.constant 0 : index
    %c0_0 = arith.constant 0 : index
    %c0_1 = arith.constant 0 : index
    %0 = vector.load %arg1[%c0, %c0_0, %c0_1] : memref<1x24x10xf32, #tpu.memory_space<vmem>>, vector<1x24x10xf32>
    %1 = vector.shape_cast %0 : vector<1x24x10xf32> to vector<24x10xf32>
    %c0_2 = arith.constant 0 : index
    %c0_3 = arith.constant 0 : index
    %c0_4 = arith.constant 0 : index
    %2 = vector.load %arg2[%c0_2, %c0_3, %c0_4] : memref<1x1x24xf32, #tpu.memory_space<vmem>>, vector<1x1x24xf32>
    %3 = vector.shape_cast %2 : vector<1x1x24xf32> to vector<1x24xf32>
    %c0_5 = arith.constant 0 : index
    %c0_6 = arith.constant 0 : index
    %4 = vector.load %arg4[%c0_5, %c0_6] : memref<10x32xbf16, #tpu.memory_space<vmem>>, vector<10x32xbf16>
    %5 = arith.truncf %1 : vector<24x10xf32> to vector<24x10xbf16>
    %cst = arith.constant dense<0.000000e+00> : vector<24x32xf32>
    %6 = tpu.matmul %5, %4, %cst {dimension_numbers = #tpu.dot_dimension_numbers<[1], [0], [0], [1], [0, 0, 1, 1], [], []>} : vector<24x10xbf16>, vector<10x32xbf16>, vector<24x32xf32> -> vector<24x32xf32>
    %c0_7 = arith.constant 0 : index
    %c0_8 = arith.constant 0 : index
    %c0_9 = arith.constant 0 : index
    %7 = vector.load %arg3[%c0_7, %c0_8, %c0_9] : memref<1x24x32xf32, #tpu.memory_space<vmem>>, vector<1x24x32xf32>
    %8 = vector.shape_cast %7 : vector<1x24x32xf32> to vector<24x32xf32>
    %9 = arith.addf %6, %8 : vector<24x32xf32>
    %10 = tpu.iota {dimensions = array<i32: 0>} : vector<24x24xi32>
    %11 = tpu.iota {dimensions = array<i32: 1>} : vector<24x24xi32>
    %12 = arith.cmpi sle, %11, %10 : vector<24x24xi32>
    %cst_10 = arith.constant 0.000000e+00 : f32
    %13 = vector.broadcast %cst_10 : f32 to vector<1x24xf32>
    %14 = arith.cmpf ogt, %3, %13 : vector<1x24xf32>
    %15 = vector.broadcast %14 : vector<1x24xi1> to vector<24x24xi1>
    %16 = arith.andi %12, %15 : vector<24x24xi1>
    %cst_11 = arith.constant 0.000000e+00 : f32
    %cst_12 = arith.constant -1.000000e+09 : f32
    %17 = vector.broadcast %cst_11 : f32 to vector<24x24xf32>
    %18 = vector.broadcast %cst_12 : f32 to vector<24x24xf32>
    %19 = arith.select %16, %17, %18 : vector<24x24xi1>, vector<24x24xf32>
    %c0_13 = arith.constant 0 : index
    %c0_14 = arith.constant 0 : index
    %c0_15 = arith.constant 0 : index
    %20 = vector.load %arg5[%c0_13, %c0_14, %c0_15] : memref<2x1x32xf32, #tpu.memory_space<vmem>>, vector<1x1x32xf32>
    %21 = vector.shape_cast %20 : vector<1x1x32xf32> to vector<1x32xf32>
    %c0_16 = arith.constant 0 : index
    %c0_17 = arith.constant 0 : index
    %c0_18 = arith.constant 0 : index
    %22 = vector.load %arg6[%c0_16, %c0_17, %c0_18] : memref<2x1x32xf32, #tpu.memory_space<vmem>>, vector<1x1x32xf32>
    %23 = vector.shape_cast %22 : vector<1x1x32xf32> to vector<1x32xf32>
    %cst_19 = arith.constant dense<0.000000e+00> : vector<24xf32>
    %24 = vector.multi_reduction <add>, %9, %cst_19 [1] : vector<24x32xf32> to vector<24xf32>
    %25 = vector.shape_cast %24 : vector<24xf32> to vector<24x1xf32>
    %cst_20 = arith.constant 3.200000e+01 : f32
    %26 = vector.broadcast %cst_20 : f32 to vector<24x1xf32>
    %27 = arith.divf %25, %26 : vector<24x1xf32>
    %28 = vector.broadcast %27 : vector<24x1xf32> to vector<24x32xf32>
    %29 = arith.subf %9, %28 : vector<24x32xf32>
    %30 = arith.mulf %29, %29 : vector<24x32xf32>
    %cst_21 = arith.constant dense<0.000000e+00> : vector<24xf32>
    %31 = vector.multi_reduction <add>, %30, %cst_21 [1] : vector<24x32xf32> to vector<24xf32>
    %32 = vector.shape_cast %31 : vector<24xf32> to vector<24x1xf32>
    %cst_22 = arith.constant 3.200000e+01 : f32
    %33 = vector.broadcast %cst_22 : f32 to vector<24x1xf32>
    %34 = arith.divf %32, %33 : vector<24x1xf32>
    %cst_23 = arith.constant 9.99999974E-6 : f32
    %35 = vector.broadcast %cst_23 : f32 to vector<24x1xf32>
    %36 = arith.addf %34, %35 : vector<24x1xf32>
    %37 = math.rsqrt %36 : vector<24x1xf32>
    %38 = vector.broadcast %37 : vector<24x1xf32> to vector<24x32xf32>
    %39 = arith.mulf %29, %38 : vector<24x32xf32>
    %40 = vector.broadcast %21 : vector<1x32xf32> to vector<24x32xf32>
    %41 = arith.mulf %39, %40 : vector<24x32xf32>
    %42 = vector.broadcast %23 : vector<1x32xf32> to vector<24x32xf32>
    %43 = arith.addf %41, %42 : vector<24x32xf32>
    %c0_24 = arith.constant 0 : index
    %c0_25 = arith.constant 0 : index
    %c0_26 = arith.constant 0 : index
    %44 = vector.load %arg7[%c0_24, %c0_25, %c0_26] : memref<2x32x96xbf16, #tpu.memory_space<vmem>>, vector<1x32x96xbf16>
    %45 = vector.shape_cast %44 : vector<1x32x96xbf16> to vector<32x96xbf16>
    %46 = arith.truncf %43 : vector<24x32xf32> to vector<24x32xbf16>
    %cst_27 = arith.constant dense<0.000000e+00> : vector<24x96xf32>
    %47 = tpu.matmul %46, %45, %cst_27 {dimension_numbers = #tpu.dot_dimension_numbers<[1], [0], [0], [1], [0, 0, 1, 1], [], []>} : vector<24x32xbf16>, vector<32x96xbf16>, vector<24x96xf32> -> vector<24x96xf32>
    %c0_28 = arith.constant 0 : index
    %c0_29 = arith.constant 0 : index
    %c0_30 = arith.constant 0 : index
    %48 = vector.load %arg8[%c0_28, %c0_29, %c0_30] : memref<2x1x96xf32, #tpu.memory_space<vmem>>, vector<1x1x96xf32>
    %49 = vector.shape_cast %48 : vector<1x1x96xf32> to vector<1x96xf32>
    %50 = vector.broadcast %49 : vector<1x96xf32> to vector<24x96xf32>
    %51 = arith.addf %47, %50 : vector<24x96xf32>
    %c0_31 = arith.constant 0 : index
    %c0_32 = arith.constant 0 : index
    %c0_33 = arith.constant 0 : index
    %52 = vector.load %arg9[%c0_31, %c0_32, %c0_33] : memref<2x32x32xbf16, #tpu.memory_space<vmem>>, vector<1x32x32xbf16>
    %53 = vector.shape_cast %52 : vector<1x32x32xbf16> to vector<32x32xbf16>
    %c0_34 = arith.constant 0 : index
    %c0_35 = arith.constant 0 : index
    %c0_36 = arith.constant 0 : index
    %54 = vector.load %arg10[%c0_34, %c0_35, %c0_36] : memref<2x1x32xf32, #tpu.memory_space<vmem>>, vector<1x1x32xf32>
    %55 = vector.shape_cast %54 : vector<1x1x32xf32> to vector<1x32xf32>
    %56 = vector.extract_strided_slice %51 {offsets = [0, 0], sizes = [24, 8], strides = [1, 1]} : vector<24x96xf32> to vector<24x8xf32>
    %57 = vector.extract_strided_slice %51 {offsets = [0, 32], sizes = [24, 8], strides = [1, 1]} : vector<24x96xf32> to vector<24x8xf32>
    %58 = vector.extract_strided_slice %51 {offsets = [0, 64], sizes = [24, 8], strides = [1, 1]} : vector<24x96xf32> to vector<24x8xf32>
    %59 = arith.truncf %56 : vector<24x8xf32> to vector<24x8xbf16>
    %60 = arith.truncf %57 : vector<24x8xf32> to vector<24x8xbf16>
    %cst_37 = arith.constant dense<0.000000e+00> : vector<24x24xf32>
    %61 = tpu.matmul %59, %60, %cst_37 {dimension_numbers = #tpu.dot_dimension_numbers<[1], [1], [0], [0], [0, 0, 1, 0], [], []>} : vector<24x8xbf16>, vector<24x8xbf16>, vector<24x24xf32> -> vector<24x24xf32>
    %cst_38 = arith.constant 0.353553385 : f32
    %62 = vector.broadcast %cst_38 : f32 to vector<24x24xf32>
    %63 = arith.mulf %61, %62 : vector<24x24xf32>
    %64 = arith.addf %63, %19 : vector<24x24xf32>
    %cst_39 = arith.constant dense<0xFF800000> : vector<24xf32>
    %65 = vector.multi_reduction <maximumf>, %64, %cst_39 [1] : vector<24x24xf32> to vector<24xf32>
    %66 = vector.shape_cast %65 : vector<24xf32> to vector<24x1xf32>
    %67 = vector.broadcast %66 : vector<24x1xf32> to vector<24x24xf32>
    %68 = arith.subf %64, %67 : vector<24x24xf32>
    %69 = math.exp %68 : vector<24x24xf32>
    %cst_40 = arith.constant dense<0.000000e+00> : vector<24xf32>
    %70 = vector.multi_reduction <add>, %69, %cst_40 [1] : vector<24x24xf32> to vector<24xf32>
    %71 = vector.shape_cast %70 : vector<24xf32> to vector<24x1xf32>
    %72 = tpu.reciprocal %71 {approx = true} : vector<24x1xf32> -> vector<24x1xf32>
    %73 = vector.broadcast %72 : vector<24x1xf32> to vector<24x24xf32>
    %74 = arith.mulf %69, %73 : vector<24x24xf32>
    %75 = arith.truncf %74 : vector<24x24xf32> to vector<24x24xbf16>
    %76 = arith.truncf %58 : vector<24x8xf32> to vector<24x8xbf16>
    %cst_41 = arith.constant dense<0.000000e+00> : vector<24x8xf32>
    %77 = tpu.matmul %75, %76, %cst_41 {dimension_numbers = #tpu.dot_dimension_numbers<[1], [0], [0], [1], [0, 0, 1, 1], [], []>} : vector<24x24xbf16>, vector<24x8xbf16>, vector<24x8xf32> -> vector<24x8xf32>
    %78 = vector.extract_strided_slice %53 {offsets = [0, 0], sizes = [8, 32], strides = [1, 1]} : vector<32x32xbf16> to vector<8x32xbf16>
    %79 = arith.truncf %77 : vector<24x8xf32> to vector<24x8xbf16>
    %cst_42 = arith.constant dense<0.000000e+00> : vector<24x32xf32>
    %80 = tpu.matmul %79, %78, %cst_42 {dimension_numbers = #tpu.dot_dimension_numbers<[1], [0], [0], [1], [0, 0, 1, 1], [], []>} : vector<24x8xbf16>, vector<8x32xbf16>, vector<24x32xf32> -> vector<24x32xf32>
    %81 = vector.broadcast %55 : vector<1x32xf32> to vector<24x32xf32>
    %82 = arith.addf %81, %80 : vector<24x32xf32>
    %83 = vector.extract_strided_slice %51 {offsets = [0, 8], sizes = [24, 8], strides = [1, 1]} : vector<24x96xf32> to vector<24x8xf32>
    %84 = vector.extract_strided_slice %51 {offsets = [0, 40], sizes = [24, 8], strides = [1, 1]} : vector<24x96xf32> to vector<24x8xf32>
    %85 = vector.extract_strided_slice %51 {offsets = [0, 72], sizes = [24, 8], strides = [1, 1]} : vector<24x96xf32> to vector<24x8xf32>
    %86 = arith.truncf %83 : vector<24x8xf32> to vector<24x8xbf16>
    %87 = arith.truncf %84 : vector<24x8xf32> to vector<24x8xbf16>
    %cst_43 = arith.constant dense<0.000000e+00> : vector<24x24xf32>
    %88 = tpu.matmul %86, %87, %cst_43 {dimension_numbers = #tpu.dot_dimension_numbers<[1], [1], [0], [0], [0, 0, 1, 0], [], []>} : vector<24x8xbf16>, vector<24x8xbf16>, vector<24x24xf32> -> vector<24x24xf32>
    %cst_44 = arith.constant 0.353553385 : f32
    %89 = vector.broadcast %cst_44 : f32 to vector<24x24xf32>
    %90 = arith.mulf %88, %89 : vector<24x24xf32>
    %91 = arith.addf %90, %19 : vector<24x24xf32>
    %cst_45 = arith.constant dense<0xFF800000> : vector<24xf32>
    %92 = vector.multi_reduction <maximumf>, %91, %cst_45 [1] : vector<24x24xf32> to vector<24xf32>
    %93 = vector.shape_cast %92 : vector<24xf32> to vector<24x1xf32>
    %94 = vector.broadcast %93 : vector<24x1xf32> to vector<24x24xf32>
    %95 = arith.subf %91, %94 : vector<24x24xf32>
    %96 = math.exp %95 : vector<24x24xf32>
    %cst_46 = arith.constant dense<0.000000e+00> : vector<24xf32>
    %97 = vector.multi_reduction <add>, %96, %cst_46 [1] : vector<24x24xf32> to vector<24xf32>
    %98 = vector.shape_cast %97 : vector<24xf32> to vector<24x1xf32>
    %99 = tpu.reciprocal %98 {approx = true} : vector<24x1xf32> -> vector<24x1xf32>
    %100 = vector.broadcast %99 : vector<24x1xf32> to vector<24x24xf32>
    %101 = arith.mulf %96, %100 : vector<24x24xf32>
    %102 = arith.truncf %101 : vector<24x24xf32> to vector<24x24xbf16>
    %103 = arith.truncf %85 : vector<24x8xf32> to vector<24x8xbf16>
    %cst_47 = arith.constant dense<0.000000e+00> : vector<24x8xf32>
    %104 = tpu.matmul %102, %103, %cst_47 {dimension_numbers = #tpu.dot_dimension_numbers<[1], [0], [0], [1], [0, 0, 1, 1], [], []>} : vector<24x24xbf16>, vector<24x8xbf16>, vector<24x8xf32> -> vector<24x8xf32>
    %105 = vector.extract_strided_slice %53 {offsets = [8, 0], sizes = [8, 32], strides = [1, 1]} : vector<32x32xbf16> to vector<8x32xbf16>
    %106 = arith.truncf %104 : vector<24x8xf32> to vector<24x8xbf16>
    %cst_48 = arith.constant dense<0.000000e+00> : vector<24x32xf32>
    %107 = tpu.matmul %106, %105, %cst_48 {dimension_numbers = #tpu.dot_dimension_numbers<[1], [0], [0], [1], [0, 0, 1, 1], [], []>} : vector<24x8xbf16>, vector<8x32xbf16>, vector<24x32xf32> -> vector<24x32xf32>
    %108 = arith.addf %82, %107 : vector<24x32xf32>
    %109 = vector.extract_strided_slice %51 {offsets = [0, 16], sizes = [24, 8], strides = [1, 1]} : vector<24x96xf32> to vector<24x8xf32>
    %110 = vector.extract_strided_slice %51 {offsets = [0, 48], sizes = [24, 8], strides = [1, 1]} : vector<24x96xf32> to vector<24x8xf32>
    %111 = vector.extract_strided_slice %51 {offsets = [0, 80], sizes = [24, 8], strides = [1, 1]} : vector<24x96xf32> to vector<24x8xf32>
    %112 = arith.truncf %109 : vector<24x8xf32> to vector<24x8xbf16>
    %113 = arith.truncf %110 : vector<24x8xf32> to vector<24x8xbf16>
    %cst_49 = arith.constant dense<0.000000e+00> : vector<24x24xf32>
    %114 = tpu.matmul %112, %113, %cst_49 {dimension_numbers = #tpu.dot_dimension_numbers<[1], [1], [0], [0], [0, 0, 1, 0], [], []>} : vector<24x8xbf16>, vector<24x8xbf16>, vector<24x24xf32> -> vector<24x24xf32>
    %cst_50 = arith.constant 0.353553385 : f32
    %115 = vector.broadcast %cst_50 : f32 to vector<24x24xf32>
    %116 = arith.mulf %114, %115 : vector<24x24xf32>
    %117 = arith.addf %116, %19 : vector<24x24xf32>
    %cst_51 = arith.constant dense<0xFF800000> : vector<24xf32>
    %118 = vector.multi_reduction <maximumf>, %117, %cst_51 [1] : vector<24x24xf32> to vector<24xf32>
    %119 = vector.shape_cast %118 : vector<24xf32> to vector<24x1xf32>
    %120 = vector.broadcast %119 : vector<24x1xf32> to vector<24x24xf32>
    %121 = arith.subf %117, %120 : vector<24x24xf32>
    %122 = math.exp %121 : vector<24x24xf32>
    %cst_52 = arith.constant dense<0.000000e+00> : vector<24xf32>
    %123 = vector.multi_reduction <add>, %122, %cst_52 [1] : vector<24x24xf32> to vector<24xf32>
    %124 = vector.shape_cast %123 : vector<24xf32> to vector<24x1xf32>
    %125 = tpu.reciprocal %124 {approx = true} : vector<24x1xf32> -> vector<24x1xf32>
    %126 = vector.broadcast %125 : vector<24x1xf32> to vector<24x24xf32>
    %127 = arith.mulf %122, %126 : vector<24x24xf32>
    %128 = arith.truncf %127 : vector<24x24xf32> to vector<24x24xbf16>
    %129 = arith.truncf %111 : vector<24x8xf32> to vector<24x8xbf16>
    %cst_53 = arith.constant dense<0.000000e+00> : vector<24x8xf32>
    %130 = tpu.matmul %128, %129, %cst_53 {dimension_numbers = #tpu.dot_dimension_numbers<[1], [0], [0], [1], [0, 0, 1, 1], [], []>} : vector<24x24xbf16>, vector<24x8xbf16>, vector<24x8xf32> -> vector<24x8xf32>
    %131 = vector.extract_strided_slice %53 {offsets = [16, 0], sizes = [8, 32], strides = [1, 1]} : vector<32x32xbf16> to vector<8x32xbf16>
    %132 = arith.truncf %130 : vector<24x8xf32> to vector<24x8xbf16>
    %cst_54 = arith.constant dense<0.000000e+00> : vector<24x32xf32>
    %133 = tpu.matmul %132, %131, %cst_54 {dimension_numbers = #tpu.dot_dimension_numbers<[1], [0], [0], [1], [0, 0, 1, 1], [], []>} : vector<24x8xbf16>, vector<8x32xbf16>, vector<24x32xf32> -> vector<24x32xf32>
    %134 = arith.addf %108, %133 : vector<24x32xf32>
    %135 = vector.extract_strided_slice %51 {offsets = [0, 24], sizes = [24, 8], strides = [1, 1]} : vector<24x96xf32> to vector<24x8xf32>
    %136 = vector.extract_strided_slice %51 {offsets = [0, 56], sizes = [24, 8], strides = [1, 1]} : vector<24x96xf32> to vector<24x8xf32>
    %137 = vector.extract_strided_slice %51 {offsets = [0, 88], sizes = [24, 8], strides = [1, 1]} : vector<24x96xf32> to vector<24x8xf32>
    %138 = arith.truncf %135 : vector<24x8xf32> to vector<24x8xbf16>
    %139 = arith.truncf %136 : vector<24x8xf32> to vector<24x8xbf16>
    %cst_55 = arith.constant dense<0.000000e+00> : vector<24x24xf32>
    %140 = tpu.matmul %138, %139, %cst_55 {dimension_numbers = #tpu.dot_dimension_numbers<[1], [1], [0], [0], [0, 0, 1, 0], [], []>} : vector<24x8xbf16>, vector<24x8xbf16>, vector<24x24xf32> -> vector<24x24xf32>
    %cst_56 = arith.constant 0.353553385 : f32
    %141 = vector.broadcast %cst_56 : f32 to vector<24x24xf32>
    %142 = arith.mulf %140, %141 : vector<24x24xf32>
    %143 = arith.addf %142, %19 : vector<24x24xf32>
    %cst_57 = arith.constant dense<0xFF800000> : vector<24xf32>
    %144 = vector.multi_reduction <maximumf>, %143, %cst_57 [1] : vector<24x24xf32> to vector<24xf32>
    %145 = vector.shape_cast %144 : vector<24xf32> to vector<24x1xf32>
    %146 = vector.broadcast %145 : vector<24x1xf32> to vector<24x24xf32>
    %147 = arith.subf %143, %146 : vector<24x24xf32>
    %148 = math.exp %147 : vector<24x24xf32>
    %cst_58 = arith.constant dense<0.000000e+00> : vector<24xf32>
    %149 = vector.multi_reduction <add>, %148, %cst_58 [1] : vector<24x24xf32> to vector<24xf32>
    %150 = vector.shape_cast %149 : vector<24xf32> to vector<24x1xf32>
    %151 = tpu.reciprocal %150 {approx = true} : vector<24x1xf32> -> vector<24x1xf32>
    %152 = vector.broadcast %151 : vector<24x1xf32> to vector<24x24xf32>
    %153 = arith.mulf %148, %152 : vector<24x24xf32>
    %154 = arith.truncf %153 : vector<24x24xf32> to vector<24x24xbf16>
    %155 = arith.truncf %137 : vector<24x8xf32> to vector<24x8xbf16>
    %cst_59 = arith.constant dense<0.000000e+00> : vector<24x8xf32>
    %156 = tpu.matmul %154, %155, %cst_59 {dimension_numbers = #tpu.dot_dimension_numbers<[1], [0], [0], [1], [0, 0, 1, 1], [], []>} : vector<24x24xbf16>, vector<24x8xbf16>, vector<24x8xf32> -> vector<24x8xf32>
    %157 = vector.extract_strided_slice %53 {offsets = [24, 0], sizes = [8, 32], strides = [1, 1]} : vector<32x32xbf16> to vector<8x32xbf16>
    %158 = arith.truncf %156 : vector<24x8xf32> to vector<24x8xbf16>
    %cst_60 = arith.constant dense<0.000000e+00> : vector<24x32xf32>
    %159 = tpu.matmul %158, %157, %cst_60 {dimension_numbers = #tpu.dot_dimension_numbers<[1], [0], [0], [1], [0, 0, 1, 1], [], []>} : vector<24x8xbf16>, vector<8x32xbf16>, vector<24x32xf32> -> vector<24x32xf32>
    %160 = arith.addf %134, %159 : vector<24x32xf32>
    %161 = arith.addf %9, %160 : vector<24x32xf32>
    %c0_61 = arith.constant 0 : index
    %c0_62 = arith.constant 0 : index
    %c0_63 = arith.constant 0 : index
    %162 = vector.load %arg11[%c0_61, %c0_62, %c0_63] : memref<2x1x32xf32, #tpu.memory_space<vmem>>, vector<1x1x32xf32>
    %163 = vector.shape_cast %162 : vector<1x1x32xf32> to vector<1x32xf32>
    %c0_64 = arith.constant 0 : index
    %c0_65 = arith.constant 0 : index
    %c0_66 = arith.constant 0 : index
    %164 = vector.load %arg12[%c0_64, %c0_65, %c0_66] : memref<2x1x32xf32, #tpu.memory_space<vmem>>, vector<1x1x32xf32>
    %165 = vector.shape_cast %164 : vector<1x1x32xf32> to vector<1x32xf32>
    %cst_67 = arith.constant dense<0.000000e+00> : vector<24xf32>
    %166 = vector.multi_reduction <add>, %161, %cst_67 [1] : vector<24x32xf32> to vector<24xf32>
    %167 = vector.shape_cast %166 : vector<24xf32> to vector<24x1xf32>
    %cst_68 = arith.constant 3.200000e+01 : f32
    %168 = vector.broadcast %cst_68 : f32 to vector<24x1xf32>
    %169 = arith.divf %167, %168 : vector<24x1xf32>
    %170 = vector.broadcast %169 : vector<24x1xf32> to vector<24x32xf32>
    %171 = arith.subf %161, %170 : vector<24x32xf32>
    %172 = arith.mulf %171, %171 : vector<24x32xf32>
    %cst_69 = arith.constant dense<0.000000e+00> : vector<24xf32>
    %173 = vector.multi_reduction <add>, %172, %cst_69 [1] : vector<24x32xf32> to vector<24xf32>
    %174 = vector.shape_cast %173 : vector<24xf32> to vector<24x1xf32>
    %cst_70 = arith.constant 3.200000e+01 : f32
    %175 = vector.broadcast %cst_70 : f32 to vector<24x1xf32>
    %176 = arith.divf %174, %175 : vector<24x1xf32>
    %cst_71 = arith.constant 9.99999974E-6 : f32
    %177 = vector.broadcast %cst_71 : f32 to vector<24x1xf32>
    %178 = arith.addf %176, %177 : vector<24x1xf32>
    %179 = math.rsqrt %178 : vector<24x1xf32>
    %180 = vector.broadcast %179 : vector<24x1xf32> to vector<24x32xf32>
    %181 = arith.mulf %171, %180 : vector<24x32xf32>
    %182 = vector.broadcast %163 : vector<1x32xf32> to vector<24x32xf32>
    %183 = arith.mulf %181, %182 : vector<24x32xf32>
    %184 = vector.broadcast %165 : vector<1x32xf32> to vector<24x32xf32>
    %185 = arith.addf %183, %184 : vector<24x32xf32>
    %c0_72 = arith.constant 0 : index
    %c0_73 = arith.constant 0 : index
    %c0_74 = arith.constant 0 : index
    %186 = vector.load %arg13[%c0_72, %c0_73, %c0_74] : memref<2x32x128xbf16, #tpu.memory_space<vmem>>, vector<1x32x128xbf16>
    %187 = vector.shape_cast %186 : vector<1x32x128xbf16> to vector<32x128xbf16>
    %188 = arith.truncf %185 : vector<24x32xf32> to vector<24x32xbf16>
    %cst_75 = arith.constant dense<0.000000e+00> : vector<24x128xf32>
    %189 = tpu.matmul %188, %187, %cst_75 {dimension_numbers = #tpu.dot_dimension_numbers<[1], [0], [0], [1], [0, 0, 1, 1], [], []>} : vector<24x32xbf16>, vector<32x128xbf16>, vector<24x128xf32> -> vector<24x128xf32>
    %c0_76 = arith.constant 0 : index
    %c0_77 = arith.constant 0 : index
    %c0_78 = arith.constant 0 : index
    %190 = vector.load %arg14[%c0_76, %c0_77, %c0_78] : memref<2x1x128xf32, #tpu.memory_space<vmem>>, vector<1x1x128xf32>
    %191 = vector.shape_cast %190 : vector<1x1x128xf32> to vector<1x128xf32>
    %192 = vector.broadcast %191 : vector<1x128xf32> to vector<24x128xf32>
    %193 = arith.addf %189, %192 : vector<24x128xf32>
    %cst_79 = arith.constant 5.000000e-01 : f32
    %194 = vector.broadcast %cst_79 : f32 to vector<24x128xf32>
    %195 = arith.mulf %194, %193 : vector<24x128xf32>
    %cst_80 = arith.constant 4.471500e-02 : f32
    %196 = vector.broadcast %cst_80 : f32 to vector<24x128xf32>
    %197 = arith.mulf %196, %193 : vector<24x128xf32>
    %198 = arith.mulf %197, %193 : vector<24x128xf32>
    %199 = arith.mulf %198, %193 : vector<24x128xf32>
    %200 = arith.addf %193, %199 : vector<24x128xf32>
    %cst_81 = arith.constant 0.797884583 : f32
    %201 = vector.broadcast %cst_81 : f32 to vector<24x128xf32>
    %202 = arith.mulf %201, %200 : vector<24x128xf32>
    %203 = math.tanh %202 : vector<24x128xf32>
    %cst_82 = arith.constant 1.000000e+00 : f32
    %204 = vector.broadcast %cst_82 : f32 to vector<24x128xf32>
    %205 = arith.addf %204, %203 : vector<24x128xf32>
    %206 = arith.mulf %195, %205 : vector<24x128xf32>
    %c0_83 = arith.constant 0 : index
    %c0_84 = arith.constant 0 : index
    %c0_85 = arith.constant 0 : index
    %207 = vector.load %arg15[%c0_83, %c0_84, %c0_85] : memref<2x128x32xbf16, #tpu.memory_space<vmem>>, vector<1x128x32xbf16>
    %208 = vector.shape_cast %207 : vector<1x128x32xbf16> to vector<128x32xbf16>
    %209 = arith.truncf %206 : vector<24x128xf32> to vector<24x128xbf16>
    %cst_86 = arith.constant dense<0.000000e+00> : vector<24x32xf32>
    %210 = tpu.matmul %209, %208, %cst_86 {dimension_numbers = #tpu.dot_dimension_numbers<[1], [0], [0], [1], [0, 0, 1, 1], [], []>} : vector<24x128xbf16>, vector<128x32xbf16>, vector<24x32xf32> -> vector<24x32xf32>
    %211 = arith.addf %161, %210 : vector<24x32xf32>
    %c0_87 = arith.constant 0 : index
    %c0_88 = arith.constant 0 : index
    %c0_89 = arith.constant 0 : index
    %212 = vector.load %arg16[%c0_87, %c0_88, %c0_89] : memref<2x1x32xf32, #tpu.memory_space<vmem>>, vector<1x1x32xf32>
    %213 = vector.shape_cast %212 : vector<1x1x32xf32> to vector<1x32xf32>
    %214 = vector.broadcast %213 : vector<1x32xf32> to vector<24x32xf32>
    %215 = arith.addf %211, %214 : vector<24x32xf32>
    %c1 = arith.constant 1 : index
    %c0_90 = arith.constant 0 : index
    %c0_91 = arith.constant 0 : index
    %216 = vector.load %arg5[%c1, %c0_90, %c0_91] : memref<2x1x32xf32, #tpu.memory_space<vmem>>, vector<1x1x32xf32>
    %217 = vector.shape_cast %216 : vector<1x1x32xf32> to vector<1x32xf32>
    %c1_92 = arith.constant 1 : index
    %c0_93 = arith.constant 0 : index
    %c0_94 = arith.constant 0 : index
    %218 = vector.load %arg6[%c1_92, %c0_93, %c0_94] : memref<2x1x32xf32, #tpu.memory_space<vmem>>, vector<1x1x32xf32>
    %219 = vector.shape_cast %218 : vector<1x1x32xf32> to vector<1x32xf32>
    %cst_95 = arith.constant dense<0.000000e+00> : vector<24xf32>
    %220 = vector.multi_reduction <add>, %215, %cst_95 [1] : vector<24x32xf32> to vector<24xf32>
    %221 = vector.shape_cast %220 : vector<24xf32> to vector<24x1xf32>
    %cst_96 = arith.constant 3.200000e+01 : f32
    %222 = vector.broadcast %cst_96 : f32 to vector<24x1xf32>
    %223 = arith.divf %221, %222 : vector<24x1xf32>
    %224 = vector.broadcast %223 : vector<24x1xf32> to vector<24x32xf32>
    %225 = arith.subf %215, %224 : vector<24x32xf32>
    %226 = arith.mulf %225, %225 : vector<24x32xf32>
    %cst_97 = arith.constant dense<0.000000e+00> : vector<24xf32>
    %227 = vector.multi_reduction <add>, %226, %cst_97 [1] : vector<24x32xf32> to vector<24xf32>
    %228 = vector.shape_cast %227 : vector<24xf32> to vector<24x1xf32>
    %cst_98 = arith.constant 3.200000e+01 : f32
    %229 = vector.broadcast %cst_98 : f32 to vector<24x1xf32>
    %230 = arith.divf %228, %229 : vector<24x1xf32>
    %cst_99 = arith.constant 9.99999974E-6 : f32
    %231 = vector.broadcast %cst_99 : f32 to vector<24x1xf32>
    %232 = arith.addf %230, %231 : vector<24x1xf32>
    %233 = math.rsqrt %232 : vector<24x1xf32>
    %234 = vector.broadcast %233 : vector<24x1xf32> to vector<24x32xf32>
    %235 = arith.mulf %225, %234 : vector<24x32xf32>
    %236 = vector.broadcast %217 : vector<1x32xf32> to vector<24x32xf32>
    %237 = arith.mulf %235, %236 : vector<24x32xf32>
    %238 = vector.broadcast %219 : vector<1x32xf32> to vector<24x32xf32>
    %239 = arith.addf %237, %238 : vector<24x32xf32>
    %c1_100 = arith.constant 1 : index
    %c0_101 = arith.constant 0 : index
    %c0_102 = arith.constant 0 : index
    %240 = vector.load %arg7[%c1_100, %c0_101, %c0_102] : memref<2x32x96xbf16, #tpu.memory_space<vmem>>, vector<1x32x96xbf16>
    %241 = vector.shape_cast %240 : vector<1x32x96xbf16> to vector<32x96xbf16>
    %242 = arith.truncf %239 : vector<24x32xf32> to vector<24x32xbf16>
    %cst_103 = arith.constant dense<0.000000e+00> : vector<24x96xf32>
    %243 = tpu.matmul %242, %241, %cst_103 {dimension_numbers = #tpu.dot_dimension_numbers<[1], [0], [0], [1], [0, 0, 1, 1], [], []>} : vector<24x32xbf16>, vector<32x96xbf16>, vector<24x96xf32> -> vector<24x96xf32>
    %c1_104 = arith.constant 1 : index
    %c0_105 = arith.constant 0 : index
    %c0_106 = arith.constant 0 : index
    %244 = vector.load %arg8[%c1_104, %c0_105, %c0_106] : memref<2x1x96xf32, #tpu.memory_space<vmem>>, vector<1x1x96xf32>
    %245 = vector.shape_cast %244 : vector<1x1x96xf32> to vector<1x96xf32>
    %246 = vector.broadcast %245 : vector<1x96xf32> to vector<24x96xf32>
    %247 = arith.addf %243, %246 : vector<24x96xf32>
    %c1_107 = arith.constant 1 : index
    %c0_108 = arith.constant 0 : index
    %c0_109 = arith.constant 0 : index
    %248 = vector.load %arg9[%c1_107, %c0_108, %c0_109] : memref<2x32x32xbf16, #tpu.memory_space<vmem>>, vector<1x32x32xbf16>
    %249 = vector.shape_cast %248 : vector<1x32x32xbf16> to vector<32x32xbf16>
    %c1_110 = arith.constant 1 : index
    %c0_111 = arith.constant 0 : index
    %c0_112 = arith.constant 0 : index
    %250 = vector.load %arg10[%c1_110, %c0_111, %c0_112] : memref<2x1x32xf32, #tpu.memory_space<vmem>>, vector<1x1x32xf32>
    %251 = vector.shape_cast %250 : vector<1x1x32xf32> to vector<1x32xf32>
    %252 = vector.extract_strided_slice %247 {offsets = [0, 0], sizes = [24, 8], strides = [1, 1]} : vector<24x96xf32> to vector<24x8xf32>
    %253 = vector.extract_strided_slice %247 {offsets = [0, 32], sizes = [24, 8], strides = [1, 1]} : vector<24x96xf32> to vector<24x8xf32>
    %254 = vector.extract_strided_slice %247 {offsets = [0, 64], sizes = [24, 8], strides = [1, 1]} : vector<24x96xf32> to vector<24x8xf32>
    %255 = arith.truncf %252 : vector<24x8xf32> to vector<24x8xbf16>
    %256 = arith.truncf %253 : vector<24x8xf32> to vector<24x8xbf16>
    %cst_113 = arith.constant dense<0.000000e+00> : vector<24x24xf32>
    %257 = tpu.matmul %255, %256, %cst_113 {dimension_numbers = #tpu.dot_dimension_numbers<[1], [1], [0], [0], [0, 0, 1, 0], [], []>} : vector<24x8xbf16>, vector<24x8xbf16>, vector<24x24xf32> -> vector<24x24xf32>
    %cst_114 = arith.constant 0.353553385 : f32
    %258 = vector.broadcast %cst_114 : f32 to vector<24x24xf32>
    %259 = arith.mulf %257, %258 : vector<24x24xf32>
    %260 = arith.addf %259, %19 : vector<24x24xf32>
    %cst_115 = arith.constant dense<0xFF800000> : vector<24xf32>
    %261 = vector.multi_reduction <maximumf>, %260, %cst_115 [1] : vector<24x24xf32> to vector<24xf32>
    %262 = vector.shape_cast %261 : vector<24xf32> to vector<24x1xf32>
    %263 = vector.broadcast %262 : vector<24x1xf32> to vector<24x24xf32>
    %264 = arith.subf %260, %263 : vector<24x24xf32>
    %265 = math.exp %264 : vector<24x24xf32>
    %cst_116 = arith.constant dense<0.000000e+00> : vector<24xf32>
    %266 = vector.multi_reduction <add>, %265, %cst_116 [1] : vector<24x24xf32> to vector<24xf32>
    %267 = vector.shape_cast %266 : vector<24xf32> to vector<24x1xf32>
    %268 = tpu.reciprocal %267 {approx = true} : vector<24x1xf32> -> vector<24x1xf32>
    %269 = vector.broadcast %268 : vector<24x1xf32> to vector<24x24xf32>
    %270 = arith.mulf %265, %269 : vector<24x24xf32>
    %271 = arith.truncf %270 : vector<24x24xf32> to vector<24x24xbf16>
    %272 = arith.truncf %254 : vector<24x8xf32> to vector<24x8xbf16>
    %cst_117 = arith.constant dense<0.000000e+00> : vector<24x8xf32>
    %273 = tpu.matmul %271, %272, %cst_117 {dimension_numbers = #tpu.dot_dimension_numbers<[1], [0], [0], [1], [0, 0, 1, 1], [], []>} : vector<24x24xbf16>, vector<24x8xbf16>, vector<24x8xf32> -> vector<24x8xf32>
    %274 = vector.extract_strided_slice %249 {offsets = [0, 0], sizes = [8, 32], strides = [1, 1]} : vector<32x32xbf16> to vector<8x32xbf16>
    %275 = arith.truncf %273 : vector<24x8xf32> to vector<24x8xbf16>
    %cst_118 = arith.constant dense<0.000000e+00> : vector<24x32xf32>
    %276 = tpu.matmul %275, %274, %cst_118 {dimension_numbers = #tpu.dot_dimension_numbers<[1], [0], [0], [1], [0, 0, 1, 1], [], []>} : vector<24x8xbf16>, vector<8x32xbf16>, vector<24x32xf32> -> vector<24x32xf32>
    %277 = vector.broadcast %251 : vector<1x32xf32> to vector<24x32xf32>
    %278 = arith.addf %277, %276 : vector<24x32xf32>
    %279 = vector.extract_strided_slice %247 {offsets = [0, 8], sizes = [24, 8], strides = [1, 1]} : vector<24x96xf32> to vector<24x8xf32>
    %280 = vector.extract_strided_slice %247 {offsets = [0, 40], sizes = [24, 8], strides = [1, 1]} : vector<24x96xf32> to vector<24x8xf32>
    %281 = vector.extract_strided_slice %247 {offsets = [0, 72], sizes = [24, 8], strides = [1, 1]} : vector<24x96xf32> to vector<24x8xf32>
    %282 = arith.truncf %279 : vector<24x8xf32> to vector<24x8xbf16>
    %283 = arith.truncf %280 : vector<24x8xf32> to vector<24x8xbf16>
    %cst_119 = arith.constant dense<0.000000e+00> : vector<24x24xf32>
    %284 = tpu.matmul %282, %283, %cst_119 {dimension_numbers = #tpu.dot_dimension_numbers<[1], [1], [0], [0], [0, 0, 1, 0], [], []>} : vector<24x8xbf16>, vector<24x8xbf16>, vector<24x24xf32> -> vector<24x24xf32>
    %cst_120 = arith.constant 0.353553385 : f32
    %285 = vector.broadcast %cst_120 : f32 to vector<24x24xf32>
    %286 = arith.mulf %284, %285 : vector<24x24xf32>
    %287 = arith.addf %286, %19 : vector<24x24xf32>
    %cst_121 = arith.constant dense<0xFF800000> : vector<24xf32>
    %288 = vector.multi_reduction <maximumf>, %287, %cst_121 [1] : vector<24x24xf32> to vector<24xf32>
    %289 = vector.shape_cast %288 : vector<24xf32> to vector<24x1xf32>
    %290 = vector.broadcast %289 : vector<24x1xf32> to vector<24x24xf32>
    %291 = arith.subf %287, %290 : vector<24x24xf32>
    %292 = math.exp %291 : vector<24x24xf32>
    %cst_122 = arith.constant dense<0.000000e+00> : vector<24xf32>
    %293 = vector.multi_reduction <add>, %292, %cst_122 [1] : vector<24x24xf32> to vector<24xf32>
    %294 = vector.shape_cast %293 : vector<24xf32> to vector<24x1xf32>
    %295 = tpu.reciprocal %294 {approx = true} : vector<24x1xf32> -> vector<24x1xf32>
    %296 = vector.broadcast %295 : vector<24x1xf32> to vector<24x24xf32>
    %297 = arith.mulf %292, %296 : vector<24x24xf32>
    %298 = arith.truncf %297 : vector<24x24xf32> to vector<24x24xbf16>
    %299 = arith.truncf %281 : vector<24x8xf32> to vector<24x8xbf16>
    %cst_123 = arith.constant dense<0.000000e+00> : vector<24x8xf32>
    %300 = tpu.matmul %298, %299, %cst_123 {dimension_numbers = #tpu.dot_dimension_numbers<[1], [0], [0], [1], [0, 0, 1, 1], [], []>} : vector<24x24xbf16>, vector<24x8xbf16>, vector<24x8xf32> -> vector<24x8xf32>
    %301 = vector.extract_strided_slice %249 {offsets = [8, 0], sizes = [8, 32], strides = [1, 1]} : vector<32x32xbf16> to vector<8x32xbf16>
    %302 = arith.truncf %300 : vector<24x8xf32> to vector<24x8xbf16>
    %cst_124 = arith.constant dense<0.000000e+00> : vector<24x32xf32>
    %303 = tpu.matmul %302, %301, %cst_124 {dimension_numbers = #tpu.dot_dimension_numbers<[1], [0], [0], [1], [0, 0, 1, 1], [], []>} : vector<24x8xbf16>, vector<8x32xbf16>, vector<24x32xf32> -> vector<24x32xf32>
    %304 = arith.addf %278, %303 : vector<24x32xf32>
    %305 = vector.extract_strided_slice %247 {offsets = [0, 16], sizes = [24, 8], strides = [1, 1]} : vector<24x96xf32> to vector<24x8xf32>
    %306 = vector.extract_strided_slice %247 {offsets = [0, 48], sizes = [24, 8], strides = [1, 1]} : vector<24x96xf32> to vector<24x8xf32>
    %307 = vector.extract_strided_slice %247 {offsets = [0, 80], sizes = [24, 8], strides = [1, 1]} : vector<24x96xf32> to vector<24x8xf32>
    %308 = arith.truncf %305 : vector<24x8xf32> to vector<24x8xbf16>
    %309 = arith.truncf %306 : vector<24x8xf32> to vector<24x8xbf16>
    %cst_125 = arith.constant dense<0.000000e+00> : vector<24x24xf32>
    %310 = tpu.matmul %308, %309, %cst_125 {dimension_numbers = #tpu.dot_dimension_numbers<[1], [1], [0], [0], [0, 0, 1, 0], [], []>} : vector<24x8xbf16>, vector<24x8xbf16>, vector<24x24xf32> -> vector<24x24xf32>
    %cst_126 = arith.constant 0.353553385 : f32
    %311 = vector.broadcast %cst_126 : f32 to vector<24x24xf32>
    %312 = arith.mulf %310, %311 : vector<24x24xf32>
    %313 = arith.addf %312, %19 : vector<24x24xf32>
    %cst_127 = arith.constant dense<0xFF800000> : vector<24xf32>
    %314 = vector.multi_reduction <maximumf>, %313, %cst_127 [1] : vector<24x24xf32> to vector<24xf32>
    %315 = vector.shape_cast %314 : vector<24xf32> to vector<24x1xf32>
    %316 = vector.broadcast %315 : vector<24x1xf32> to vector<24x24xf32>
    %317 = arith.subf %313, %316 : vector<24x24xf32>
    %318 = math.exp %317 : vector<24x24xf32>
    %cst_128 = arith.constant dense<0.000000e+00> : vector<24xf32>
    %319 = vector.multi_reduction <add>, %318, %cst_128 [1] : vector<24x24xf32> to vector<24xf32>
    %320 = vector.shape_cast %319 : vector<24xf32> to vector<24x1xf32>
    %321 = tpu.reciprocal %320 {approx = true} : vector<24x1xf32> -> vector<24x1xf32>
    %322 = vector.broadcast %321 : vector<24x1xf32> to vector<24x24xf32>
    %323 = arith.mulf %318, %322 : vector<24x24xf32>
    %324 = arith.truncf %323 : vector<24x24xf32> to vector<24x24xbf16>
    %325 = arith.truncf %307 : vector<24x8xf32> to vector<24x8xbf16>
    %cst_129 = arith.constant dense<0.000000e+00> : vector<24x8xf32>
    %326 = tpu.matmul %324, %325, %cst_129 {dimension_numbers = #tpu.dot_dimension_numbers<[1], [0], [0], [1], [0, 0, 1, 1], [], []>} : vector<24x24xbf16>, vector<24x8xbf16>, vector<24x8xf32> -> vector<24x8xf32>
    %327 = vector.extract_strided_slice %249 {offsets = [16, 0], sizes = [8, 32], strides = [1, 1]} : vector<32x32xbf16> to vector<8x32xbf16>
    %328 = arith.truncf %326 : vector<24x8xf32> to vector<24x8xbf16>
    %cst_130 = arith.constant dense<0.000000e+00> : vector<24x32xf32>
    %329 = tpu.matmul %328, %327, %cst_130 {dimension_numbers = #tpu.dot_dimension_numbers<[1], [0], [0], [1], [0, 0, 1, 1], [], []>} : vector<24x8xbf16>, vector<8x32xbf16>, vector<24x32xf32> -> vector<24x32xf32>
    %330 = arith.addf %304, %329 : vector<24x32xf32>
    %331 = vector.extract_strided_slice %247 {offsets = [0, 24], sizes = [24, 8], strides = [1, 1]} : vector<24x96xf32> to vector<24x8xf32>
    %332 = vector.extract_strided_slice %247 {offsets = [0, 56], sizes = [24, 8], strides = [1, 1]} : vector<24x96xf32> to vector<24x8xf32>
    %333 = vector.extract_strided_slice %247 {offsets = [0, 88], sizes = [24, 8], strides = [1, 1]} : vector<24x96xf32> to vector<24x8xf32>
    %334 = arith.truncf %331 : vector<24x8xf32> to vector<24x8xbf16>
    %335 = arith.truncf %332 : vector<24x8xf32> to vector<24x8xbf16>
    %cst_131 = arith.constant dense<0.000000e+00> : vector<24x24xf32>
    %336 = tpu.matmul %334, %335, %cst_131 {dimension_numbers = #tpu.dot_dimension_numbers<[1], [1], [0], [0], [0, 0, 1, 0], [], []>} : vector<24x8xbf16>, vector<24x8xbf16>, vector<24x24xf32> -> vector<24x24xf32>
    %cst_132 = arith.constant 0.353553385 : f32
    %337 = vector.broadcast %cst_132 : f32 to vector<24x24xf32>
    %338 = arith.mulf %336, %337 : vector<24x24xf32>
    %339 = arith.addf %338, %19 : vector<24x24xf32>
    %cst_133 = arith.constant dense<0xFF800000> : vector<24xf32>
    %340 = vector.multi_reduction <maximumf>, %339, %cst_133 [1] : vector<24x24xf32> to vector<24xf32>
    %341 = vector.shape_cast %340 : vector<24xf32> to vector<24x1xf32>
    %342 = vector.broadcast %341 : vector<24x1xf32> to vector<24x24xf32>
    %343 = arith.subf %339, %342 : vector<24x24xf32>
    %344 = math.exp %343 : vector<24x24xf32>
    %cst_134 = arith.constant dense<0.000000e+00> : vector<24xf32>
    %345 = vector.multi_reduction <add>, %344, %cst_134 [1] : vector<24x24xf32> to vector<24xf32>
    %346 = vector.shape_cast %345 : vector<24xf32> to vector<24x1xf32>
    %347 = tpu.reciprocal %346 {approx = true} : vector<24x1xf32> -> vector<24x1xf32>
    %348 = vector.broadcast %347 : vector<24x1xf32> to vector<24x24xf32>
    %349 = arith.mulf %344, %348 : vector<24x24xf32>
    %350 = arith.truncf %349 : vector<24x24xf32> to vector<24x24xbf16>
    %351 = arith.truncf %333 : vector<24x8xf32> to vector<24x8xbf16>
    %cst_135 = arith.constant dense<0.000000e+00> : vector<24x8xf32>
    %352 = tpu.matmul %350, %351, %cst_135 {dimension_numbers = #tpu.dot_dimension_numbers<[1], [0], [0], [1], [0, 0, 1, 1], [], []>} : vector<24x24xbf16>, vector<24x8xbf16>, vector<24x8xf32> -> vector<24x8xf32>
    %353 = vector.extract_strided_slice %249 {offsets = [24, 0], sizes = [8, 32], strides = [1, 1]} : vector<32x32xbf16> to vector<8x32xbf16>
    %354 = arith.truncf %352 : vector<24x8xf32> to vector<24x8xbf16>
    %cst_136 = arith.constant dense<0.000000e+00> : vector<24x32xf32>
    %355 = tpu.matmul %354, %353, %cst_136 {dimension_numbers = #tpu.dot_dimension_numbers<[1], [0], [0], [1], [0, 0, 1, 1], [], []>} : vector<24x8xbf16>, vector<8x32xbf16>, vector<24x32xf32> -> vector<24x32xf32>
    %356 = arith.addf %330, %355 : vector<24x32xf32>
    %357 = arith.addf %215, %356 : vector<24x32xf32>
    %c1_137 = arith.constant 1 : index
    %c0_138 = arith.constant 0 : index
    %c0_139 = arith.constant 0 : index
    %358 = vector.load %arg11[%c1_137, %c0_138, %c0_139] : memref<2x1x32xf32, #tpu.memory_space<vmem>>, vector<1x1x32xf32>
    %359 = vector.shape_cast %358 : vector<1x1x32xf32> to vector<1x32xf32>
    %c1_140 = arith.constant 1 : index
    %c0_141 = arith.constant 0 : index
    %c0_142 = arith.constant 0 : index
    %360 = vector.load %arg12[%c1_140, %c0_141, %c0_142] : memref<2x1x32xf32, #tpu.memory_space<vmem>>, vector<1x1x32xf32>
    %361 = vector.shape_cast %360 : vector<1x1x32xf32> to vector<1x32xf32>
    %cst_143 = arith.constant dense<0.000000e+00> : vector<24xf32>
    %362 = vector.multi_reduction <add>, %357, %cst_143 [1] : vector<24x32xf32> to vector<24xf32>
    %363 = vector.shape_cast %362 : vector<24xf32> to vector<24x1xf32>
    %cst_144 = arith.constant 3.200000e+01 : f32
    %364 = vector.broadcast %cst_144 : f32 to vector<24x1xf32>
    %365 = arith.divf %363, %364 : vector<24x1xf32>
    %366 = vector.broadcast %365 : vector<24x1xf32> to vector<24x32xf32>
    %367 = arith.subf %357, %366 : vector<24x32xf32>
    %368 = arith.mulf %367, %367 : vector<24x32xf32>
    %cst_145 = arith.constant dense<0.000000e+00> : vector<24xf32>
    %369 = vector.multi_reduction <add>, %368, %cst_145 [1] : vector<24x32xf32> to vector<24xf32>
    %370 = vector.shape_cast %369 : vector<24xf32> to vector<24x1xf32>
    %cst_146 = arith.constant 3.200000e+01 : f32
    %371 = vector.broadcast %cst_146 : f32 to vector<24x1xf32>
    %372 = arith.divf %370, %371 : vector<24x1xf32>
    %cst_147 = arith.constant 9.99999974E-6 : f32
    %373 = vector.broadcast %cst_147 : f32 to vector<24x1xf32>
    %374 = arith.addf %372, %373 : vector<24x1xf32>
    %375 = math.rsqrt %374 : vector<24x1xf32>
    %376 = vector.broadcast %375 : vector<24x1xf32> to vector<24x32xf32>
    %377 = arith.mulf %367, %376 : vector<24x32xf32>
    %378 = vector.broadcast %359 : vector<1x32xf32> to vector<24x32xf32>
    %379 = arith.mulf %377, %378 : vector<24x32xf32>
    %380 = vector.broadcast %361 : vector<1x32xf32> to vector<24x32xf32>
    %381 = arith.addf %379, %380 : vector<24x32xf32>
    %c1_148 = arith.constant 1 : index
    %c0_149 = arith.constant 0 : index
    %c0_150 = arith.constant 0 : index
    %382 = vector.load %arg13[%c1_148, %c0_149, %c0_150] : memref<2x32x128xbf16, #tpu.memory_space<vmem>>, vector<1x32x128xbf16>
    %383 = vector.shape_cast %382 : vector<1x32x128xbf16> to vector<32x128xbf16>
    %384 = arith.truncf %381 : vector<24x32xf32> to vector<24x32xbf16>
    %cst_151 = arith.constant dense<0.000000e+00> : vector<24x128xf32>
    %385 = tpu.matmul %384, %383, %cst_151 {dimension_numbers = #tpu.dot_dimension_numbers<[1], [0], [0], [1], [0, 0, 1, 1], [], []>} : vector<24x32xbf16>, vector<32x128xbf16>, vector<24x128xf32> -> vector<24x128xf32>
    %c1_152 = arith.constant 1 : index
    %c0_153 = arith.constant 0 : index
    %c0_154 = arith.constant 0 : index
    %386 = vector.load %arg14[%c1_152, %c0_153, %c0_154] : memref<2x1x128xf32, #tpu.memory_space<vmem>>, vector<1x1x128xf32>
    %387 = vector.shape_cast %386 : vector<1x1x128xf32> to vector<1x128xf32>
    %388 = vector.broadcast %387 : vector<1x128xf32> to vector<24x128xf32>
    %389 = arith.addf %385, %388 : vector<24x128xf32>
    %cst_155 = arith.constant 5.000000e-01 : f32
    %390 = vector.broadcast %cst_155 : f32 to vector<24x128xf32>
    %391 = arith.mulf %390, %389 : vector<24x128xf32>
    %cst_156 = arith.constant 4.471500e-02 : f32
    %392 = vector.broadcast %cst_156 : f32 to vector<24x128xf32>
    %393 = arith.mulf %392, %389 : vector<24x128xf32>
    %394 = arith.mulf %393, %389 : vector<24x128xf32>
    %395 = arith.mulf %394, %389 : vector<24x128xf32>
    %396 = arith.addf %389, %395 : vector<24x128xf32>
    %cst_157 = arith.constant 0.797884583 : f32
    %397 = vector.broadcast %cst_157 : f32 to vector<24x128xf32>
    %398 = arith.mulf %397, %396 : vector<24x128xf32>
    %399 = math.tanh %398 : vector<24x128xf32>
    %cst_158 = arith.constant 1.000000e+00 : f32
    %400 = vector.broadcast %cst_158 : f32 to vector<24x128xf32>
    %401 = arith.addf %400, %399 : vector<24x128xf32>
    %402 = arith.mulf %391, %401 : vector<24x128xf32>
    %c1_159 = arith.constant 1 : index
    %c0_160 = arith.constant 0 : index
    %c0_161 = arith.constant 0 : index
    %403 = vector.load %arg15[%c1_159, %c0_160, %c0_161] : memref<2x128x32xbf16, #tpu.memory_space<vmem>>, vector<1x128x32xbf16>
    %404 = vector.shape_cast %403 : vector<1x128x32xbf16> to vector<128x32xbf16>
    %405 = arith.truncf %402 : vector<24x128xf32> to vector<24x128xbf16>
    %cst_162 = arith.constant dense<0.000000e+00> : vector<24x32xf32>
    %406 = tpu.matmul %405, %404, %cst_162 {dimension_numbers = #tpu.dot_dimension_numbers<[1], [0], [0], [1], [0, 0, 1, 1], [], []>} : vector<24x128xbf16>, vector<128x32xbf16>, vector<24x32xf32> -> vector<24x32xf32>
    %407 = arith.addf %357, %406 : vector<24x32xf32>
    %c1_163 = arith.constant 1 : index
    %c0_164 = arith.constant 0 : index
    %c0_165 = arith.constant 0 : index
    %408 = vector.load %arg16[%c1_163, %c0_164, %c0_165] : memref<2x1x32xf32, #tpu.memory_space<vmem>>, vector<1x1x32xf32>
    %409 = vector.shape_cast %408 : vector<1x1x32xf32> to vector<1x32xf32>
    %410 = vector.broadcast %409 : vector<1x32xf32> to vector<24x32xf32>
    %411 = arith.addf %407, %410 : vector<24x32xf32>
    %c0_166 = arith.constant 0 : index
    %c0_167 = arith.constant 0 : index
    %412 = vector.load %arg17[%c0_166, %c0_167] : memref<1x32xf32, #tpu.memory_space<vmem>>, vector<1x32xf32>
    %c0_168 = arith.constant 0 : index
    %c0_169 = arith.constant 0 : index
    %413 = vector.load %arg18[%c0_168, %c0_169] : memref<1x32xf32, #tpu.memory_space<vmem>>, vector<1x32xf32>
    %cst_170 = arith.constant dense<0.000000e+00> : vector<24xf32>
    %414 = vector.multi_reduction <add>, %411, %cst_170 [1] : vector<24x32xf32> to vector<24xf32>
    %415 = vector.shape_cast %414 : vector<24xf32> to vector<24x1xf32>
    %cst_171 = arith.constant 3.200000e+01 : f32
    %416 = vector.broadcast %cst_171 : f32 to vector<24x1xf32>
    %417 = arith.divf %415, %416 : vector<24x1xf32>
    %418 = vector.broadcast %417 : vector<24x1xf32> to vector<24x32xf32>
    %419 = arith.subf %411, %418 : vector<24x32xf32>
    %420 = arith.mulf %419, %419 : vector<24x32xf32>
    %cst_172 = arith.constant dense<0.000000e+00> : vector<24xf32>
    %421 = vector.multi_reduction <add>, %420, %cst_172 [1] : vector<24x32xf32> to vector<24xf32>
    %422 = vector.shape_cast %421 : vector<24xf32> to vector<24x1xf32>
    %cst_173 = arith.constant 3.200000e+01 : f32
    %423 = vector.broadcast %cst_173 : f32 to vector<24x1xf32>
    %424 = arith.divf %422, %423 : vector<24x1xf32>
    %cst_174 = arith.constant 9.99999974E-6 : f32
    %425 = vector.broadcast %cst_174 : f32 to vector<24x1xf32>
    %426 = arith.addf %424, %425 : vector<24x1xf32>
    %427 = math.rsqrt %426 : vector<24x1xf32>
    %428 = vector.broadcast %427 : vector<24x1xf32> to vector<24x32xf32>
    %429 = arith.mulf %419, %428 : vector<24x32xf32>
    %430 = vector.broadcast %412 : vector<1x32xf32> to vector<24x32xf32>
    %431 = arith.mulf %429, %430 : vector<24x32xf32>
    %432 = vector.broadcast %413 : vector<1x32xf32> to vector<24x32xf32>
    %433 = arith.addf %431, %432 : vector<24x32xf32>
    %434 = vector.extract_strided_slice %433 {offsets = [21, 0], sizes = [1, 32], strides = [1, 1]} : vector<24x32xf32> to vector<1x32xf32>
    %c0_175 = arith.constant 0 : index
    %c0_176 = arith.constant 0 : index
    %435 = vector.load %arg19[%c0_175, %c0_176] : memref<32x32xbf16, #tpu.memory_space<vmem>>, vector<32x32xbf16>
    %436 = arith.truncf %434 : vector<1x32xf32> to vector<1x32xbf16>
    %cst_177 = arith.constant dense<0.000000e+00> : vector<1x32xf32>
    %437 = tpu.matmul %436, %435, %cst_177 {dimension_numbers = #tpu.dot_dimension_numbers<[1], [0], [0], [1], [0, 0, 1, 1], [], []>} : vector<1x32xbf16>, vector<32x32xbf16>, vector<1x32xf32> -> vector<1x32xf32>
    %c0_178 = arith.constant 0 : index
    %c0_179 = arith.constant 0 : index
    %438 = vector.load %arg20[%c0_178, %c0_179] : memref<1x32xf32, #tpu.memory_space<vmem>>, vector<1x32xf32>
    %439 = arith.addf %437, %438 : vector<1x32xf32>
    %cst_180 = arith.constant 0.000000e+00 : f32
    %440 = vector.broadcast %cst_180 : f32 to vector<1x32xf32>
    %441 = arith.maximumf %439, %440 : vector<1x32xf32>
    %c0_181 = arith.constant 0 : index
    %c0_182 = arith.constant 0 : index
    %442 = vector.load %arg21[%c0_181, %c0_182] : memref<32x5xbf16, #tpu.memory_space<vmem>>, vector<32x5xbf16>
    %443 = arith.truncf %441 : vector<1x32xf32> to vector<1x32xbf16>
    %cst_183 = arith.constant dense<0.000000e+00> : vector<1x5xf32>
    %444 = tpu.matmul %443, %442, %cst_183 {dimension_numbers = #tpu.dot_dimension_numbers<[1], [0], [0], [1], [0, 0, 1, 1], [], []>} : vector<1x32xbf16>, vector<32x5xbf16>, vector<1x5xf32> -> vector<1x5xf32>
    %c0_184 = arith.constant 0 : index
    %c0_185 = arith.constant 0 : index
    %445 = vector.load %arg22[%c0_184, %c0_185] : memref<1x5xf32, #tpu.memory_space<vmem>>, vector<1x5xf32>
    %446 = arith.addf %444, %445 : vector<1x5xf32>
    %c0_186 = arith.constant 0 : index
    %c0_187 = arith.constant 0 : index
    %c0_188 = arith.constant 0 : index
    %447 = vector.load %arg23[%c0_186, %c0_187, %c0_188] : memref<1x1x5xf32, #tpu.memory_space<vmem>>, vector<1x1x5xf32>
    %448 = vector.shape_cast %447 : vector<1x1x5xf32> to vector<1x5xf32>
    %449 = vector.shape_cast %446 : vector<1x5xf32> to vector<1x1x5xf32>
    tpu.vector_store %arg23[%c0_186, %c0_187, %c0_188], %449 {strides = array<i32>} : memref<1x1x5xf32, #tpu.memory_space<vmem>>, vector<1x1x5xf32>,
    %cst_189 = arith.constant dense<0xFF800000> : vector<1xf32>
    %450 = vector.multi_reduction <maximumf>, %446, %cst_189 [1] : vector<1x5xf32> to vector<1xf32>
    %451 = vector.shape_cast %450 : vector<1xf32> to vector<1x1xf32>
    %452 = vector.broadcast %451 : vector<1x1xf32> to vector<1x5xf32>
    %453 = arith.subf %446, %452 : vector<1x5xf32>
    %454 = math.exp %453 : vector<1x5xf32>
    %cst_190 = arith.constant dense<0.000000e+00> : vector<1xf32>
    %455 = vector.multi_reduction <add>, %454, %cst_190 [1] : vector<1x5xf32> to vector<1xf32>
    %456 = vector.shape_cast %455 : vector<1xf32> to vector<1x1xf32>
    %457 = math.log %456 : vector<1x1xf32>
    %458 = arith.addf %451, %457 : vector<1x1xf32>
    %459 = vector.broadcast %458 : vector<1x1xf32> to vector<1x5xf32>
    %460 = arith.subf %446, %459 : vector<1x5xf32>
    %461 = vector.extract_strided_slice %1 {offsets = [22, 6], sizes = [1, 1], strides = [1, 1]} : vector<24x10xf32> to vector<1x1xf32>
    %462 = arith.fptosi %461 : vector<1x1xf32> to vector<1x1xi32>
    %463 = tpu.iota {dimensions = array<i32: 1>} : vector<1x5xi32>
    %464 = vector.broadcast %462 : vector<1x1xi32> to vector<1x5xi32>
    %465 = arith.cmpi eq, %463, %464 : vector<1x5xi32>
    %466 = arith.extui %465 : vector<1x5xi1> to vector<1x5xi32>
    %467 = arith.sitofp %466 : vector<1x5xi32> to vector<1x5xf32>
    %468 = arith.mulf %467, %460 : vector<1x5xf32>
    %cst_191 = arith.constant dense<0.000000e+00> : vector<1xf32>
    %469 = vector.multi_reduction <add>, %468, %cst_191 [1] : vector<1x5xf32> to vector<1xf32>
    %470 = vector.shape_cast %469 : vector<1xf32> to vector<1x1xf32>
    %cst_192 = arith.constant 0.000000e+00 : f32
    %471 = vector.broadcast %cst_192 : f32 to vector<1x1xf32>
    %472 = arith.subf %471, %470 : vector<1x1xf32>
    %c0_193 = arith.constant 0 : index
    %c0_194 = arith.constant 0 : index
    %c0_195 = arith.constant 0 : index
    %473 = vector.load %arg24[%c0_193, %c0_194, %c0_195] : memref<1x1x1xf32, #tpu.memory_space<vmem>>, vector<1x1x1xf32>
    %474 = vector.shape_cast %473 : vector<1x1x1xf32> to vector<1x1xf32>
    %475 = vector.shape_cast %472 : vector<1x1xf32> to vector<1x1x1xf32>
    tpu.vector_store %arg24[%c0_193, %c0_194, %c0_195], %475 {strides = array<i32>} : memref<1x1x1xf32, #tpu.memory_space<vmem>>, vector<1x1x1xf32>,
    return
  }
  func.func @transform_0(%arg0: i32) -> (i32, i32, i32) {
    %c0_i32 = arith.constant 0 : i32
    %c0_i32_0 = arith.constant 0 : i32
    %c0_i32_1 = arith.constant 0 : i32
    return %arg0, %c0_i32, %c0_i32_0 : i32, i32, i32
  }
  func.func @transform_1(%arg0: i32) -> (i32, i32, i32) {
    %c0_i32 = arith.constant 0 : i32
    %c0_i32_0 = arith.constant 0 : i32
    %c0_i32_1 = arith.constant 0 : i32
    return %arg0, %c0_i32, %c0_i32_0 : i32, i32, i32
  }
  func.func @transform_2(%arg0: i32) -> (i32, i32, i32) {
    %c0_i32 = arith.constant 0 : i32
    %c0_i32_0 = arith.constant 0 : i32
    %c0_i32_1 = arith.constant 0 : i32
    return %arg0, %c0_i32, %c0_i32_0 : i32, i32, i32
  }
  func.func @transform_3(%arg0: i32) -> (i32, i32) {
    %c0_i32 = arith.constant 0 : i32
    %c0_i32_0 = arith.constant 0 : i32
    %c0_i32_1 = arith.constant 0 : i32
    return %c0_i32, %c0_i32_0 : i32, i32
  }
  func.func @transform_4(%arg0: i32) -> (i32, i32, i32) {
    %c0_i32 = arith.constant 0 : i32
    %c0_i32_0 = arith.constant 0 : i32
    %c0_i32_1 = arith.constant 0 : i32
    %c0_i32_2 = arith.constant 0 : i32
    return %c0_i32, %c0_i32_0, %c0_i32_1 : i32, i32, i32
  }
  func.func @transform_5(%arg0: i32) -> (i32, i32, i32) {
    %c0_i32 = arith.constant 0 : i32
    %c0_i32_0 = arith.constant 0 : i32
    %c0_i32_1 = arith.constant 0 : i32
    %c0_i32_2 = arith.constant 0 : i32
    return %c0_i32, %c0_i32_0, %c0_i32_1 : i32, i32, i32
  }
  func.func @transform_6(%arg0: i32) -> (i32, i32, i32) {
    %c0_i32 = arith.constant 0 : i32
    %c0_i32_0 = arith.constant 0 : i32
    %c0_i32_1 = arith.constant 0 : i32
    %c0_i32_2 = arith.constant 0 : i32
    return %c0_i32, %c0_i32_0, %c0_i32_1 : i32, i32, i32
  }
  func.func @transform_7(%arg0: i32) -> (i32, i32, i32) {
    %c0_i32 = arith.constant 0 : i32
    %c0_i32_0 = arith.constant 0 : i32
    %c0_i32_1 = arith.constant 0 : i32
    %c0_i32_2 = arith.constant 0 : i32
    return %c0_i32, %c0_i32_0, %c0_i32_1 : i32, i32, i32
  }
  func.func @transform_8(%arg0: i32) -> (i32, i32, i32) {
    %c0_i32 = arith.constant 0 : i32
    %c0_i32_0 = arith.constant 0 : i32
    %c0_i32_1 = arith.constant 0 : i32
    %c0_i32_2 = arith.constant 0 : i32
    return %c0_i32, %c0_i32_0, %c0_i32_1 : i32, i32, i32
  }
  func.func @transform_9(%arg0: i32) -> (i32, i32, i32) {
    %c0_i32 = arith.constant 0 : i32
    %c0_i32_0 = arith.constant 0 : i32
    %c0_i32_1 = arith.constant 0 : i32
    %c0_i32_2 = arith.constant 0 : i32
    return %c0_i32, %c0_i32_0, %c0_i32_1 : i32, i32, i32
  }
  func.func @transform_10(%arg0: i32) -> (i32, i32, i32) {
    %c0_i32 = arith.constant 0 : i32
    %c0_i32_0 = arith.constant 0 : i32
    %c0_i32_1 = arith.constant 0 : i32
    %c0_i32_2 = arith.constant 0 : i32
    return %c0_i32, %c0_i32_0, %c0_i32_1 : i32, i32, i32
  }
  func.func @transform_11(%arg0: i32) -> (i32, i32, i32) {
    %c0_i32 = arith.constant 0 : i32
    %c0_i32_0 = arith.constant 0 : i32
    %c0_i32_1 = arith.constant 0 : i32
    %c0_i32_2 = arith.constant 0 : i32
    return %c0_i32, %c0_i32_0, %c0_i32_1 : i32, i32, i32
  }
  func.func @transform_12(%arg0: i32) -> (i32, i32, i32) {
    %c0_i32 = arith.constant 0 : i32
    %c0_i32_0 = arith.constant 0 : i32
    %c0_i32_1 = arith.constant 0 : i32
    %c0_i32_2 = arith.constant 0 : i32
    return %c0_i32, %c0_i32_0, %c0_i32_1 : i32, i32, i32
  }
  func.func @transform_13(%arg0: i32) -> (i32, i32, i32) {
    %c0_i32 = arith.constant 0 : i32
    %c0_i32_0 = arith.constant 0 : i32
    %c0_i32_1 = arith.constant 0 : i32
    %c0_i32_2 = arith.constant 0 : i32
    return %c0_i32, %c0_i32_0, %c0_i32_1 : i32, i32, i32
  }
  func.func @transform_14(%arg0: i32) -> (i32, i32, i32) {
    %c0_i32 = arith.constant 0 : i32
    %c0_i32_0 = arith.constant 0 : i32
    %c0_i32_1 = arith.constant 0 : i32
    %c0_i32_2 = arith.constant 0 : i32
    return %c0_i32, %c0_i32_0, %c0_i32_1 : i32, i32, i32
  }
  func.func @transform_15(%arg0: i32) -> (i32, i32, i32) {
    %c0_i32 = arith.constant 0 : i32
    %c0_i32_0 = arith.constant 0 : i32
    %c0_i32_1 = arith.constant 0 : i32
    %c0_i32_2 = arith.constant 0 : i32
    return %c0_i32, %c0_i32_0, %c0_i32_1 : i32, i32, i32
  }
  func.func @transform_16(%arg0: i32) -> (i32, i32) {
    %c0_i32 = arith.constant 0 : i32
    %c0_i32_0 = arith.constant 0 : i32
    %c0_i32_1 = arith.constant 0 : i32
    return %c0_i32, %c0_i32_0 : i32, i32
  }
  func.func @transform_17(%arg0: i32) -> (i32, i32) {
    %c0_i32 = arith.constant 0 : i32
    %c0_i32_0 = arith.constant 0 : i32
    %c0_i32_1 = arith.constant 0 : i32
    return %c0_i32, %c0_i32_0 : i32, i32
  }
  func.func @transform_18(%arg0: i32) -> (i32, i32) {
    %c0_i32 = arith.constant 0 : i32
    %c0_i32_0 = arith.constant 0 : i32
    %c0_i32_1 = arith.constant 0 : i32
    return %c0_i32, %c0_i32_0 : i32, i32
  }
  func.func @transform_19(%arg0: i32) -> (i32, i32) {
    %c0_i32 = arith.constant 0 : i32
    %c0_i32_0 = arith.constant 0 : i32
    %c0_i32_1 = arith.constant 0 : i32
    return %c0_i32, %c0_i32_0 : i32, i32
  }
  func.func @transform_20(%arg0: i32) -> (i32, i32) {
    %c0_i32 = arith.constant 0 : i32
    %c0_i32_0 = arith.constant 0 : i32
    %c0_i32_1 = arith.constant 0 : i32
    return %c0_i32, %c0_i32_0 : i32, i32
  }
  func.func @transform_21(%arg0: i32) -> (i32, i32) {
    %c0_i32 = arith.constant 0 : i32
    %c0_i32_0 = arith.constant 0 : i32
    %c0_i32_1 = arith.constant 0 : i32
    return %c0_i32, %c0_i32_0 : i32, i32
  }
  func.func @transform_22(%arg0: i32) -> (i32, i32, i32) {
    %c0_i32 = arith.constant 0 : i32
    %c0_i32_0 = arith.constant 0 : i32
    %c0_i32_1 = arith.constant 0 : i32
    return %arg0, %c0_i32, %c0_i32_0 : i32, i32, i32
  }
  func.func @transform_23(%arg0: i32) -> (i32, i32, i32) {
    %c0_i32 = arith.constant 0 : i32
    %c0_i32_0 = arith.constant 0 : i32
    %c0_i32_1 = arith.constant 0 : i32
    return %arg0, %c0_i32, %c0_i32_0 : i32, i32, i32
  }
}

</mosaic_0001>

<llo_original>
// kernel: tile.9
$region0: #{tile.9}
  %s0 = inlined_call_operand.vmem [shape: f32[8,3,32], index: 0, kind: input, shape index: {}]
  %s1 = inlined_call_operand.vmem [shape: f32[24,32], index: 1, kind: output, shape index: {}]
  $region1: #{tile.9} parent=0
    #allocation0 [shape = 'u8[32768]{0}', space=vmem, size = 0x8000, scoped, tag = 'scoped mem for input reshape']
    %s3 = sshllo.u32 0, 4
    %s4 = smul.addr 4, 7
    %s5 = scalar_lea.vmem %s0, %s4
    %v6 = vld [vmem:[%s5] sm:%s3]
    %s7 = scalar_lea.vmem [#allocation0], 56
    %8 = vst [vmem:[%s7] sm:%s3] %v6
    %s9 = smul.addr 4, 6
    %s10 = scalar_lea.vmem %s0, %s9
    %v11 = vld [vmem:[%s10] sm:%s3]
    %s12 = scalar_lea.vmem [#allocation0], 48
    %13 = vst [vmem:[%s12] sm:%s3] %v11
    %s14 = smul.addr 4, 5
    %s15 = scalar_lea.vmem %s0, %s14
    %v16 = vld [vmem:[%s15] sm:%s3]
    %s17 = scalar_lea.vmem [#allocation0], 40
    %18 = vst [vmem:[%s17] sm:%s3] %v16
    %s19 = smul.addr 4, 4
    %s20 = scalar_lea.vmem %s0, %s19
    %v21 = vld [vmem:[%s20] sm:%s3]
    %s22 = scalar_lea.vmem [#allocation0], 32
    %23 = vst [vmem:[%s22] sm:%s3] %v21
    %s24 = smul.addr 4, 3
    %s25 = scalar_lea.vmem %s0, %s24
    %v26 = vld [vmem:[%s25] sm:%s3]
    %s27 = scalar_lea.vmem [#allocation0], 24
    %28 = vst [vmem:[%s27] sm:%s3] %v26
    %s29 = smul.addr 4, 2
    %s30 = scalar_lea.vmem %s0, %s29
    %v31 = vld [vmem:[%s30] sm:%s3]
    %s32 = scalar_lea.vmem [#allocation0], 16
    %33 = vst [vmem:[%s32] sm:%s3] %v31
    %s34 = scalar_lea.vmem %s0, 4
    %v35 = vld [vmem:[%s34] sm:%s3]
    %s36 = scalar_lea.vmem [#allocation0], 8
    %37 = vst [vmem:[%s36] sm:%s3] %v35
    %v38 = vld [vmem:[%s0] sm:%s3]
    %39 = vst [vmem:[#allocation0] sm:%s3] %v38
    %v40 = vld [vmem:[#allocation0] sm:$0x7]
    %vm41 = vcmask 261120
    %42 = vst.msk [vmem:[%s1] sm:$0x7] %vm41, %v40
    %s43 = scalar_lea.vmem [#allocation0], 8
    %v44 = vld [vmem:[%s43] sm:$0x7]
    %vm45 = vcmask 261120
    %s46 = scalar_lea.vmem %s1, 3
    %47 = vst.msk [vmem:[%s46] sm:$0x7] %vm45, %v44
    %s48 = scalar_lea.vmem [#allocation0], 16
    %v49 = vld [vmem:[%s48] sm:$0x7]
    %vm50 = vcmask 261120
    %s51 = scalar_lea.vmem %s1, 6
    %52 = vst.msk [vmem:[%s51] sm:$0x7] %vm50, %v49
    %s53 = scalar_lea.vmem [#allocation0], 24
    %v54 = vld [vmem:[%s53] sm:$0x7]
    %vm55 = vcmask 261120
    %s56 = scalar_lea.vmem %s1, 9
    %57 = vst.msk [vmem:[%s56] sm:$0x7] %vm55, %v54
    %s58 = scalar_lea.vmem [#allocation0], 32
    %v59 = vld [vmem:[%s58] sm:$0x7]
    %vm60 = vcmask 261120
    %s61 = scalar_lea.vmem %s1, 12
    %62 = vst.msk [vmem:[%s61] sm:$0x7] %vm60, %v59
    %s63 = scalar_lea.vmem [#allocation0], 40
    %v64 = vld [vmem:[%s63] sm:$0x7]
    %vm65 = vcmask 261120
    %s66 = scalar_lea.vmem %s1, 15
    %67 = vst.msk [vmem:[%s66] sm:$0x7] %vm65, %v64
    %s68 = scalar_lea.vmem [#allocation0], 48
    %v69 = vld [vmem:[%s68] sm:$0x7]
    %vm70 = vcmask 261120
    %s71 = scalar_lea.vmem %s1, 18
    %72 = vst.msk [vmem:[%s71] sm:$0x7] %vm70, %v69
    %s73 = scalar_lea.vmem [#allocation0], 56
    %v74 = vld [vmem:[%s73] sm:$0x7]
    %vm75 = vcmask 261120
    %s76 = scalar_lea.vmem %s1, 21
    %77 = vst.msk [vmem:[%s76] sm:$0x7] %vm75, %v74

// kernel: _lambda_.1
$region0: #{_lambda_.1}
  #allocation0 [shape = 'u32[]', space=smem, size = 0x4, offset = 0x4, fixed_abs, tag = 'smem constant byte address 0x4 - core index']
  #allocation1 [shape = 'u32[144,128]{1,0:T(1,128)}', space=vmem, size = 0x12000, scoped, tag = 'internal scratch']
  %s0 = inlined_call_operand.vmem [shape: f32[2,24,10], index: 0, kind: input, shape index: {}]
  %s1 = inlined_call_operand.vmem [shape: f32[2,1,24], index: 1, kind: input, shape index: {}]
  %s2 = inlined_call_operand.vmem [shape: f32[2,24,32], index: 2, kind: input, shape index: {}]
  %s3 = inlined_call_operand.vmem [shape: bf16[10,32], index: 3, kind: input, shape index: {}]
  %s4 = inlined_call_operand.vmem [shape: f32[2,1,32], index: 4, kind: input, shape index: {}]
  %s5 = inlined_call_operand.vmem [shape: f32[2,1,32], index: 5, kind: input, shape index: {}]
  %s6 = inlined_call_operand.vmem [shape: bf16[2,32,96], index: 6, kind: input, shape index: {}]
  %s7 = inlined_call_operand.vmem [shape: f32[2,1,96], index: 7, kind: input, shape index: {}]
  %s8 = inlined_call_operand.vmem [shape: bf16[2,32,32], index: 8, kind: input, shape index: {}]
  %s9 = inlined_call_operand.vmem [shape: f32[2,1,32], index: 9, kind: input, shape index: {}]
  %s10 = inlined_call_operand.vmem [shape: f32[2,1,32], index: 10, kind: input, shape index: {}]
  %s11 = inlined_call_operand.vmem [shape: f32[2,1,32], index: 11, kind: input, shape index: {}]
  %s12 = inlined_call_operand.vmem [shape: bf16[2,32,128], index: 12, kind: input, shape index: {}]
  %s13 = inlined_call_operand.vmem [shape: f32[2,1,128], index: 13, kind: input, shape index: {}]
  %s14 = inlined_call_operand.vmem [shape: bf16[2,128,32], index: 14, kind: input, shape index: {}]
  %s15 = inlined_call_operand.vmem [shape: f32[2,1,32], index: 15, kind: input, shape index: {}]
  %s16 = inlined_call_operand.vmem [shape: f32[1,32], index: 16, kind: input, shape index: {}]
  %s17 = inlined_call_operand.vmem [shape: f32[1,32], index: 17, kind: input, shape index: {}]
  %s18 = inlined_call_operand.vmem [shape: bf16[32,32], index: 18, kind: input, shape index: {}]
  %s19 = inlined_call_operand.vmem [shape: f32[1,32], index: 19, kind: input, shape index: {}]
  %s20 = inlined_call_operand.vmem [shape: bf16[32,5], index: 20, kind: input, shape index: {}]
  %s21 = inlined_call_operand.vmem [shape: f32[1,5], index: 21, kind: input, shape index: {}]
  %s22 = inlined_call_operand.hbm [shape: f32[2,1,5], index: 22, kind: output, shape index: {0}]
  %s23 = inlined_call_operand.vmem [shape: f32[2,1,1], index: 23, kind: output, shape index: {1}]
  %24 = xla_tuple %s22, %s23
  %s25 = sld [smem:[#allocation0]]
  $region129: #{_lambda_.1} parent=0
    _
  %s27 = ssub.s32 1, %s25
  %s28 = scalar_select 0, %s27, %s25
  $region1: #{_lambda_.1} parent=0
    #allocation2 [shape = 'u8[1024]{0}', space=vmem, size = 0x400, scoped, tag = 'output window, operand 0']
    #allocation3 [shape = 's32[2]{0}', space=sflag, size = 0x8, scoped, tag = 'scoped memory for _lambda_.1']
    %29 = vsyncpa [#allocation3], 0
    %s30 = scalar_lea.sflag [#allocation3], 1
    %31 = vsyncpa %s30, 0
    loop: start=0, step=1, limit=4
    $region2: #{_lambda_.1} parent=1 // loop_pre_header
      _
    $region3: #{_lambda_.1} parent=1 // loop_header
      %s33 = sphi 0, %s37
      %p34 = scmp.ge.s32.totalorder %s33, 4
      %s43 = sphi 0, %s45
      %s46 = sphi 0, %s43
      %s47 = sphi 0, %s46
      %s63 = sphi 0, %s47
      %s69 = sphi 0, %s71
      %s72 = sphi 0, %s69
      %s73 = sphi 0, %s72
      %s89 = sphi 0, %s73
      %s95 = sphi 0, %s97
      %s98 = sphi 0, %s95
      %s99 = sphi 0, %s98
      %s115 = sphi 0, %s99
      %s119 = sphi 0, %s119
      %s121 = sphi 0, %s119
      %s122 = sphi 0, %s121
      %s136 = sphi 0, %s122
      %s140 = sphi 0, %s140
      %s142 = sphi 0, %s140
      %s143 = sphi 0, %s142
      %s157 = sphi 0, %s143
      %s161 = sphi 0, %s161
      %s163 = sphi 0, %s161
      %s164 = sphi 0, %s163
      %s178 = sphi 0, %s164
      %s182 = sphi 0, %s182
      %s184 = sphi 0, %s182
      %s185 = sphi 0, %s184
      %s199 = sphi 0, %s185
      %s203 = sphi 0, %s203
      %s205 = sphi 0, %s203
      %s206 = sphi 0, %s205
      %s220 = sphi 0, %s206
      %s224 = sphi 0, %s224
      %s226 = sphi 0, %s224
      %s227 = sphi 0, %s226
      %s241 = sphi 0, %s227
      %s245 = sphi 0, %s245
      %s247 = sphi 0, %s245
      %s248 = sphi 0, %s247
      %s262 = sphi 0, %s248
      %s266 = sphi 0, %s266
      %s268 = sphi 0, %s266
      %s269 = sphi 0, %s268
      %s283 = sphi 0, %s269
      %s287 = sphi 0, %s287
      %s289 = sphi 0, %s287
      %s290 = sphi 0, %s289
      %s304 = sphi 0, %s290
      %s308 = sphi 0, %s308
      %s310 = sphi 0, %s308
      %s311 = sphi 0, %s310
      %s325 = sphi 0, %s311
      %s329 = sphi 0, %s329
      %s331 = sphi 0, %s329
      %s332 = sphi 0, %s331
      %s346 = sphi 0, %s332
      %s350 = sphi 0, %s350
      %s352 = sphi 0, %s350
      %s353 = sphi 0, %s352
      %s367 = sphi 0, %s353
      %s371 = sphi 0, %s371
      %s373 = sphi 0, %s371
      %s374 = sphi 0, %s373
      %s388 = sphi 0, %s374
      %s392 = sphi 0, %s392
      %s394 = sphi 0, %s392
      %s395 = sphi 0, %s394
      %s409 = sphi 0, %s395
      %s413 = sphi 0, %s413
      %s415 = sphi 0, %s413
      %s416 = sphi 0, %s415
      %s430 = sphi 0, %s416
      %s434 = sphi 0, %s434
      %s436 = sphi 0, %s434
      %s437 = sphi 0, %s436
      %s451 = sphi 0, %s437
      %s455 = sphi 0, %s455
      %s457 = sphi 0, %s455
      %s458 = sphi 0, %s457
      %s472 = sphi 0, %s458
      %s476 = sphi 0, %s476
      %s478 = sphi 0, %s476
      %s479 = sphi 0, %s478
      %s493 = sphi 0, %s479
      %s497 = sphi 0, %s497
      %s499 = sphi 0, %s497
      %s500 = sphi 0, %s499
      %s514 = sphi 0, %s500
      %s520 = sphi 0, %s522
      %s523 = sphi 0, %s520
      %s524 = sphi 0, %s523
      %s540 = sphi 0, %s524
      %s546 = sphi 0, %s548
      %s549 = sphi 0, %s546
      %s550 = sphi 0, %s549
      %s566 = sphi 0, %s550
    $region4: #{_lambda_.1} parent=1 // loop_header_branch
      %36 = sbr.rel (%p34) target = $region8
    $region5: #{_lambda_.1} parent=1 // loop_body
      %s38 = ssub.s32 %s33, 1
      %s39 = ssub.s32 %s33, 2
      %s40 = sadd.s32 %s33, 1
      %s41 = ssub.s32 %s33, %s40
      %p42 = scmp.eq.s32.totalorder %s41, 0
      %s44 = sadd.s32 %s43, 1
      %s45 = scalar_select %p42, %s43, %s44
      %p48 = pneg %p42
      %p49 = scmp.eq.s32.totalorder %s33, 1
      %p50 = por %p48, %p49
      %p51 = scmp.ne.s32.totalorder %s43, %s46
      %p52 = scmp.eq.s32.totalorder %s33, 0
      %p53 = por %p51, %p52
      %p54 = scmp.ne.s32.totalorder %s43, %s46
      %p55 = scmp.eq.s32.totalorder %s38, 1
      %p56 = por %p54, %p55
      %p57 = scmp.ne.s32.totalorder %s46, %s47
      %p58 = scmp.eq.s32.totalorder %s38, 0
      %p59 = por %p57, %p58
      %p60 = scmp.ne.s32.totalorder %s46, %s47
      %p61 = scmp.eq.s32.totalorder %s39, 1
      %p62 = por %p60, %p61
      %p64 = scmp.ne.s32.totalorder %s47, %s63
      %p65 = scmp.eq.s32.totalorder %s39, 0
      %p66 = por %p64, %p65
      %s67 = ssub.s32 %s33, %s40
      %p68 = scmp.eq.s32.totalorder %s67, 0
      %s70 = sadd.s32 %s69, 1
      %s71 = scalar_select %p68, %s69, %s70
      %p74 = pneg %p68
      %p75 = scmp.eq.s32.totalorder %s33, 1
      %p76 = por %p74, %p75
      %p77 = scmp.ne.s32.totalorder %s69, %s72
      %p78 = scmp.eq.s32.totalorder %s33, 0
      %p79 = por %p77, %p78
      %p80 = scmp.ne.s32.totalorder %s69, %s72
      %p81 = scmp.eq.s32.totalorder %s38, 1
      %p82 = por %p80, %p81
      %p83 = scmp.ne.s32.totalorder %s72, %s73
      %p84 = scmp.eq.s32.totalorder %s38, 0
      %p85 = por %p83, %p84
      %p86 = scmp.ne.s32.totalorder %s72, %s73
      %p87 = scmp.eq.s32.totalorder %s39, 1
      %p88 = por %p86, %p87
      %p90 = scmp.ne.s32.totalorder %s73, %s89
      %p91 = scmp.eq.s32.totalorder %s39, 0
      %p92 = por %p90, %p91
      %s93 = ssub.s32 %s33, %s40
      %p94 = scmp.eq.s32.totalorder %s93, 0
      %s96 = sadd.s32 %s95, 1
      %s97 = scalar_select %p94, %s95, %s96
      %p100 = pneg %p94
      %p101 = scmp.eq.s32.totalorder %s33, 1
      %p102 = por %p100, %p101
      %p103 = scmp.ne.s32.totalorder %s95, %s98
      %p104 = scmp.eq.s32.totalorder %s33, 0
      %p105 = por %p103, %p104
      %p106 = scmp.ne.s32.totalorder %s95, %s98
      %p107 = scmp.eq.s32.totalorder %s38, 1
      %p108 = por %p106, %p107
      %p109 = scmp.ne.s32.totalorder %s98, %s99
      %p110 = scmp.eq.s32.totalorder %s38, 0
      %p111 = por %p109, %p110
      %p112 = scmp.ne.s32.totalorder %s98, %s99
      %p113 = scmp.eq.s32.totalorder %s39, 1
      %p114 = por %p112, %p113
      %p116 = scmp.ne.s32.totalorder %s99, %s115
      %p117 = scmp.eq.s32.totalorder %s39, 0
      %p118 = por %p116, %p117
      %s120 = sadd.s32 %s119, 1
      %p123 = scmp.eq.s32.totalorder %s33, 1
      %p124 = scmp.ne.s32.totalorder %s119, %s121
      %p125 = scmp.eq.s32.totalorder %s33, 0
      %p126 = por %p124, %p125
      %p127 = scmp.ne.s32.totalorder %s119, %s121
      %p128 = scmp.eq.s32.totalorder %s38, 1
      %p129 = por %p127, %p128
      %p130 = scmp.ne.s32.totalorder %s121, %s122
      %p131 = scmp.eq.s32.totalorder %s38, 0
      %p132 = por %p130, %p131
      %p133 = scmp.ne.s32.totalorder %s121, %s122
      %p134 = scmp.eq.s32.totalorder %s39, 1
      %p135 = por %p133, %p134
      %p137 = scmp.ne.s32.totalorder %s122, %s136
      %p138 = scmp.eq.s32.totalorder %s39, 0
      %p139 = por %p137, %p138
      %s141 = sadd.s32 %s140, 1
      %p144 = scmp.eq.s32.totalorder %s33, 1
      %p145 = scmp.ne.s32.totalorder %s140, %s142
      %p146 = scmp.eq.s32.totalorder %s33, 0
      %p147 = por %p145, %p146
      %p148 = scmp.ne.s32.totalorder %s140, %s142
      %p149 = scmp.eq.s32.totalorder %s38, 1
      %p150 = por %p148, %p149
      %p151 = scmp.ne.s32.totalorder %s142, %s143
      %p152 = scmp.eq.s32.totalorder %s38, 0
      %p153 = por %p151, %p152
      %p154 = scmp.ne.s32.totalorder %s142, %s143
      %p155 = scmp.eq.s32.totalorder %s39, 1
      %p156 = por %p154, %p155
      %p158 = scmp.ne.s32.totalorder %s143, %s157
      %p159 = scmp.eq.s32.totalorder %s39, 0
      %p160 = por %p158, %p159
      %s162 = sadd.s32 %s161, 1
      %p165 = scmp.eq.s32.totalorder %s33, 1
      %p166 = scmp.ne.s32.totalorder %s161, %s163
      %p167 = scmp.eq.s32.totalorder %s33, 0
      %p168 = por %p166, %p167
      %p169 = scmp.ne.s32.totalorder %s161, %s163
      %p170 = scmp.eq.s32.totalorder %s38, 1
      %p171 = por %p169, %p170
      %p172 = scmp.ne.s32.totalorder %s163, %s164
      %p173 = scmp.eq.s32.totalorder %s38, 0
      %p174 = por %p172, %p173
      %p175 = scmp.ne.s32.totalorder %s163, %s164
      %p176 = scmp.eq.s32.totalorder %s39, 1
      %p177 = por %p175, %p176
      %p179 = scmp.ne.s32.totalorder %s164, %s178
      %p180 = scmp.eq.s32.totalorder %s39, 0
      %p181 = por %p179, %p180
      %s183 = sadd.s32 %s182, 1
      %p186 = scmp.eq.s32.totalorder %s33, 1
      %p187 = scmp.ne.s32.totalorder %s182, %s184
      %p188 = scmp.eq.s32.totalorder %s33, 0
      %p189 = por %p187, %p188
      %p190 = scmp.ne.s32.totalorder %s182, %s184
      %p191 = scmp.eq.s32.totalorder %s38, 1
      %p192 = por %p190, %p191
      %p193 = scmp.ne.s32.totalorder %s184, %s185
      %p194 = scmp.eq.s32.totalorder %s38, 0
      %p195 = por %p193, %p194
      %p196 = scmp.ne.s32.totalorder %s184, %s185
      %p197 = scmp.eq.s32.totalorder %s39, 1
      %p198 = por %p196, %p197
      %p200 = scmp.ne.s32.totalorder %s185, %s199
      %p201 = scmp.eq.s32.totalorder %s39, 0
      %p202 = por %p200, %p201
      %s204 = sadd.s32 %s203, 1
      %p207 = scmp.eq.s32.totalorder %s33, 1
      %p208 = scmp.ne.s32.totalorder %s203, %s205
      %p209 = scmp.eq.s32.totalorder %s33, 0
      %p210 = por %p208, %p209
      %p211 = scmp.ne.s32.totalorder %s203, %s205
      %p212 = scmp.eq.s32.totalorder %s38, 1
      %p213 = por %p211, %p212
      %p214 = scmp.ne.s32.totalorder %s205, %s206
      %p215 = scmp.eq.s32.totalorder %s38, 0
      %p216 = por %p214, %p215
      %p217 = scmp.ne.s32.totalorder %s205, %s206
      %p218 = scmp.eq.s32.totalorder %s39, 1
      %p219 = por %p217, %p218
      %p221 = scmp.ne.s32.totalorder %s206, %s220
      %p222 = scmp.eq.s32.totalorder %s39, 0
      %p223 = por %p221, %p222
      %s225 = sadd.s32 %s224, 1
      %p228 = scmp.eq.s32.totalorder %s33, 1
      %p229 = scmp.ne.s32.totalorder %s224, %s226
      %p230 = scmp.eq.s32.totalorder %s33, 0
      %p231 = por %p229, %p230
      %p232 = scmp.ne.s32.totalorder %s224, %s226
      %p233 = scmp.eq.s32.totalorder %s38, 1
      %p234 = por %p232, %p233
      %p235 = scmp.ne.s32.totalorder %s226, %s227
      %p236 = scmp.eq.s32.totalorder %s38, 0
      %p237 = por %p235, %p236
      %p238 = scmp.ne.s32.totalorder %s226, %s227
      %p239 = scmp.eq.s32.totalorder %s39, 1
      %p240 = por %p238, %p239
      %p242 = scmp.ne.s32.totalorder %s227, %s241
      %p243 = scmp.eq.s32.totalorder %s39, 0
      %p244 = por %p242, %p243
      %s246 = sadd.s32 %s245, 1
      %p249 = scmp.eq.s32.totalorder %s33, 1
      %p250 = scmp.ne.s32.totalorder %s245, %s247
      %p251 = scmp.eq.s32.totalorder %s33, 0
      %p252 = por %p250, %p251
      %p253 = scmp.ne.s32.totalorder %s245, %s247
      %p254 = scmp.eq.s32.totalorder %s38, 1
      %p255 = por %p253, %p254
      %p256 = scmp.ne.s32.totalorder %s247, %s248
      %p257 = scmp.eq.s32.totalorder %s38, 0
      %p258 = por %p256, %p257
      %p259 = scmp.ne.s32.totalorder %s247, %s248
      %p260 = scmp.eq.s32.totalorder %s39, 1
      %p261 = por %p259, %p260
      %p263 = scmp.ne.s32.totalorder %s248, %s262
      %p264 = scmp.eq.s32.totalorder %s39, 0
      %p265 = por %p263, %p264
      %s267 = sadd.s32 %s266, 1
      %p270 = scmp.eq.s32.totalorder %s33, 1
      %p271 = scmp.ne.s32.totalorder %s266, %s268
      %p272 = scmp.eq.s32.totalorder %s33, 0
      %p273 = por %p271, %p272
      %p274 = scmp.ne.s32.totalorder %s266, %s268
      %p275 = scmp.eq.s32.totalorder %s38, 1
      %p276 = por %p274, %p275
      %p277 = scmp.ne.s32.totalorder %s268, %s269
      %p278 = scmp.eq.s32.totalorder %s38, 0
      %p279 = por %p277, %p278
      %p280 = scmp.ne.s32.totalorder %s268, %s269
      %p281 = scmp.eq.s32.totalorder %s39, 1
      %p282 = por %p280, %p281
      %p284 = scmp.ne.s32.totalorder %s269, %s283
      %p285 = scmp.eq.s32.totalorder %s39, 0
      %p286 = por %p284, %p285
      %s288 = sadd.s32 %s287, 1
      %p291 = scmp.eq.s32.totalorder %s33, 1
      %p292 = scmp.ne.s32.totalorder %s287, %s289
      %p293 = scmp.eq.s32.totalorder %s33, 0
      %p294 = por %p292, %p293
      %p295 = scmp.ne.s32.totalorder %s287, %s289
      %p296 = scmp.eq.s32.totalorder %s38, 1
      %p297 = por %p295, %p296
      %p298 = scmp.ne.s32.totalorder %s289, %s290
      %p299 = scmp.eq.s32.totalorder %s38, 0
      %p300 = por %p298, %p299
      %p301 = scmp.ne.s32.totalorder %s289, %s290
      %p302 = scmp.eq.s32.totalorder %s39, 1
      %p303 = por %p301, %p302
      %p305 = scmp.ne.s32.totalorder %s290, %s304
      %p306 = scmp.eq.s32.totalorder %s39, 0
      %p307 = por %p305, %p306
      %s309 = sadd.s32 %s308, 1
      %p312 = scmp.eq.s32.totalorder %s33, 1
      %p313 = scmp.ne.s32.totalorder %s308, %s310
      %p314 = scmp.eq.s32.totalorder %s33, 0
      %p315 = por %p313, %p314
      %p316 = scmp.ne.s32.totalorder %s308, %s310
      %p317 = scmp.eq.s32.totalorder %s38, 1
      %p318 = por %p316, %p317
      %p319 = scmp.ne.s32.totalorder %s310, %s311
      %p320 = scmp.eq.s32.totalorder %s38, 0
      %p321 = por %p319, %p320
      %p322 = scmp.ne.s32.totalorder %s310, %s311
      %p323 = scmp.eq.s32.totalorder %s39, 1
      %p324 = por %p322, %p323
      %p326 = scmp.ne.s32.totalorder %s311, %s325
      %p327 = scmp.eq.s32.totalorder %s39, 0
      %p328 = por %p326, %p327
      %s330 = sadd.s32 %s329, 1
      %p333 = scmp.eq.s32.totalorder %s33, 1
      %p334 = scmp.ne.s32.totalorder %s329, %s331
      %p335 = scmp.eq.s32.totalorder %s33, 0
      %p336 = por %p334, %p335
      %p337 = scmp.ne.s32.totalorder %s329, %s331
      %p338 = scmp.eq.s32.totalorder %s38, 1
      %p339 = por %p337, %p338
      %p340 = scmp.ne.s32.totalorder %s331, %s332
      %p341 = scmp.eq.s32.totalorder %s38, 0
      %p342 = por %p340, %p341
      %p343 = scmp.ne.s32.totalorder %s331, %s332
      %p344 = scmp.eq.s32.totalorder %s39, 1
      %p345 = por %p343, %p344
      %p347 = scmp.ne.s32.totalorder %s332, %s346
      %p348 = scmp.eq.s32.totalorder %s39, 0
      %p349 = por %p347, %p348
      %s351 = sadd.s32 %s350, 1
      %p354 = scmp.eq.s32.totalorder %s33, 1
      %p355 = scmp.ne.s32.totalorder %s350, %s352
      %p356 = scmp.eq.s32.totalorder %s33, 0
      %p357 = por %p355, %p356
      %p358 = scmp.ne.s32.totalorder %s350, %s352
      %p359 = scmp.eq.s32.totalorder %s38, 1
      %p360 = por %p358, %p359
      %p361 = scmp.ne.s32.totalorder %s352, %s353
      %p362 = scmp.eq.s32.totalorder %s38, 0
      %p363 = por %p361, %p362
      %p364 = scmp.ne.s32.totalorder %s352, %s353
      %p365 = scmp.eq.s32.totalorder %s39, 1
      %p366 = por %p364, %p365
      %p368 = scmp.ne.s32.totalorder %s353, %s367
      %p369 = scmp.eq.s32.totalorder %s39, 0
      %p370 = por %p368, %p369
      %s372 = sadd.s32 %s371, 1
      %p375 = scmp.eq.s32.totalorder %s33, 1
      %p376 = scmp.ne.s32.totalorder %s371, %s373
      %p377 = scmp.eq.s32.totalorder %s33, 0
      %p378 = por %p376, %p377
      %p379 = scmp.ne.s32.totalorder %s371, %s373
      %p380 = scmp.eq.s32.totalorder %s38, 1
      %p381 = por %p379, %p380
      %p382 = scmp.ne.s32.totalorder %s373, %s374
      %p383 = scmp.eq.s32.totalorder %s38, 0
      %p384 = por %p382, %p383
      %p385 = scmp.ne.s32.totalorder %s373, %s374
      %p386 = scmp.eq.s32.totalorder %s39, 1
      %p387 = por %p385, %p386
      %p389 = scmp.ne.s32.totalorder %s374, %s388
      %p390 = scmp.eq.s32.totalorder %s39, 0
      %p391 = por %p389, %p390
      %s393 = sadd.s32 %s392, 1
      %p396 = scmp.eq.s32.totalorder %s33, 1
      %p397 = scmp.ne.s32.totalorder %s392, %s394
      %p398 = scmp.eq.s32.totalorder %s33, 0
      %p399 = por %p397, %p398
      %p400 = scmp.ne.s32.totalorder %s392, %s394
      %p401 = scmp.eq.s32.totalorder %s38, 1
      %p402 = por %p400, %p401
      %p403 = scmp.ne.s32.totalorder %s394, %s395
      %p404 = scmp.eq.s32.totalorder %s38, 0
      %p405 = por %p403, %p404
      %p406 = scmp.ne.s32.totalorder %s394, %s395
      %p407 = scmp.eq.s32.totalorder %s39, 1
      %p408 = por %p406, %p407
      %p410 = scmp.ne.s32.totalorder %s395, %s409
      %p411 = scmp.eq.s32.totalorder %s39, 0
      %p412 = por %p410, %p411
      %s414 = sadd.s32 %s413, 1
      %p417 = scmp.eq.s32.totalorder %s33, 1
      %p418 = scmp.ne.s32.totalorder %s413, %s415
      %p419 = scmp.eq.s32.totalorder %s33, 0
      %p420 = por %p418, %p419
      %p421 = scmp.ne.s32.totalorder %s413, %s415
      %p422 = scmp.eq.s32.totalorder %s38, 1
      %p423 = por %p421, %p422
      %p424 = scmp.ne.s32.totalorder %s415, %s416
      %p425 = scmp.eq.s32.totalorder %s38, 0
      %p426 = por %p424, %p425
      %p427 = scmp.ne.s32.totalorder %s415, %s416
      %p428 = scmp.eq.s32.totalorder %s39, 1
      %p429 = por %p427, %p428
      %p431 = scmp.ne.s32.totalorder %s416, %s430
      %p432 = scmp.eq.s32.totalorder %s39, 0
      %p433 = por %p431, %p432
      %s435 = sadd.s32 %s434, 1
      %p438 = scmp.eq.s32.totalorder %s33, 1
      %p439 = scmp.ne.s32.totalorder %s434, %s436
      %p440 = scmp.eq.s32.totalorder %s33, 0
      %p441 = por %p439, %p440
      %p442 = scmp.ne.s32.totalorder %s434, %s436
      %p443 = scmp.eq.s32.totalorder %s38, 1
      %p444 = por %p442, %p443
      %p445 = scmp.ne.s32.totalorder %s436, %s437
      %p446 = scmp.eq.s32.totalorder %s38, 0
      %p447 = por %p445, %p446
      %p448 = scmp.ne.s32.totalorder %s436, %s437
      %p449 = scmp.eq.s32.totalorder %s39, 1
      %p450 = por %p448, %p449
      %p452 = scmp.ne.s32.totalorder %s437, %s451
      %p453 = scmp.eq.s32.totalorder %s39, 0
      %p454 = por %p452, %p453
      %s456 = sadd.s32 %s455, 1
      %p459 = scmp.eq.s32.totalorder %s33, 1
      %p460 = scmp.ne.s32.totalorder %s455, %s457
      %p461 = scmp.eq.s32.totalorder %s33, 0
      %p462 = por %p460, %p461
      %p463 = scmp.ne.s32.totalorder %s455, %s457
      %p464 = scmp.eq.s32.totalorder %s38, 1
      %p465 = por %p463, %p464
      %p466 = scmp.ne.s32.totalorder %s457, %s458
      %p467 = scmp.eq.s32.totalorder %s38, 0
      %p468 = por %p466, %p467
      %p469 = scmp.ne.s32.totalorder %s457, %s458
      %p470 = scmp.eq.s32.totalorder %s39, 1
      %p471 = por %p469, %p470
      %p473 = scmp.ne.s32.totalorder %s458, %s472
      %p474 = scmp.eq.s32.totalorder %s39, 0
      %p475 = por %p473, %p474
      %s477 = sadd.s32 %s476, 1
      %p480 = scmp.eq.s32.totalorder %s33, 1
      %p481 = scmp.ne.s32.totalorder %s476, %s478
      %p482 = scmp.eq.s32.totalorder %s33, 0
      %p483 = por %p481, %p482
      %p484 = scmp.ne.s32.totalorder %s476, %s478
      %p485 = scmp.eq.s32.totalorder %s38, 1
      %p486 = por %p484, %p485
      %p487 = scmp.ne.s32.totalorder %s478, %s479
      %p488 = scmp.eq.s32.totalorder %s38, 0
      %p489 = por %p487, %p488
      %p490 = scmp.ne.s32.totalorder %s478, %s479
      %p491 = scmp.eq.s32.totalorder %s39, 1
      %p492 = por %p490, %p491
      %p494 = scmp.ne.s32.totalorder %s479, %s493
      %p495 = scmp.eq.s32.totalorder %s39, 0
      %p496 = por %p494, %p495
      %s498 = sadd.s32 %s497, 1
      %p501 = scmp.eq.s32.totalorder %s33, 1
      %p502 = scmp.ne.s32.totalorder %s497, %s499
      %p503 = scmp.eq.s32.totalorder %s33, 0
      %p504 = por %p502, %p503
      %p505 = scmp.ne.s32.totalorder %s497, %s499
      %p506 = scmp.eq.s32.totalorder %s38, 1
      %p507 = por %p505, %p506
      %p508 = scmp.ne.s32.totalorder %s499, %s500
      %p509 = scmp.eq.s32.totalorder %s38, 0
      %p510 = por %p508, %p509
      %p511 = scmp.ne.s32.totalorder %s499, %s500
      %p512 = scmp.eq.s32.totalorder %s39, 1
      %p513 = por %p511, %p512
      %p515 = scmp.ne.s32.totalorder %s500, %s514
      %p516 = scmp.eq.s32.totalorder %s39, 0
      %p517 = por %p515, %p516
      %s518 = ssub.s32 %s33, %s40
      %p519 = scmp.eq.s32.totalorder %s518, 0
      %s521 = sadd.s32 %s520, 1
      %s522 = scalar_select %p519, %s520, %s521
      %p525 = pneg %p519
      %p526 = scmp.eq.s32.totalorder %s33, 1
      %p527 = por %p525, %p526
      %p528 = scmp.ne.s32.totalorder %s520, %s523
      %p529 = scmp.eq.s32.totalorder %s33, 0
      %p530 = por %p528, %p529
      %p531 = scmp.ne.s32.totalorder %s520, %s523
      %p532 = scmp.eq.s32.totalorder %s38, 1
      %p533 = por %p531, %p532
      %p534 = scmp.ne.s32.totalorder %s523, %s524
      %p535 = scmp.eq.s32.totalorder %s38, 0
      %p536 = por %p534, %p535
      %p537 = scmp.ne.s32.totalorder %s523, %s524
      %p538 = scmp.eq.s32.totalorder %s39, 1
      %p539 = por %p537, %p538
      %p541 = scmp.ne.s32.totalorder %s524, %s540
      %p542 = scmp.eq.s32.totalorder %s39, 0
      %p543 = por %p541, %p542
      %s544 = ssub.s32 %s33, %s40
      %p545 = scmp.eq.s32.totalorder %s544, 0
      %s547 = sadd.s32 %s546, 1
      %s548 = scalar_select %p545, %s546, %s547
      %p551 = pneg %p545
      %p552 = scmp.eq.s32.totalorder %s33, 1
      %p553 = por %p551, %p552
      %p554 = scmp.ne.s32.totalorder %s546, %s549
      %p555 = scmp.eq.s32.totalorder %s33, 0
      %p556 = por %p554, %p555
      %p557 = scmp.ne.s32.totalorder %s546, %s549
      %p558 = scmp.eq.s32.totalorder %s38, 1
      %p559 = por %p557, %p558
      %p560 = scmp.ne.s32.totalorder %s549, %s550
      %p561 = scmp.eq.s32.totalorder %s38, 0
      %p562 = por %p560, %p561
      %p563 = scmp.ne.s32.totalorder %s549, %s550
      %p564 = scmp.eq.s32.totalorder %s39, 1
      %p565 = por %p563, %p564
      %p567 = scmp.ne.s32.totalorder %s550, %s566
      %p568 = scmp.eq.s32.totalorder %s39, 0
      %p569 = por %p567, %p568
      %p570 = scmp.le.s32.totalorder 1, %s33
      %p571 = scmp.lt.s32.totalorder %s33, 3
      %p572 = pnand %p570, %p571
      %p573 = pneg %p572
      // Predicated region
      $region9: #{_lambda_.1} parent=5 // pred_check
        _
      $region10: #{_lambda_.1} parent=5 // pred_check_branch
        %575 = sbr.rel (%p572) target = $region12
      $region11: #{_lambda_.1} parent=5 // pred_region
        %s576 = ssub.s32 %s33, 1
        // Predicated region
        $region13: #{_lambda_.1} parent=11 // pred_check
          %p577 = pneg %p132
        $region14: #{_lambda_.1} parent=11 // pred_check_branch
          %579 = sbr.rel (%p577) target = $region16
        $region15: #{_lambda_.1} parent=11 // pred_region
          _
        $region16: #{_lambda_.1} parent=11 // pred_fallthru
          _
        // Predicated region
        $region17: #{_lambda_.1} parent=11 // pred_check
          %p580 = pneg %p153
        $region18: #{_lambda_.1} parent=11 // pred_check_branch
          %582 = sbr.rel (%p580) target = $region20
        $region19: #{_lambda_.1} parent=11 // pred_region
          _
        $region20: #{_lambda_.1} parent=11 // pred_fallthru
          _
        // Predicated region
        $region21: #{_lambda_.1} parent=11 // pred_check
          %p583 = pneg %p174
        $region22: #{_lambda_.1} parent=11 // pred_check_branch
          %585 = sbr.rel (%p583) target = $region24
        $region23: #{_lambda_.1} parent=11 // pred_region
          _
        $region24: #{_lambda_.1} parent=11 // pred_fallthru
          _
        // Predicated region
        $region25: #{_lambda_.1} parent=11 // pred_check
          %p586 = pneg %p195
        $region26: #{_lambda_.1} parent=11 // pred_check_branch
          %588 = sbr.rel (%p586) target = $region28
        $region27: #{_lambda_.1} parent=11 // pred_region
          _
        $region28: #{_lambda_.1} parent=11 // pred_fallthru
          _
        // Predicated region
        $region29: #{_lambda_.1} parent=11 // pred_check
          %p589 = pneg %p216
        $region30: #{_lambda_.1} parent=11 // pred_check_branch
          %591 = sbr.rel (%p589) target = $region32
        $region31: #{_lambda_.1} parent=11 // pred_region
          _
        $region32: #{_lambda_.1} parent=11 // pred_fallthru
          _
        // Predicated region
        $region33: #{_lambda_.1} parent=11 // pred_check
          %p592 = pneg %p237
        $region34: #{_lambda_.1} parent=11 // pred_check_branch
          %594 = sbr.rel (%p592) target = $region36
        $region35: #{_lambda_.1} parent=11 // pred_region
          _
        $region36: #{_lambda_.1} parent=11 // pred_fallthru
          _
        // Predicated region
        $region37: #{_lambda_.1} parent=11 // pred_check
          %p595 = pneg %p258
        $region38: #{_lambda_.1} parent=11 // pred_check_branch
          %597 = sbr.rel (%p595) target = $region40
        $region39: #{_lambda_.1} parent=11 // pred_region
          _
        $region40: #{_lambda_.1} parent=11 // pred_fallthru
          _
        // Predicated region
        $region41: #{_lambda_.1} parent=11 // pred_check
          %p598 = pneg %p279
        $region42: #{_lambda_.1} parent=11 // pred_check_branch
          %600 = sbr.rel (%p598) target = $region44
        $region43: #{_lambda_.1} parent=11 // pred_region
          _
        $region44: #{_lambda_.1} parent=11 // pred_fallthru
          _
        // Predicated region
        $region45: #{_lambda_.1} parent=11 // pred_check
          %p601 = pneg %p300
        $region46: #{_lambda_.1} parent=11 // pred_check_branch
          %603 = sbr.rel (%p601) target = $region48
        $region47: #{_lambda_.1} parent=11 // pred_region
          _
        $region48: #{_lambda_.1} parent=11 // pred_fallthru
          _
        // Predicated region
        $region49: #{_lambda_.1} parent=11 // pred_check
          %p604 = pneg %p321
        $region50: #{_lambda_.1} parent=11 // pred_check_branch
          %606 = sbr.rel (%p604) target = $region52
        $region51: #{_lambda_.1} parent=11 // pred_region
          _
        $region52: #{_lambda_.1} parent=11 // pred_fallthru
          _
        // Predicated region
        $region53: #{_lambda_.1} parent=11 // pred_check
          %p607 = pneg %p342
        $region54: #{_lambda_.1} parent=11 // pred_check_branch
          %609 = sbr.rel (%p607) target = $region56
        $region55: #{_lambda_.1} parent=11 // pred_region
          _
        $region56: #{_lambda_.1} parent=11 // pred_fallthru
          _
        // Predicated region
        $region57: #{_lambda_.1} parent=11 // pred_check
          %p610 = pneg %p363
        $region58: #{_lambda_.1} parent=11 // pred_check_branch
          %612 = sbr.rel (%p610) target = $region60
        $region59: #{_lambda_.1} parent=11 // pred_region
          _
        $region60: #{_lambda_.1} parent=11 // pred_fallthru
          _
        // Predicated region
        $region61: #{_lambda_.1} parent=11 // pred_check
          %p613 = pneg %p384
        $region62: #{_lambda_.1} parent=11 // pred_check_branch
          %615 = sbr.rel (%p613) target = $region64
        $region63: #{_lambda_.1} parent=11 // pred_region
          _
        $region64: #{_lambda_.1} parent=11 // pred_fallthru
          _
        // Predicated region
        $region65: #{_lambda_.1} parent=11 // pred_check
          %p616 = pneg %p405
        $region66: #{_lambda_.1} parent=11 // pred_check_branch
          %618 = sbr.rel (%p616) target = $region68
        $region67: #{_lambda_.1} parent=11 // pred_region
          _
        $region68: #{_lambda_.1} parent=11 // pred_fallthru
          _
        // Predicated region
        $region69: #{_lambda_.1} parent=11 // pred_check
          %p619 = pneg %p426
        $region70: #{_lambda_.1} parent=11 // pred_check_branch
          %621 = sbr.rel (%p619) target = $region72
        $region71: #{_lambda_.1} parent=11 // pred_region
          _
        $region72: #{_lambda_.1} parent=11 // pred_fallthru
          _
        // Predicated region
        $region73: #{_lambda_.1} parent=11 // pred_check
          %p622 = pneg %p447
        $region74: #{_lambda_.1} parent=11 // pred_check_branch
          %624 = sbr.rel (%p622) target = $region76
        $region75: #{_lambda_.1} parent=11 // pred_region
          _
        $region76: #{_lambda_.1} parent=11 // pred_fallthru
          _
        // Predicated region
        $region77: #{_lambda_.1} parent=11 // pred_check
          %p625 = pneg %p468
        $region78: #{_lambda_.1} parent=11 // pred_check_branch
          %627 = sbr.rel (%p625) target = $region80
        $region79: #{_lambda_.1} parent=11 // pred_region
          _
        $region80: #{_lambda_.1} parent=11 // pred_fallthru
          _
        // Predicated region
        $region81: #{_lambda_.1} parent=11 // pred_check
          %p628 = pneg %p489
        $region82: #{_lambda_.1} parent=11 // pred_check_branch
          %630 = sbr.rel (%p628) target = $region84
        $region83: #{_lambda_.1} parent=11 // pred_region
          _
        $region84: #{_lambda_.1} parent=11 // pred_fallthru
          _
        // Predicated region
        $region85: #{_lambda_.1} parent=11 // pred_check
          %p631 = pneg %p510
        $region86: #{_lambda_.1} parent=11 // pred_check_branch
          %633 = sbr.rel (%p631) target = $region88
        $region87: #{_lambda_.1} parent=11 // pred_region
          _
        $region88: #{_lambda_.1} parent=11 // pred_fallthru
          _
      $region12: #{_lambda_.1} parent=5 // pred_fallthru
        _
      %p634 = scmp.lt.s32.totalorder %s33, 2
      // Predicated region
      $region89: #{_lambda_.1} parent=5 // pred_check
        %p635 = pneg %p634
      $region90: #{_lambda_.1} parent=5 // pred_check_branch
        %637 = sbr.rel (%p635) target = $region92
      $region91: #{_lambda_.1} parent=5 // pred_region
        // Predicated region
        $region93: #{_lambda_.1} parent=91 // pred_check
          %p638 = pneg %p53
        $region94: #{_lambda_.1} parent=91 // pred_check_branch
          %640 = sbr.rel (%p638) target = $region96
        $region95: #{_lambda_.1} parent=91 // pred_region
          %p641 = scmp.lt.s32.totalorder %s33, 1
          %s642 = scalar_select %p641, %s33, 1
          %s643 = smul.addr %s642, 3
          %s644 = smul.addr %s643, 8
          %s645 = scalar_lea.vmem %s0, %s644
        $region96: #{_lambda_.1} parent=91 // pred_fallthru
          _
        // Predicated region
        $region97: #{_lambda_.1} parent=91 // pred_check
          %p646 = pneg %p79
        $region98: #{_lambda_.1} parent=91 // pred_check_branch
          %648 = sbr.rel (%p646) target = $region100
        $region99: #{_lambda_.1} parent=91 // pred_region
          %p649 = scmp.lt.s32.totalorder %s33, 1
          %s650 = scalar_select %p649, %s33, 1
          %s651 = scalar_lea.vmem %s1, %s650
        $region100: #{_lambda_.1} parent=91 // pred_fallthru
          _
        // Predicated region
        $region101: #{_lambda_.1} parent=91 // pred_check
          %p652 = pneg %p105
        $region102: #{_lambda_.1} parent=91 // pred_check_branch
          %654 = sbr.rel (%p652) target = $region104
        $region103: #{_lambda_.1} parent=91 // pred_region
          %p655 = scmp.lt.s32.totalorder %s33, 1
          %s656 = scalar_select %p655, %s33, 1
          %s657 = smul.addr %s656, 3
          %s658 = smul.addr %s657, 8
          %s659 = scalar_lea.vmem %s2, %s658
        $region104: #{_lambda_.1} parent=91 // pred_fallthru
          _
      $region92: #{_lambda_.1} parent=5 // pred_fallthru
        _
      %p660 = scmp.le.s32.totalorder 1, %s33
      %p661 = scmp.lt.s32.totalorder %s33, 3
      %p662 = pnand %p660, %p661
      %p663 = pneg %p662
      // Predicated region
      $region105: #{_lambda_.1} parent=5 // pred_check
        _
      $region106: #{_lambda_.1} parent=5 // pred_check_branch
        %665 = sbr.rel (%p662) target = $region108
      $region107: #{_lambda_.1} parent=5 // pred_region
        %s666 = ssub.s32 %s33, 1
        %p667 = scmp.lt.s32.totalorder %s38, 1
        %s668 = scalar_select %p667, %s38, 1
        %s669 = smul.addr %s668, 3
        %s670 = smul.addr %s669, 8
        %s671 = scalar_lea.vmem %s0, %s670
        %p672 = pneg %p59
        %p673 = pneg %p56
        %p674 = scmp.lt.s32.totalorder %s38, 1
        %s675 = scalar_select %p674, %s38, 1
        %s676 = scalar_lea.vmem %s1, %s675
        %p677 = pneg %p85
        %p678 = pneg %p82
        %p679 = scmp.lt.s32.totalorder %s38, 1
        %s680 = scalar_select %p679, %s38, 1
        %s681 = smul.addr %s680, 3
        %s682 = smul.addr %s681, 8
        %s683 = scalar_lea.vmem %s2, %s682
        %p684 = pneg %p111
        %p685 = pneg %p108
        %p686 = pneg %p132
        %p687 = pneg %p129
        %p688 = pneg %p153
        %p689 = pneg %p150
        %p690 = pneg %p174
        %p691 = pneg %p171
        %p692 = pneg %p195
        %p693 = pneg %p192
        %p694 = pneg %p216
        %p695 = pneg %p213
        %p696 = pneg %p237
        %p697 = pneg %p234
        %p698 = pneg %p258
        %p699 = pneg %p255
        %p700 = pneg %p279
        %p701 = pneg %p276
        %p702 = pneg %p300
        %p703 = pneg %p297
        %p704 = pneg %p321
        %p705 = pneg %p318
        %p706 = pneg %p342
        %p707 = pneg %p339
        %p708 = pneg %p363
        %p709 = pneg %p360
        %p710 = pneg %p384
        %p711 = pneg %p381
        %p712 = pneg %p405
        %p713 = pneg %p402
        %p714 = pneg %p426
        %p715 = pneg %p423
        %p716 = pneg %p447
        %p717 = pneg %p444
        %p718 = pneg %p468
        %p719 = pneg %p465
        %p720 = pneg %p489
        %p721 = pneg %p486
        %p722 = pneg %p510
        %p723 = pneg %p507
        %p724 = pneg %p536
        %p725 = pneg %p533
        %s726 = sand.u32 %s523, 1
        %s727 = scalar_lea.sflag [#allocation3], %s726
        %s728 = sand.u32 %s523, 1
        %s729 = scalar_lea.vmem [#allocation2], %s728
        %p730 = pneg %p562
        %p731 = pneg %p559
        %p732 = scmp.lt.s32.totalorder %s38, 1
        %s733 = scalar_select %p732, %s38, 1
        %s734 = scalar_lea.vmem %s23, %s733
        %p735 = scmp.lt.s32.totalorder %s38, 1
        %s736 = scalar_select %p735, %s38, 1
        %s737 = smul.addr %s736, 3
        %s738 = smul.addr %s737, 8
        %s739 = scalar_lea.vmem %s0, %s738
        %p740 = scmp.lt.s32.totalorder %s38, 1
        %s741 = scalar_select %p740, %s38, 1
        %s742 = scalar_lea.vmem %s1, %s741
        %p743 = scmp.lt.s32.totalorder %s38, 1
        %s744 = scalar_select %p743, %s38, 1
        %s745 = smul.addr %s744, 3
        %s746 = smul.addr %s745, 8
        %s747 = scalar_lea.vmem %s2, %s746
        %p748 = scmp.lt.s32.totalorder %s38, 1
        %s749 = scalar_select %p748, %s38, 1
        %s750 = scalar_lea.vmem %s23, %s749
        %v752 = vld [vmem:[%s739] sm:$0xff]
        %v753 = vld [vmem:[%s739 + $0x8] sm:$0xff]
        %v754 = vld [vmem:[%s739 + $0x10] sm:$0xff]
        %v755 = vld [vmem:[%s742] sm:$0x1]
        %v756 = vld [vmem:[%s3] sm:$0xf]
        %v757 = vld [vmem:[%s3 + $0x4] sm:$0x1]
        %v758 = vpack.c.bf16 %v753, %v752
        %v759 = vpack.c.bf16 %v754, %v754
        %v760 = vld [vmem:[%s747] sm:$0xff]
        %v761 = vld [vmem:[%s747 + $0x8] sm:$0xff]
        %v762 = vld [vmem:[%s747 + $0x10] sm:$0xff]
        %v765 = vunpack.c.l.b16 %v756
        %v766 = vunpack.c.l.b16 %v757
        %v767 = vpack.c.b16 %v766, %v765
        %vm768 = vcmask 80896
        %v770 = vsel %vm768, %v758, 0
        %v773 = vsel %vm768, %v759, 0
        %vm775 = vcmask 1044480
        %v777 = vsel %vm775, %v767, 0
        %779 = vmatprep.subr.bf16.mxu0 0
        %780 = vmatpush1.bf16.msra.mxu0 %v777
        %781 = vmatprep.subr.bf16.mxu0 0
        %782 = vmatpush1.bf16.msra.mxu0 0
        %783 = vmatprep.subr.bf16.mxu0 0
        %784 = vmatpush1.bf16.msra.mxu0 0
        %785 = vmatprep.subr.bf16.mxu0 0
        %786 = vmatpush1.bf16.msra.mxu0 0
        %787 = vmatprep.subr.bf16.mxu0 0
        %788 = vmatpush1.bf16.msra.mxu0 0
        %789 = vmatprep.subr.bf16.mxu0 0
        %790 = vmatpush1.bf16.msra.mxu0 0
        %791 = vmatprep.subr.bf16.mxu0 0
        %792 = vmatpush1.bf16.msra.mxu0 0
        %793 = vmatprep.subr.bf16.mxu0 0
        %794 = vmatpush1.bf16.msra.mxu0 0
        %795 = vmatprep.subr.bf16.mxu0 0
        %796 = vmatpush1.bf16.msra.mxu0 0
        %797 = vmatprep.subr.bf16.mxu0 0
        %798 = vmatpush1.bf16.msra.mxu0 0
        %799 = vmatprep.subr.bf16.mxu0 0
        %800 = vmatpush1.bf16.msra.mxu0 0
        %801 = vmatprep.subr.bf16.mxu0 0
        %802 = vmatpush1.bf16.msra.mxu0 0
        %803 = vmatprep.subr.bf16.mxu0 0
        %804 = vmatpush1.bf16.msra.mxu0 0
        %805 = vmatprep.subr.bf16.mxu0 0
        %806 = vmatpush1.bf16.msra.mxu0 0
        %807 = vmatprep.subr.bf16.mxu0 0
        %808 = vmatpush1.bf16.msra.mxu0 0
        %809 = vmatprep.subr.bf16.mxu0 0
        %810 = vmatpush1.bf16.msra.mxu0 0
        %811 = vmatprep.mubr.bf16.mxu0 0
        %812 = vmatmul.mubr.bf16.gmra.mrb[0].mxu0 %v770
        %v813 = vpop.f32.mrb[0].mxu0
        %v814 = vadd.f32 %v760, %v813
        %v815 = vpop.f32.mrb[0].mxu0
        %v816 = vpop.f32.mrb[0].mxu0
        %v817 = vadd.f32 %v761, %v816
        %v818 = vpop.f32.mrb[0].mxu0
        %819 = vmatprep.mubr.bf16.mxu0 0
        %820 = vmatmul.mubr.bf16.gmra.mrb[0].mxu0 %v773
        %v821 = vpop.f32.mrb[0].mxu0
        %v822 = vadd.f32 %v762, %v821
        %v823 = vpop.f32.mrb[0].mxu0
        %v824 = vpop.f32.mrb[0].mxu0
        %v825 = vpop.f32.mrb[0].mxu0
        %826 = vdwg.mxu0
        %v827 = vlaneseq
        %v828 = vshrl.u32 %v827, 7
        %v829 = vadd.s32 %v828, 8
        %v830 = vadd.s32 %v828, 16
        %v831 = vlaneseq
        %v832 = vand.u32 %v831, 127
        %vm833 = vcmp.le.s32.totalorder %v832, %v828
        %vm834 = vcmp.le.s32.totalorder %v832, %v829
        %vm835 = vcmp.le.s32.totalorder %v832, %v830
        %vm836 = vcmp.gt.f32.partialorder %v755, 0.0
        %v837 = vsel %vm836, 1, 0
        %v838 = vlaneseq
        %v839 = vshrl.u32 %v838, 7
        %v840 = vsub.s32 0, %v839
        %v841 = vrot.slane %v837, %v840
        %vm842 = vcmp.eq.s32.totalorder %v841, 1
        %vm843 = vmand %vm833, %vm842
        %vm844 = vmand %vm834, %vm842
        %vm845 = vmand %vm835, %vm842
        %v846 = vsel %vm843, 0.0, -1e+09
        %v847 = vsel %vm844, 0.0, -1e+09
        %v848 = vsel %vm845, 0.0, -1e+09
        %v849 = vld [vmem:[%s4] sm:$0x1]
        %v850 = vld [vmem:[%s5] sm:$0x1]
        %vm851 = vcmask 261120
        %v852 = vsel %vm851, %v814, 0.0
        %853 = vadd.xlane.f32.xlu0 %v852
        %v854 = vpop.xlane.xlu0 %853
        %v855 = vsel %vm851, %v817, 0.0
        %856 = vadd.xlane.f32.xlu0 %v855
        %v857 = vpop.xlane.xlu0 %856
        %v858 = vsel %vm851, %v822, 0.0
        %859 = vadd.xlane.f32.xlu0 %v858
        %v860 = vpop.xlane.xlu0 %859
        %v861 = vrcp.pop 32.0
        %v862 = vmul.f32 %v854, %v861
        %v863 = vmul.f32 %v857, %v861
        %v864 = vmul.f32 %v860, %v861
        %v865 = vsub.f32 %v814, %v862
        %v866 = vsub.f32 %v817, %v863
        %v867 = vsub.f32 %v822, %v864
        %v868 = vmul.f32 %v865, %v865
        %v869 = vmul.f32 %v866, %v866
        %v870 = vmul.f32 %v867, %v867
        %v871 = vsel %vm851, %v868, 0.0
        %872 = vadd.xlane.f32.xlu0 %v871
        %v873 = vpop.xlane.xlu0 %872
        %v874 = vsel %vm851, %v869, 0.0
        %875 = vadd.xlane.f32.xlu0 %v874
        %v876 = vpop.xlane.xlu0 %875
        %v877 = vsel %vm851, %v870, 0.0
        %878 = vadd.xlane.f32.xlu0 %v877
        %v879 = vpop.xlane.xlu0 %878
        %v880 = vmul.f32 %v873, %v861
        %v881 = vmul.f32 %v876, %v861
        %v882 = vmul.f32 %v879, %v861
        %v883 = vadd.f32 %v880, 1e-05
        %v884 = vadd.f32 %v881, 1e-05
        %v885 = vadd.f32 %v882, 1e-05
        %v886 = vrsqrt.pop %v883
        %v887 = vrsqrt.pop %v884
        %v888 = vrsqrt.pop %v885
        %v889 = vmul.f32 %v865, %v886
        %v890 = vmul.f32 %v866, %v887
        %v891 = vmul.f32 %v867, %v888
        %v893 = vlaneseq
        %v894 = vshrl.u32 %v893, 7
        %v895 = vsub.s32 0, %v894
        %v896 = vrot.slane %v849, %v895
        %v898 = vmul.f32 %v889, %v896
        %v899 = vmul.f32 %v890, %v896
        %v900 = vmul.f32 %v891, %v896
        %v902 = vlaneseq
        %v903 = vshrl.u32 %v902, 7
        %v904 = vsub.s32 0, %v903
        %v905 = vrot.slane %v850, %v904
        %v907 = vadd.f32 %v898, %v905
        %v908 = vadd.f32 %v899, %v905
        %v909 = vadd.f32 %v900, %v905
        %v910 = vld [vmem:[%s6] sm:$0xf]
        %v911 = vld [vmem:[%s6 + $0x4] sm:$0xf]
        %v912 = vld [vmem:[%s6 + $0x8] sm:$0xf]
        %v913 = vld [vmem:[%s6 + $0xc] sm:$0xf]
        %v914 = vpack.c.bf16 %v908, %v907
        %v915 = vpack.c.bf16 %v909, %v909
        %v916 = vld [vmem:[%s7] sm:$0x1]
        %v918 = vlaneseq
        %v919 = vshrl.u32 %v918, 7
        %v920 = vsub.s32 0, %v919
        %v921 = vrot.slane %v916, %v920
        %v927 = vunpack.c.l.b16 %v910
        %v928 = vunpack.c.l.b16 %v911
        %v929 = vunpack.c.l.b16 %v912
        %v930 = vunpack.c.l.b16 %v913
        %v931 = vpack.c.b16 %v928, %v927
        %v932 = vpack.c.b16 %v930, %v929
        %v936 = vsel %vm851, %v914, 0
        %v939 = vsel %vm851, %v915, 0
        %941 = vmatprep.subr.bf16.mxu0 0
        %942 = vmatpush1.bf16.msra.mxu0 %v931
        %943 = vmatprep.subr.bf16.mxu0 0
        %944 = vmatpush1.bf16.msra.mxu0 %v932
        %945 = vmatprep.subr.bf16.mxu0 0
        %946 = vmatpush1.bf16.msra.mxu0 0
        %947 = vmatprep.subr.bf16.mxu0 0
        %948 = vmatpush1.bf16.msra.mxu0 0
        %949 = vmatprep.subr.bf16.mxu0 0
        %950 = vmatpush1.bf16.msra.mxu0 0
        %951 = vmatprep.subr.bf16.mxu0 0
        %952 = vmatpush1.bf16.msra.mxu0 0
        %953 = vmatprep.subr.bf16.mxu0 0
        %954 = vmatpush1.bf16.msra.mxu0 0
        %955 = vmatprep.subr.bf16.mxu0 0
        %956 = vmatpush1.bf16.msra.mxu0 0
        %957 = vmatprep.subr.bf16.mxu0 0
        %958 = vmatpush1.bf16.msra.mxu0 0
        %959 = vmatprep.subr.bf16.mxu0 0
        %960 = vmatpush1.bf16.msra.mxu0 0
        %961 = vmatprep.subr.bf16.mxu0 0
        %962 = vmatpush1.bf16.msra.mxu0 0
        %963 = vmatprep.subr.bf16.mxu0 0
        %964 = vmatpush1.bf16.msra.mxu0 0
        %965 = vmatprep.subr.bf16.mxu0 0
        %966 = vmatpush1.bf16.msra.mxu0 0
        %967 = vmatprep.subr.bf16.mxu0 0
        %968 = vmatpush1.bf16.msra.mxu0 0
        %969 = vmatprep.subr.bf16.mxu0 0
        %970 = vmatpush1.bf16.msra.mxu0 0
        %971 = vmatprep.subr.bf16.mxu0 0
        %972 = vmatpush1.bf16.msra.mxu0 0
        %973 = vmatprep.mubr.bf16.mxu0 0
        %974 = vmatmul.mubr.bf16.gmra.mrb[0].mxu0 %v936
        %v975 = vpop.f32.mrb[0].mxu0
        %v976 = vadd.f32 %v921, %v975
        %v977 = vpop.f32.mrb[0].mxu0
        %v978 = vpop.f32.mrb[0].mxu0
        %v979 = vadd.f32 %v921, %v978
        %v980 = vpop.f32.mrb[0].mxu0
        %981 = vmatprep.mubr.bf16.mxu0 0
        %982 = vmatmul.mubr.bf16.gmra.mrb[0].mxu0 %v939
        %v983 = vpop.f32.mrb[0].mxu0
        %v984 = vadd.f32 %v921, %v983
        %v985 = vpop.f32.mrb[0].mxu0
        %v986 = vpop.f32.mrb[0].mxu0
        %v987 = vpop.f32.mrb[0].mxu0
        %988 = vdwg.mxu0
        %v989 = vld [vmem:[%s8] sm:$0xf]
        %v990 = vld [vmem:[%s8 + $0x4] sm:$0xf]
        %v991 = vld [vmem:[%s8 + $0x8] sm:$0xf]
        %v992 = vld [vmem:[%s8 + $0xc] sm:$0xf]
        %v993 = vld [vmem:[%s9] sm:$0x1]
        %v994 = vpack.c.bf16 %v979, %v976
        %v995 = vpack.c.bf16 %v984, %v984
        %998 = vrot.lane.b32.xlu0 %v994, 96
        %v999 = vpop.permute.xlu0 %998
        %1000 = vrot.lane.b32.xlu0 %v995, 96
        %v1001 = vpop.permute.xlu0 %1000
        %vm1002 = vcmask 64512
        %v1004 = vsel %vm1002, %v994, 0
        %v1007 = vsel %vm1002, %v995, 0
        %v1010 = vsel %vm1002, %v999, 0
        %v1013 = vsel %vm1002, %v1001, 0
        %1015 = vmatprep.subr.bf16.mxu0 0
        %1016 = vmatpush1.bf16.xpose.msra.mxu0 %v1010
        %1017 = vmatprep.subr.bf16.mxu0 0
        %1018 = vmatpush1.bf16.xpose.msra.mxu0 %v1013
        %1019 = vmatprep.subr.bf16.mxu0 0
        %1020 = vmatpush1.bf16.xpose.msra.mxu0 0
        %1021 = vmatprep.subr.bf16.mxu0 0
        %1022 = vmatpush1.bf16.xpose.msra.mxu0 0
        %1023 = vmatprep.subr.bf16.mxu0 0
        %1024 = vmatpush1.bf16.xpose.msra.mxu0 0
        %1025 = vmatprep.subr.bf16.mxu0 0
        %1026 = vmatpush1.bf16.xpose.msra.mxu0 0
        %1027 = vmatprep.subr.bf16.mxu0 0
        %1028 = vmatpush1.bf16.xpose.msra.mxu0 0
        %1029 = vmatprep.subr.bf16.mxu0 0
        %1030 = vmatpush1.bf16.xpose.msra.mxu0 0
        %1031 = vmatprep.subr.bf16.mxu0 0
        %1032 = vmatpush1.bf16.xpose.msra.mxu0 0
        %1033 = vmatprep.subr.bf16.mxu0 0
        %1034 = vmatpush1.bf16.xpose.msra.mxu0 0
        %1035 = vmatprep.subr.bf16.mxu0 0
        %1036 = vmatpush1.bf16.xpose.msra.mxu0 0
        %1037 = vmatprep.subr.bf16.mxu0 0
        %1038 = vmatpush1.bf16.xpose.msra.mxu0 0
        %1039 = vmatprep.subr.bf16.mxu0 0
        %1040 = vmatpush1.bf16.xpose.msra.mxu0 0
        %1041 = vmatprep.subr.bf16.mxu0 0
        %1042 = vmatpush1.bf16.xpose.msra.mxu0 0
        %1043 = vmatprep.subr.bf16.mxu0 0
        %1044 = vmatpush1.bf16.xpose.msra.mxu0 0
        %1045 = vmatprep.subr.bf16.mxu0 0
        %1046 = vmatpush1.bf16.xpose.msra.mxu0 0
        %1047 = vmatprep.mubr.bf16.mxu0 0
        %1048 = vmatmul.mubr.bf16.gmra.mrb[0].mxu0 %v1004
        %v1049 = vpop.f32.mrb[0].mxu0
        %v1050 = vadd.f32 0.0, %v1049
        %v1051 = vpop.f32.mrb[0].mxu0
        %v1052 = vpop.f32.mrb[0].mxu0
        %v1053 = vadd.f32 0.0, %v1052
        %v1054 = vpop.f32.mrb[0].mxu0
        %1055 = vmatprep.mubr.bf16.mxu0 0
        %1056 = vmatmul.mubr.bf16.gmra.mrb[0].mxu0 %v1007
        %v1057 = vpop.f32.mrb[0].mxu0
        %v1058 = vadd.f32 0.0, %v1057
        %v1059 = vpop.f32.mrb[0].mxu0
        %v1060 = vpop.f32.mrb[0].mxu0
        %v1061 = vpop.f32.mrb[0].mxu0
        %1062 = vdwg.mxu0
        %v1063 = vmul.f32 %v1050, 0.35355338
        %v1064 = vmul.f32 %v1053, 0.35355338
        %v1065 = vmul.f32 %v1058, 0.35355338
        %v1066 = vadd.f32 %v1063, %v846
        %v1067 = vadd.f32 %v1064, %v847
        %v1068 = vadd.f32 %v1065, %v848
        %vm1069 = vcmask 195584
        %v1070 = vsel %vm1069, %v1066, -inf
        %1071 = vmax.xlane.f32.xlu0 %v1070
        %v1072 = vpop.xlane.xlu0 %1071
        %v1073 = vsel %vm1069, %v1067, -inf
        %1074 = vmax.xlane.f32.xlu0 %v1073
        %v1075 = vpop.xlane.xlu0 %1074
        %v1076 = vsel %vm1069, %v1068, -inf
        %1077 = vmax.xlane.f32.xlu0 %v1076
        %v1078 = vpop.xlane.xlu0 %1077
        %v1079 = vsub.f32 %v1066, %v1072
        %v1080 = vsub.f32 %v1067, %v1075
        %v1081 = vsub.f32 %v1068, %v1078
        %v1082 = vmul.f32 %v1079, 1.442695
        %v1083 = vpow.pop %v1082
        %v1084 = vmul.f32 %v1080, 1.442695
        %v1085 = vpow.pop %v1084
        %v1086 = vmul.f32 %v1081, 1.442695
        %v1087 = vpow.pop %v1086
        %v1088 = vsel %vm1069, %v1083, 0.0
        %1089 = vadd.xlane.f32.xlu0 %v1088
        %v1090 = vpop.xlane.xlu0 %1089
        %v1091 = vsel %vm1069, %v1085, 0.0
        %1092 = vadd.xlane.f32.xlu0 %v1091
        %v1093 = vpop.xlane.xlu0 %1092
        %v1094 = vsel %vm1069, %v1087, 0.0
        %1095 = vadd.xlane.f32.xlu0 %v1094
        %v1096 = vpop.xlane.xlu0 %1095
        %v1097 = vrcp.pop %v1090
        %v1098 = vrcp.pop %v1093
        %v1099 = vrcp.pop %v1096
        %v1100 = vmul.f32 %v1083, %v1097
        %v1101 = vmul.f32 %v1085, %v1098
        %v1102 = vmul.f32 %v1087, %v1099
        %v1103 = vpack.c.bf16 %v1101, %v1100
        %v1104 = vpack.c.bf16 %v1102, %v1102
        %1105 = vrot.lane.b32.xlu0 %v994, 64
        %v1106 = vpop.permute.xlu0 %1105
        %1107 = vrot.lane.b32.xlu0 %v995, 64
        %v1108 = vpop.permute.xlu0 %1107
        %v1111 = vsel %vm1069, %v1103, 0
        %v1114 = vsel %vm1069, %v1104, 0
        %vm1116 = vcmask 1043456
        %v1118 = vsel %vm1116, %v1108, 0
        %1120 = vmatprep.subr.bf16.mxu0 0
        %1121 = vmatpush1.bf16.msra.mxu0 %v1106
        %1122 = vmatprep.subr.bf16.mxu0 0
        %1123 = vmatpush1.bf16.msra.mxu0 %v1118
        %1124 = vmatprep.subr.bf16.mxu0 0
        %1125 = vmatpush1.bf16.msra.mxu0 0
        %1126 = vmatprep.subr.bf16.mxu0 0
        %1127 = vmatpush1.bf16.msra.mxu0 0
        %1128 = vmatprep.subr.bf16.mxu0 0
        %1129 = vmatpush1.bf16.msra.mxu0 0
        %1130 = vmatprep.subr.bf16.mxu0 0
        %1131 = vmatpush1.bf16.msra.mxu0 0
        %1132 = vmatprep.subr.bf16.mxu0 0
        %1133 = vmatpush1.bf16.msra.mxu0 0
        %1134 = vmatprep.subr.bf16.mxu0 0
        %1135 = vmatpush1.bf16.msra.mxu0 0
        %1136 = vmatprep.subr.bf16.mxu0 0
        %1137 = vmatpush1.bf16.msra.mxu0 0
        %1138 = vmatprep.subr.bf16.mxu0 0
        %1139 = vmatpush1.bf16.msra.mxu0 0
        %1140 = vmatprep.subr.bf16.mxu0 0
        %1141 = vmatpush1.bf16.msra.mxu0 0
        %1142 = vmatprep.subr.bf16.mxu0 0
        %1143 = vmatpush1.bf16.msra.mxu0 0
        %1144 = vmatprep.subr.bf16.mxu0 0
        %1145 = vmatpush1.bf16.msra.mxu0 0
        %1146 = vmatprep.subr.bf16.mxu0 0
        %1147 = vmatpush1.bf16.msra.mxu0 0
        %1148 = vmatprep.subr.bf16.mxu0 0
        %1149 = vmatpush1.bf16.msra.mxu0 0
        %1150 = vmatprep.subr.bf16.mxu0 0
        %1151 = vmatpush1.bf16.msra.mxu0 0
        %1152 = vmatprep.mubr.bf16.mxu0 0
        %1153 = vmatmul.mubr.bf16.gmra.mrb[0].mxu0 %v1111
        %v1154 = vpop.f32.mrb[0].mxu0
        %v1155 = vadd.f32 0.0, %v1154
        %v1156 = vpop.f32.mrb[0].mxu0
        %v1157 = vpop.f32.mrb[0].mxu0
        %v1158 = vadd.f32 0.0, %v1157
        %v1159 = vpop.f32.mrb[0].mxu0
        %1160 = vmatprep.mubr.bf16.mxu0 0
        %1161 = vmatmul.mubr.bf16.gmra.mrb[0].mxu0 %v1114
        %v1162 = vpop.f32.mrb[0].mxu0
        %v1163 = vadd.f32 0.0, %v1162
        %v1164 = vpop.f32.mrb[0].mxu0
        %v1165 = vpop.f32.mrb[0].mxu0
        %v1166 = vpop.f32.mrb[0].mxu0
        %1167 = vdwg.mxu0
        %v1168 = vpack.c.bf16 %v1158, %v1155
        %v1169 = vpack.c.bf16 %v1163, %v1163
        %v1171 = vsel %vm1002, %v1168, 0
        %v1174 = vsel %vm1002, %v1169, 0
        %v1177 = vsel %vm1116, %v989, 0
        %1179 = vmatprep.subr.bf16.mxu0 0
        %1180 = vmatpush1.bf16.msra.mxu0 %v1177
        %1181 = vmatprep.subr.bf16.mxu0 0
        %1182 = vmatpush1.bf16.msra.mxu0 0
        %1183 = vmatprep.subr.bf16.mxu0 0
        %1184 = vmatpush1.bf16.msra.mxu0 0
        %1185 = vmatprep.subr.bf16.mxu0 0
        %1186 = vmatpush1.bf16.msra.mxu0 0
        %1187 = vmatprep.subr.bf16.mxu0 0
        %1188 = vmatpush1.bf16.msra.mxu0 0
        %1189 = vmatprep.subr.bf16.mxu0 0
        %1190 = vmatpush1.bf16.msra.mxu0 0
        %1191 = vmatprep.subr.bf16.mxu0 0
        %1192 = vmatpush1.bf16.msra.mxu0 0
        %1193 = vmatprep.subr.bf16.mxu0 0
        %1194 = vmatpush1.bf16.msra.mxu0 0
        %1195 = vmatprep.subr.bf16.mxu0 0
        %1196 = vmatpush1.bf16.msra.mxu0 0
        %1197 = vmatprep.subr.bf16.mxu0 0
        %1198 = vmatpush1.bf16.msra.mxu0 0
        %1199 = vmatprep.subr.bf16.mxu0 0
        %1200 = vmatpush1.bf16.msra.mxu0 0
        %1201 = vmatprep.subr.bf16.mxu0 0
        %1202 = vmatpush1.bf16.msra.mxu0 0
        %1203 = vmatprep.subr.bf16.mxu0 0
        %1204 = vmatpush1.bf16.msra.mxu0 0
        %1205 = vmatprep.subr.bf16.mxu0 0
        %1206 = vmatpush1.bf16.msra.mxu0 0
        %1207 = vmatprep.subr.bf16.mxu0 0
        %1208 = vmatpush1.bf16.msra.mxu0 0
        %1209 = vmatprep.subr.bf16.mxu0 0
        %1210 = vmatpush1.bf16.msra.mxu0 0
        %1211 = vmatprep.mubr.bf16.mxu0 0
        %1212 = vmatmul.mubr.bf16.gmra.mrb[0].mxu0 %v1171
        %v1213 = vpop.f32.mrb[0].mxu0
        %v1214 = vadd.f32 0.0, %v1213
        %v1215 = vpop.f32.mrb[0].mxu0
        %v1216 = vpop.f32.mrb[0].mxu0
        %v1217 = vadd.f32 0.0, %v1216
        %v1218 = vpop.f32.mrb[0].mxu0
        %1219 = vmatprep.mubr.bf16.mxu0 0
        %1220 = vmatmul.mubr.bf16.gmra.mrb[0].mxu0 %v1174
        %v1221 = vpop.f32.mrb[0].mxu0
        %v1222 = vadd.f32 0.0, %v1221
        %v1223 = vpop.f32.mrb[0].mxu0
        %v1224 = vpop.f32.mrb[0].mxu0
        %v1225 = vpop.f32.mrb[0].mxu0
        %1226 = vdwg.mxu0
        %v1228 = vlaneseq
        %v1229 = vshrl.u32 %v1228, 7
        %v1230 = vsub.s32 0, %v1229
        %v1231 = vrot.slane %v993, %v1230
        %v1233 = vadd.f32 %v1231, %v1214
        %v1234 = vadd.f32 %v1231, %v1217
        %v1235 = vadd.f32 %v1231, %v1222
        %1236 = vrot.lane.b32.xlu0 %v994, 120
        %v1237 = vpop.permute.xlu0 %1236
        %1238 = vrot.lane.b32.xlu0 %v995, 120
        %v1239 = vpop.permute.xlu0 %1238
        %1240 = vrot.lane.b32.xlu0 %v994, 88
        %v1241 = vpop.permute.xlu0 %1240
        %1242 = vrot.lane.b32.xlu0 %v995, 88
        %v1243 = vpop.permute.xlu0 %1242
        %v1245 = vsel %vm1002, %v1237, 0
        %v1248 = vsel %vm1002, %v1239, 0
        %v1251 = vsel %vm1002, %v1241, 0
        %v1254 = vsel %vm1002, %v1243, 0
        %1256 = vmatprep.subr.bf16.mxu0 0
        %1257 = vmatpush1.bf16.xpose.msra.mxu0 %v1251
        %1258 = vmatprep.subr.bf16.mxu0 0
        %1259 = vmatpush1.bf16.xpose.msra.mxu0 %v1254
        %1260 = vmatprep.subr.bf16.mxu0 0
        %1261 = vmatpush1.bf16.xpose.msra.mxu0 0
        %1262 = vmatprep.subr.bf16.mxu0 0
        %1263 = vmatpush1.bf16.xpose.msra.mxu0 0
        %1264 = vmatprep.subr.bf16.mxu0 0
        %1265 = vmatpush1.bf16.xpose.msra.mxu0 0
        %1266 = vmatprep.subr.bf16.mxu0 0
        %1267 = vmatpush1.bf16.xpose.msra.mxu0 0
        %1268 = vmatprep.subr.bf16.mxu0 0
        %1269 = vmatpush1.bf16.xpose.msra.mxu0 0
        %1270 = vmatprep.subr.bf16.mxu0 0
        %1271 = vmatpush1.bf16.xpose.msra.mxu0 0
        %1272 = vmatprep.subr.bf16.mxu0 0
        %1273 = vmatpush1.bf16.xpose.msra.mxu0 0
        %1274 = vmatprep.subr.bf16.mxu0 0
        %1275 = vmatpush1.bf16.xpose.msra.mxu0 0
        %1276 = vmatprep.subr.bf16.mxu0 0
        %1277 = vmatpush1.bf16.xpose.msra.mxu0 0
        %1278 = vmatprep.subr.bf16.mxu0 0
        %1279 = vmatpush1.bf16.xpose.msra.mxu0 0
        %1280 = vmatprep.subr.bf16.mxu0 0
        %1281 = vmatpush1.bf16.xpose.msra.mxu0 0
        %1282 = vmatprep.subr.bf16.mxu0 0
        %1283 = vmatpush1.bf16.xpose.msra.mxu0 0
        %1284 = vmatprep.subr.bf16.mxu0 0
        %1285 = vmatpush1.bf16.xpose.msra.mxu0 0
        %1286 = vmatprep.subr.bf16.mxu0 0
        %1287 = vmatpush1.bf16.xpose.msra.mxu0 0
        %1288 = vmatprep.mubr.bf16.mxu0 0
        %1289 = vmatmul.mubr.bf16.gmra.mrb[0].mxu0 %v1245
        %v1290 = vpop.f32.mrb[0].mxu0
        %v1291 = vadd.f32 0.0, %v1290
        %v1292 = vpop.f32.mrb[0].mxu0
        %v1293 = vpop.f32.mrb[0].mxu0
        %v1294 = vadd.f32 0.0, %v1293
        %v1295 = vpop.f32.mrb[0].mxu0
        %1296 = vmatprep.mubr.bf16.mxu0 0
        %1297 = vmatmul.mubr.bf16.gmra.mrb[0].mxu0 %v1248
        %v1298 = vpop.f32.mrb[0].mxu0
        %v1299 = vadd.f32 0.0, %v1298
        %v1300 = vpop.f32.mrb[0].mxu0
        %v1301 = vpop.f32.mrb[0].mxu0
        %v1302 = vpop.f32.mrb[0].mxu0
        %1303 = vdwg.mxu0
        %v1304 = vmul.f32 %v1291, 0.35355338
        %v1305 = vmul.f32 %v1294, 0.35355338
        %v1306 = vmul.f32 %v1299, 0.35355338
        %v1307 = vadd.f32 %v1304, %v846
        %v1308 = vadd.f32 %v1305, %v847
        %v1309 = vadd.f32 %v1306, %v848
        %v1310 = vsel %vm1069, %v1307, -inf
        %1311 = vmax.xlane.f32.xlu0 %v1310
        %v1312 = vpop.xlane.xlu0 %1311
        %v1313 = vsel %vm1069, %v1308, -inf
        %1314 = vmax.xlane.f32.xlu0 %v1313
        %v1315 = vpop.xlane.xlu0 %1314
        %v1316 = vsel %vm1069, %v1309, -inf
        %1317 = vmax.xlane.f32.xlu0 %v1316
        %v1318 = vpop.xlane.xlu0 %1317
        %v1319 = vsub.f32 %v1307, %v1312
        %v1320 = vsub.f32 %v1308, %v1315
        %v1321 = vsub.f32 %v1309, %v1318
        %v1322 = vmul.f32 %v1319, 1.442695
        %v1323 = vpow.pop %v1322
        %v1324 = vmul.f32 %v1320, 1.442695
        %v1325 = vpow.pop %v1324
        %v1326 = vmul.f32 %v1321, 1.442695
        %v1327 = vpow.pop %v1326
        %v1328 = vsel %vm1069, %v1323, 0.0
        %1329 = vadd.xlane.f32.xlu0 %v1328
        %v1330 = vpop.xlane.xlu0 %1329
        %v1331 = vsel %vm1069, %v1325, 0.0
        %1332 = vadd.xlane.f32.xlu0 %v1331
        %v1333 = vpop.xlane.xlu0 %1332
        %v1334 = vsel %vm1069, %v1327, 0.0
        %1335 = vadd.xlane.f32.xlu0 %v1334
        %v1336 = vpop.xlane.xlu0 %1335
        %v1337 = vrcp.pop %v1330
        %v1338 = vrcp.pop %v1333
        %v1339 = vrcp.pop %v1336
        %v1340 = vmul.f32 %v1323, %v1337
        %v1341 = vmul.f32 %v1325, %v1338
        %v1342 = vmul.f32 %v1327, %v1339
        %v1343 = vpack.c.bf16 %v1341, %v1340
        %v1344 = vpack.c.bf16 %v1342, %v1342
        %1345 = vrot.lane.b32.xlu0 %v994, 56
        %v1346 = vpop.permute.xlu0 %1345
        %1347 = vrot.lane.b32.xlu0 %v995, 56
        %v1348 = vpop.permute.xlu0 %1347
        %v1351 = vsel %vm1069, %v1343, 0
        %v1354 = vsel %vm1069, %v1344, 0
        %v1357 = vsel %vm1116, %v1348, 0
        %1359 = vmatprep.subr.bf16.mxu0 0
        %1360 = vmatpush1.bf16.msra.mxu0 %v1346
        %1361 = vmatprep.subr.bf16.mxu0 0
        %1362 = vmatpush1.bf16.msra.mxu0 %v1357
        %1363 = vmatprep.subr.bf16.mxu0 0
        %1364 = vmatpush1.bf16.msra.mxu0 0
        %1365 = vmatprep.subr.bf16.mxu0 0
        %1366 = vmatpush1.bf16.msra.mxu0 0
        %1367 = vmatprep.subr.bf16.mxu0 0
        %1368 = vmatpush1.bf16.msra.mxu0 0
        %1369 = vmatprep.subr.bf16.mxu0 0
        %1370 = vmatpush1.bf16.msra.mxu0 0
        %1371 = vmatprep.subr.bf16.mxu0 0
        %1372 = vmatpush1.bf16.msra.mxu0 0
        %1373 = vmatprep.subr.bf16.mxu0 0
        %1374 = vmatpush1.bf16.msra.mxu0 0
        %1375 = vmatprep.subr.bf16.mxu0 0
        %1376 = vmatpush1.bf16.msra.mxu0 0
        %1377 = vmatprep.subr.bf16.mxu0 0
        %1378 = vmatpush1.bf16.msra.mxu0 0
        %1379 = vmatprep.subr.bf16.mxu0 0
        %1380 = vmatpush1.bf16.msra.mxu0 0
        %1381 = vmatprep.subr.bf16.mxu0 0
        %1382 = vmatpush1.bf16.msra.mxu0 0
        %1383 = vmatprep.subr.bf16.mxu0 0
        %1384 = vmatpush1.bf16.msra.mxu0 0
        %1385 = vmatprep.subr.bf16.mxu0 0
        %1386 = vmatpush1.bf16.msra.mxu0 0
        %1387 = vmatprep.subr.bf16.mxu0 0
        %1388 = vmatpush1.bf16.msra.mxu0 0
        %1389 = vmatprep.subr.bf16.mxu0 0
        %1390 = vmatpush1.bf16.msra.mxu0 0
        %1391 = vmatprep.mubr.bf16.mxu0 0
        %1392 = vmatmul.mubr.bf16.gmra.mrb[0].mxu0 %v1351
        %v1393 = vpop.f32.mrb[0].mxu0
        %v1394 = vadd.f32 0.0, %v1393
        %v1395 = vpop.f32.mrb[0].mxu0
        %v1396 = vpop.f32.mrb[0].mxu0
        %v1397 = vadd.f32 0.0, %v1396
        %v1398 = vpop.f32.mrb[0].mxu0
        %1399 = vmatprep.mubr.bf16.mxu0 0
        %1400 = vmatmul.mubr.bf16.gmra.mrb[0].mxu0 %v1354
        %v1401 = vpop.f32.mrb[0].mxu0
        %v1402 = vadd.f32 0.0, %v1401
        %v1403 = vpop.f32.mrb[0].mxu0
        %v1404 = vpop.f32.mrb[0].mxu0
        %v1405 = vpop.f32.mrb[0].mxu0
        %1406 = vdwg.mxu0
        %v1407 = vpack.c.bf16 %v1397, %v1394
        %v1408 = vpack.c.bf16 %v1402, %v1402
        %v1410 = vsel %vm1002, %v1407, 0
        %v1413 = vsel %vm1002, %v1408, 0
        %v1416 = vsel %vm1116, %v990, 0
        %1418 = vmatprep.subr.bf16.mxu0 0
        %1419 = vmatpush1.bf16.msra.mxu0 %v1416
        %1420 = vmatprep.subr.bf16.mxu0 0
        %1421 = vmatpush1.bf16.msra.mxu0 0
        %1422 = vmatprep.subr.bf16.mxu0 0
        %1423 = vmatpush1.bf16.msra.mxu0 0
        %1424 = vmatprep.subr.bf16.mxu0 0
        %1425 = vmatpush1.bf16.msra.mxu0 0
        %1426 = vmatprep.subr.bf16.mxu0 0
        %1427 = vmatpush1.bf16.msra.mxu0 0
        %1428 = vmatprep.subr.bf16.mxu0 0
        %1429 = vmatpush1.bf16.msra.mxu0 0
        %1430 = vmatprep.subr.bf16.mxu0 0
        %1431 = vmatpush1.bf16.msra.mxu0 0
        %1432 = vmatprep.subr.bf16.mxu0 0
        %1433 = vmatpush1.bf16.msra.mxu0 0
        %1434 = vmatprep.subr.bf16.mxu0 0
        %1435 = vmatpush1.bf16.msra.mxu0 0
        %1436 = vmatprep.subr.bf16.mxu0 0
        %1437 = vmatpush1.bf16.msra.mxu0 0
        %1438 = vmatprep.subr.bf16.mxu0 0
        %1439 = vmatpush1.bf16.msra.mxu0 0
        %1440 = vmatprep.subr.bf16.mxu0 0
        %1441 = vmatpush1.bf16.msra.mxu0 0
        %1442 = vmatprep.subr.bf16.mxu0 0
        %1443 = vmatpush1.bf16.msra.mxu0 0
        %1444 = vmatprep.subr.bf16.mxu0 0
        %1445 = vmatpush1.bf16.msra.mxu0 0
        %1446 = vmatprep.subr.bf16.mxu0 0
        %1447 = vmatpush1.bf16.msra.mxu0 0
        %1448 = vmatprep.subr.bf16.mxu0 0
        %1449 = vmatpush1.bf16.msra.mxu0 0
        %1450 = vmatprep.mubr.bf16.mxu0 0
        %1451 = vmatmul.mubr.bf16.gmra.mrb[0].mxu0 %v1410
        %v1452 = vpop.f32.mrb[0].mxu0
        %v1453 = vadd.f32 0.0, %v1452
        %v1454 = vpop.f32.mrb[0].mxu0
        %v1455 = vpop.f32.mrb[0].mxu0
        %v1456 = vadd.f32 0.0, %v1455
        %v1457 = vpop.f32.mrb[0].mxu0
        %1458 = vmatprep.mubr.bf16.mxu0 0
        %1459 = vmatmul.mubr.bf16.gmra.mrb[0].mxu0 %v1413
        %v1460 = vpop.f32.mrb[0].mxu0
        %v1461 = vadd.f32 0.0, %v1460
        %v1462 = vpop.f32.mrb[0].mxu0
        %v1463 = vpop.f32.mrb[0].mxu0
        %v1464 = vpop.f32.mrb[0].mxu0
        %1465 = vdwg.mxu0
        %v1466 = vadd.f32 %v1233, %v1453
        %v1467 = vadd.f32 %v1234, %v1456
        %v1468 = vadd.f32 %v1235, %v1461
        %1469 = vrot.lane.b32.xlu0 %v994, 112
        %v1470 = vpop.permute.xlu0 %1469
        %1471 = vrot.lane.b32.xlu0 %v995, 112
        %v1472 = vpop.permute.xlu0 %1471
        %1473 = vrot.lane.b32.xlu0 %v994, 80
        %v1474 = vpop.permute.xlu0 %1473
        %1475 = vrot.lane.b32.xlu0 %v995, 80
        %v1476 = vpop.permute.xlu0 %1475
        %v1478 = vsel %vm1002, %v1470, 0
        %v1481 = vsel %vm1002, %v1472, 0
        %v1484 = vsel %vm1002, %v1474, 0
        %v1487 = vsel %vm1002, %v1476, 0
        %1489 = vmatprep.subr.bf16.mxu0 0
        %1490 = vmatpush1.bf16.xpose.msra.mxu0 %v1484
        %1491 = vmatprep.subr.bf16.mxu0 0
        %1492 = vmatpush1.bf16.xpose.msra.mxu0 %v1487
        %1493 = vmatprep.subr.bf16.mxu0 0
        %1494 = vmatpush1.bf16.xpose.msra.mxu0 0
        %1495 = vmatprep.subr.bf16.mxu0 0
        %1496 = vmatpush1.bf16.xpose.msra.mxu0 0
        %1497 = vmatprep.subr.bf16.mxu0 0
        %1498 = vmatpush1.bf16.xpose.msra.mxu0 0
        %1499 = vmatprep.subr.bf16.mxu0 0
        %1500 = vmatpush1.bf16.xpose.msra.mxu0 0
        %1501 = vmatprep.subr.bf16.mxu0 0
        %1502 = vmatpush1.bf16.xpose.msra.mxu0 0
        %1503 = vmatprep.subr.bf16.mxu0 0
        %1504 = vmatpush1.bf16.xpose.msra.mxu0 0
        %1505 = vmatprep.subr.bf16.mxu0 0
        %1506 = vmatpush1.bf16.xpose.msra.mxu0 0
        %1507 = vmatprep.subr.bf16.mxu0 0
        %1508 = vmatpush1.bf16.xpose.msra.mxu0 0
        %1509 = vmatprep.subr.bf16.mxu0 0
        %1510 = vmatpush1.bf16.xpose.msra.mxu0 0
        %1511 = vmatprep.subr.bf16.mxu0 0
        %1512 = vmatpush1.bf16.xpose.msra.mxu0 0
        %1513 = vmatprep.subr.bf16.mxu0 0
        %1514 = vmatpush1.bf16.xpose.msra.mxu0 0
        %1515 = vmatprep.subr.bf16.mxu0 0
        %1516 = vmatpush1.bf16.xpose.msra.mxu0 0
        %1517 = vmatprep.subr.bf16.mxu0 0
        %1518 = vmatpush1.bf16.xpose.msra.mxu0 0
        %1519 = vmatprep.subr.bf16.mxu0 0
        %1520 = vmatpush1.bf16.xpose.msra.mxu0 0
        %1521 = vmatprep.mubr.bf16.mxu0 0
        %1522 = vmatmul.mubr.bf16.gmra.mrb[0].mxu0 %v1478
        %v1523 = vpop.f32.mrb[0].mxu0
        %v1524 = vadd.f32 0.0, %v1523
        %v1525 = vpop.f32.mrb[0].mxu0
        %v1526 = vpop.f32.mrb[0].mxu0
        %v1527 = vadd.f32 0.0, %v1526
        %v1528 = vpop.f32.mrb[0].mxu0
        %1529 = vmatprep.mubr.bf16.mxu0 0
        %1530 = vmatmul.mubr.bf16.gmra.mrb[0].mxu0 %v1481
        %v1531 = vpop.f32.mrb[0].mxu0
        %v1532 = vadd.f32 0.0, %v1531
        %v1533 = vpop.f32.mrb[0].mxu0
        %v1534 = vpop.f32.mrb[0].mxu0
        %v1535 = vpop.f32.mrb[0].mxu0
        %1536 = vdwg.mxu0
        %v1537 = vmul.f32 %v1524, 0.35355338
        %v1538 = vmul.f32 %v1527, 0.35355338
        %v1539 = vmul.f32 %v1532, 0.35355338
        %v1540 = vadd.f32 %v1537, %v846
        %v1541 = vadd.f32 %v1538, %v847
        %v1542 = vadd.f32 %v1539, %v848
        %v1543 = vsel %vm1069, %v1540, -inf
        %1544 = vmax.xlane.f32.xlu0 %v1543
        %v1545 = vpop.xlane.xlu0 %1544
        %v1546 = vsel %vm1069, %v1541, -inf
        %1547 = vmax.xlane.f32.xlu0 %v1546
        %v1548 = vpop.xlane.xlu0 %1547
        %v1549 = vsel %vm1069, %v1542, -inf
        %1550 = vmax.xlane.f32.xlu0 %v1549
        %v1551 = vpop.xlane.xlu0 %1550
        %v1552 = vsub.f32 %v1540, %v1545
        %v1553 = vsub.f32 %v1541, %v1548
        %v1554 = vsub.f32 %v1542, %v1551
        %v1555 = vmul.f32 %v1552, 1.442695
        %v1556 = vpow.pop %v1555
        %v1557 = vmul.f32 %v1553, 1.442695
        %v1558 = vpow.pop %v1557
        %v1559 = vmul.f32 %v1554, 1.442695
        %v1560 = vpow.pop %v1559
        %v1561 = vsel %vm1069, %v1556, 0.0
        %1562 = vadd.xlane.f32.xlu0 %v1561
        %v1563 = vpop.xlane.xlu0 %1562
        %v1564 = vsel %vm1069, %v1558, 0.0
        %1565 = vadd.xlane.f32.xlu0 %v1564
        %v1566 = vpop.xlane.xlu0 %1565
        %v1567 = vsel %vm1069, %v1560, 0.0
        %1568 = vadd.xlane.f32.xlu0 %v1567
        %v1569 = vpop.xlane.xlu0 %1568
        %v1570 = vrcp.pop %v1563
        %v1571 = vrcp.pop %v1566
        %v1572 = vrcp.pop %v1569
        %v1573 = vmul.f32 %v1556, %v1570
        %v1574 = vmul.f32 %v1558, %v1571
        %v1575 = vmul.f32 %v1560, %v1572
        %v1576 = vpack.c.bf16 %v1574, %v1573
        %v1577 = vpack.c.bf16 %v1575, %v1575
        %1578 = vrot.lane.b32.xlu0 %v994, 48
        %v1579 = vpop.permute.xlu0 %1578
        %1580 = vrot.lane.b32.xlu0 %v995, 48
        %v1581 = vpop.permute.xlu0 %1580
        %v1584 = vsel %vm1069, %v1576, 0
        %v1587 = vsel %vm1069, %v1577, 0
        %v1590 = vsel %vm1116, %v1581, 0
        %1592 = vmatprep.subr.bf16.mxu0 0
        %1593 = vmatpush1.bf16.msra.mxu0 %v1579
        %1594 = vmatprep.subr.bf16.mxu0 0
        %1595 = vmatpush1.bf16.msra.mxu0 %v1590
        %1596 = vmatprep.subr.bf16.mxu0 0
        %1597 = vmatpush1.bf16.msra.mxu0 0
        %1598 = vmatprep.subr.bf16.mxu0 0
        %1599 = vmatpush1.bf16.msra.mxu0 0
        %1600 = vmatprep.subr.bf16.mxu0 0
        %1601 = vmatpush1.bf16.msra.mxu0 0
        %1602 = vmatprep.subr.bf16.mxu0 0
        %1603 = vmatpush1.bf16.msra.mxu0 0
        %1604 = vmatprep.subr.bf16.mxu0 0
        %1605 = vmatpush1.bf16.msra.mxu0 0
        %1606 = vmatprep.subr.bf16.mxu0 0
        %1607 = vmatpush1.bf16.msra.mxu0 0
        %1608 = vmatprep.subr.bf16.mxu0 0
        %1609 = vmatpush1.bf16.msra.mxu0 0
        %1610 = vmatprep.subr.bf16.mxu0 0
        %1611 = vmatpush1.bf16.msra.mxu0 0
        %1612 = vmatprep.subr.bf16.mxu0 0
        %1613 = vmatpush1.bf16.msra.mxu0 0
        %1614 = vmatprep.subr.bf16.mxu0 0
        %1615 = vmatpush1.bf16.msra.mxu0 0
        %1616 = vmatprep.subr.bf16.mxu0 0
        %1617 = vmatpush1.bf16.msra.mxu0 0
        %1618 = vmatprep.subr.bf16.mxu0 0
        %1619 = vmatpush1.bf16.msra.mxu0 0
        %1620 = vmatprep.subr.bf16.mxu0 0
        %1621 = vmatpush1.bf16.msra.mxu0 0
        %1622 = vmatprep.subr.bf16.mxu0 0
        %1623 = vmatpush1.bf16.msra.mxu0 0
        %1624 = vmatprep.mubr.bf16.mxu0 0
        %1625 = vmatmul.mubr.bf16.gmra.mrb[0].mxu0 %v1584
        %v1626 = vpop.f32.mrb[0].mxu0
        %v1627 = vadd.f32 0.0, %v1626
        %v1628 = vpop.f32.mrb[0].mxu0
        %v1629 = vpop.f32.mrb[0].mxu0
        %v1630 = vadd.f32 0.0, %v1629
        %v1631 = vpop.f32.mrb[0].mxu0
        %1632 = vmatprep.mubr.bf16.mxu0 0
        %1633 = vmatmul.mubr.bf16.gmra.mrb[0].mxu0 %v1587
        %v1634 = vpop.f32.mrb[0].mxu0
        %v1635 = vadd.f32 0.0, %v1634
        %v1636 = vpop.f32.mrb[0].mxu0
        %v1637 = vpop.f32.mrb[0].mxu0
        %v1638 = vpop.f32.mrb[0].mxu0
        %1639 = vdwg.mxu0
        %v1640 = vpack.c.bf16 %v1630, %v1627
        %v1641 = vpack.c.bf16 %v1635, %v1635
        %v1643 = vsel %vm1002, %v1640, 0
        %v1646 = vsel %vm1002, %v1641, 0
        %v1649 = vsel %vm1116, %v991, 0
        %1651 = vmatprep.subr.bf16.mxu0 0
        %1652 = vmatpush1.bf16.msra.mxu0 %v1649
        %1653 = vmatprep.subr.bf16.mxu0 0
        %1654 = vmatpush1.bf16.msra.mxu0 0
        %1655 = vmatprep.subr.bf16.mxu0 0
        %1656 = vmatpush1.bf16.msra.mxu0 0
        %1657 = vmatprep.subr.bf16.mxu0 0
        %1658 = vmatpush1.bf16.msra.mxu0 0
        %1659 = vmatprep.subr.bf16.mxu0 0
        %1660 = vmatpush1.bf16.msra.mxu0 0
        %1661 = vmatprep.subr.bf16.mxu0 0
        %1662 = vmatpush1.bf16.msra.mxu0 0
        %1663 = vmatprep.subr.bf16.mxu0 0
        %1664 = vmatpush1.bf16.msra.mxu0 0
        %1665 = vmatprep.subr.bf16.mxu0 0
        %1666 = vmatpush1.bf16.msra.mxu0 0
        %1667 = vmatprep.subr.bf16.mxu0 0
        %1668 = vmatpush1.bf16.msra.mxu0 0
        %1669 = vmatprep.subr.bf16.mxu0 0
        %1670 = vmatpush1.bf16.msra.mxu0 0
        %1671 = vmatprep.subr.bf16.mxu0 0
        %1672 = vmatpush1.bf16.msra.mxu0 0
        %1673 = vmatprep.subr.bf16.mxu0 0
        %1674 = vmatpush1.bf16.msra.mxu0 0
        %1675 = vmatprep.subr.bf16.mxu0 0
        %1676 = vmatpush1.bf16.msra.mxu0 0
        %1677 = vmatprep.subr.bf16.mxu0 0
        %1678 = vmatpush1.bf16.msra.mxu0 0
        %1679 = vmatprep.subr.bf16.mxu0 0
        %1680 = vmatpush1.bf16.msra.mxu0 0
        %1681 = vmatprep.subr.bf16.mxu0 0
        %1682 = vmatpush1.bf16.msra.mxu0 0
        %1683 = vmatprep.mubr.bf16.mxu0 0
        %1684 = vmatmul.mubr.bf16.gmra.mrb[0].mxu0 %v1643
        %v1685 = vpop.f32.mrb[0].mxu0
        %v1686 = vadd.f32 0.0, %v1685
        %v1687 = vpop.f32.mrb[0].mxu0
        %v1688 = vpop.f32.mrb[0].mxu0
        %v1689 = vadd.f32 0.0, %v1688
        %v1690 = vpop.f32.mrb[0].mxu0
        %1691 = vmatprep.mubr.bf16.mxu0 0
        %1692 = vmatmul.mubr.bf16.gmra.mrb[0].mxu0 %v1646
        %v1693 = vpop.f32.mrb[0].mxu0
        %v1694 = vadd.f32 0.0, %v1693
        %v1695 = vpop.f32.mrb[0].mxu0
        %v1696 = vpop.f32.mrb[0].mxu0
        %v1697 = vpop.f32.mrb[0].mxu0
        %1698 = vdwg.mxu0
        %v1699 = vadd.f32 %v1466, %v1686
        %v1700 = vadd.f32 %v1467, %v1689
        %v1701 = vadd.f32 %v1468, %v1694
        %1702 = vrot.lane.b32.xlu0 %v994, 104
        %v1703 = vpop.permute.xlu0 %1702
        %1704 = vrot.lane.b32.xlu0 %v995, 104
        %v1705 = vpop.permute.xlu0 %1704
        %1706 = vrot.lane.b32.xlu0 %v994, 72
        %v1707 = vpop.permute.xlu0 %1706
        %1708 = vrot.lane.b32.xlu0 %v995, 72
        %v1709 = vpop.permute.xlu0 %1708
        %v1711 = vsel %vm1002, %v1703, 0
        %v1714 = vsel %vm1002, %v1705, 0
        %v1717 = vsel %vm1002, %v1707, 0
        %v1720 = vsel %vm1002, %v1709, 0
        %1722 = vmatprep.subr.bf16.mxu0 0
        %1723 = vmatpush1.bf16.xpose.msra.mxu0 %v1717
        %1724 = vmatprep.subr.bf16.mxu0 0
        %1725 = vmatpush1.bf16.xpose.msra.mxu0 %v1720
        %1726 = vmatprep.subr.bf16.mxu0 0
        %1727 = vmatpush1.bf16.xpose.msra.mxu0 0
        %1728 = vmatprep.subr.bf16.mxu0 0
        %1729 = vmatpush1.bf16.xpose.msra.mxu0 0
        %1730 = vmatprep.subr.bf16.mxu0 0
        %1731 = vmatpush1.bf16.xpose.msra.mxu0 0
        %1732 = vmatprep.subr.bf16.mxu0 0
        %1733 = vmatpush1.bf16.xpose.msra.mxu0 0
        %1734 = vmatprep.subr.bf16.mxu0 0
        %1735 = vmatpush1.bf16.xpose.msra.mxu0 0
        %1736 = vmatprep.subr.bf16.mxu0 0
        %1737 = vmatpush1.bf16.xpose.msra.mxu0 0
        %1738 = vmatprep.subr.bf16.mxu0 0
        %1739 = vmatpush1.bf16.xpose.msra.mxu0 0
        %1740 = vmatprep.subr.bf16.mxu0 0
        %1741 = vmatpush1.bf16.xpose.msra.mxu0 0
        %1742 = vmatprep.subr.bf16.mxu0 0
        %1743 = vmatpush1.bf16.xpose.msra.mxu0 0
        %1744 = vmatprep.subr.bf16.mxu0 0
        %1745 = vmatpush1.bf16.xpose.msra.mxu0 0
        %1746 = vmatprep.subr.bf16.mxu0 0
        %1747 = vmatpush1.bf16.xpose.msra.mxu0 0
        %1748 = vmatprep.subr.bf16.mxu0 0
        %1749 = vmatpush1.bf16.xpose.msra.mxu0 0
        %1750 = vmatprep.subr.bf16.mxu0 0
        %1751 = vmatpush1.bf16.xpose.msra.mxu0 0
        %1752 = vmatprep.subr.bf16.mxu0 0
        %1753 = vmatpush1.bf16.xpose.msra.mxu0 0
        %1754 = vmatprep.mubr.bf16.mxu0 0
        %1755 = vmatmul.mubr.bf16.gmra.mrb[0].mxu0 %v1711
        %v1756 = vpop.f32.mrb[0].mxu0
        %v1757 = vadd.f32 0.0, %v1756
        %v1758 = vpop.f32.mrb[0].mxu0
        %v1759 = vpop.f32.mrb[0].mxu0
        %v1760 = vadd.f32 0.0, %v1759
        %v1761 = vpop.f32.mrb[0].mxu0
        %1762 = vmatprep.mubr.bf16.mxu0 0
        %1763 = vmatmul.mubr.bf16.gmra.mrb[0].mxu0 %v1714
        %v1764 = vpop.f32.mrb[0].mxu0
        %v1765 = vadd.f32 0.0, %v1764
        %v1766 = vpop.f32.mrb[0].mxu0
        %v1767 = vpop.f32.mrb[0].mxu0
        %v1768 = vpop.f32.mrb[0].mxu0
        %1769 = vdwg.mxu0
        %v1770 = vmul.f32 %v1757, 0.35355338
        %v1771 = vmul.f32 %v1760, 0.35355338
        %v1772 = vmul.f32 %v1765, 0.35355338
        %v1773 = vadd.f32 %v1770, %v846
        %v1774 = vadd.f32 %v1771, %v847
        %v1775 = vadd.f32 %v1772, %v848
        %v1776 = vsel %vm1069, %v1773, -inf
        %1777 = vmax.xlane.f32.xlu0 %v1776
        %v1778 = vpop.xlane.xlu0 %1777
        %v1779 = vsel %vm1069, %v1774, -inf
        %1780 = vmax.xlane.f32.xlu0 %v1779
        %v1781 = vpop.xlane.xlu0 %1780
        %v1782 = vsel %vm1069, %v1775, -inf
        %1783 = vmax.xlane.f32.xlu0 %v1782
        %v1784 = vpop.xlane.xlu0 %1783
        %v1785 = vsub.f32 %v1773, %v1778
        %v1786 = vsub.f32 %v1774, %v1781
        %v1787 = vsub.f32 %v1775, %v1784
        %v1788 = vmul.f32 %v1785, 1.442695
        %v1789 = vpow.pop %v1788
        %v1790 = vmul.f32 %v1786, 1.442695
        %v1791 = vpow.pop %v1790
        %v1792 = vmul.f32 %v1787, 1.442695
        %v1793 = vpow.pop %v1792
        %v1794 = vsel %vm1069, %v1789, 0.0
        %1795 = vadd.xlane.f32.xlu0 %v1794
        %v1796 = vpop.xlane.xlu0 %1795
        %v1797 = vsel %vm1069, %v1791, 0.0
        %1798 = vadd.xlane.f32.xlu0 %v1797
        %v1799 = vpop.xlane.xlu0 %1798
        %v1800 = vsel %vm1069, %v1793, 0.0
        %1801 = vadd.xlane.f32.xlu0 %v1800
        %v1802 = vpop.xlane.xlu0 %1801
        %v1803 = vrcp.pop %v1796
        %v1804 = vrcp.pop %v1799
        %v1805 = vrcp.pop %v1802
        %v1806 = vmul.f32 %v1789, %v1803
        %v1807 = vmul.f32 %v1791, %v1804
        %v1808 = vmul.f32 %v1793, %v1805
        %v1809 = vpack.c.bf16 %v1807, %v1806
        %v1810 = vpack.c.bf16 %v1808, %v1808
        %1811 = vrot.lane.b32.xlu0 %v994, 40
        %v1812 = vpop.permute.xlu0 %1811
        %1813 = vrot.lane.b32.xlu0 %v995, 40
        %v1814 = vpop.permute.xlu0 %1813
        %v1817 = vsel %vm1069, %v1809, 0
        %v1820 = vsel %vm1069, %v1810, 0
        %v1823 = vsel %vm1116, %v1814, 0
        %1825 = vmatprep.subr.bf16.mxu0 0
        %1826 = vmatpush1.bf16.msra.mxu0 %v1812
        %1827 = vmatprep.subr.bf16.mxu0 0
        %1828 = vmatpush1.bf16.msra.mxu0 %v1823
        %1829 = vmatprep.subr.bf16.mxu0 0
        %1830 = vmatpush1.bf16.msra.mxu0 0
        %1831 = vmatprep.subr.bf16.mxu0 0
        %1832 = vmatpush1.bf16.msra.mxu0 0
        %1833 = vmatprep.subr.bf16.mxu0 0
        %1834 = vmatpush1.bf16.msra.mxu0 0
        %1835 = vmatprep.subr.bf16.mxu0 0
        %1836 = vmatpush1.bf16.msra.mxu0 0
        %1837 = vmatprep.subr.bf16.mxu0 0
        %1838 = vmatpush1.bf16.msra.mxu0 0
        %1839 = vmatprep.subr.bf16.mxu0 0
        %1840 = vmatpush1.bf16.msra.mxu0 0
        %1841 = vmatprep.subr.bf16.mxu0 0
        %1842 = vmatpush1.bf16.msra.mxu0 0
        %1843 = vmatprep.subr.bf16.mxu0 0
        %1844 = vmatpush1.bf16.msra.mxu0 0
        %1845 = vmatprep.subr.bf16.mxu0 0
        %1846 = vmatpush1.bf16.msra.mxu0 0
        %1847 = vmatprep.subr.bf16.mxu0 0
        %1848 = vmatpush1.bf16.msra.mxu0 0
        %1849 = vmatprep.subr.bf16.mxu0 0
        %1850 = vmatpush1.bf16.msra.mxu0 0
        %1851 = vmatprep.subr.bf16.mxu0 0
        %1852 = vmatpush1.bf16.msra.mxu0 0
        %1853 = vmatprep.subr.bf16.mxu0 0
        %1854 = vmatpush1.bf16.msra.mxu0 0
        %1855 = vmatprep.subr.bf16.mxu0 0
        %1856 = vmatpush1.bf16.msra.mxu0 0
        %1857 = vmatprep.mubr.bf16.mxu0 0
        %1858 = vmatmul.mubr.bf16.gmra.mrb[0].mxu0 %v1817
        %v1859 = vpop.f32.mrb[0].mxu0
        %v1860 = vadd.f32 0.0, %v1859
        %v1861 = vpop.f32.mrb[0].mxu0
        %v1862 = vpop.f32.mrb[0].mxu0
        %v1863 = vadd.f32 0.0, %v1862
        %v1864 = vpop.f32.mrb[0].mxu0
        %1865 = vmatprep.mubr.bf16.mxu0 0
        %1866 = vmatmul.mubr.bf16.gmra.mrb[0].mxu0 %v1820
        %v1867 = vpop.f32.mrb[0].mxu0
        %v1868 = vadd.f32 0.0, %v1867
        %v1869 = vpop.f32.mrb[0].mxu0
        %v1870 = vpop.f32.mrb[0].mxu0
        %v1871 = vpop.f32.mrb[0].mxu0
        %1872 = vdwg.mxu0
        %v1873 = vpack.c.bf16 %v1863, %v1860
        %v1874 = vpack.c.bf16 %v1868, %v1868
        %v1876 = vsel %vm1002, %v1873, 0
        %v1879 = vsel %vm1002, %v1874, 0
        %v1882 = vsel %vm1116, %v992, 0
        %1884 = vmatprep.subr.bf16.mxu0 0
        %1885 = vmatpush1.bf16.msra.mxu0 %v1882
        %1886 = vmatprep.subr.bf16.mxu0 0
        %1887 = vmatpush1.bf16.msra.mxu0 0
        %1888 = vmatprep.subr.bf16.mxu0 0
        %1889 = vmatpush1.bf16.msra.mxu0 0
        %1890 = vmatprep.subr.bf16.mxu0 0
        %1891 = vmatpush1.bf16.msra.mxu0 0
        %1892 = vmatprep.subr.bf16.mxu0 0
        %1893 = vmatpush1.bf16.msra.mxu0 0
        %1894 = vmatprep.subr.bf16.mxu0 0
        %1895 = vmatpush1.bf16.msra.mxu0 0
        %1896 = vmatprep.subr.bf16.mxu0 0
        %1897 = vmatpush1.bf16.msra.mxu0 0
        %1898 = vmatprep.subr.bf16.mxu0 0
        %1899 = vmatpush1.bf16.msra.mxu0 0
        %1900 = vmatprep.subr.bf16.mxu0 0
        %1901 = vmatpush1.bf16.msra.mxu0 0
        %1902 = vmatprep.subr.bf16.mxu0 0
        %1903 = vmatpush1.bf16.msra.mxu0 0
        %1904 = vmatprep.subr.bf16.mxu0 0
        %1905 = vmatpush1.bf16.msra.mxu0 0
        %1906 = vmatprep.subr.bf16.mxu0 0
        %1907 = vmatpush1.bf16.msra.mxu0 0
        %1908 = vmatprep.subr.bf16.mxu0 0
        %1909 = vmatpush1.bf16.msra.mxu0 0
        %1910 = vmatprep.subr.bf16.mxu0 0
        %1911 = vmatpush1.bf16.msra.mxu0 0
        %1912 = vmatprep.subr.bf16.mxu0 0
        %1913 = vmatpush1.bf16.msra.mxu0 0
        %1914 = vmatprep.subr.bf16.mxu0 0
        %1915 = vmatpush1.bf16.msra.mxu0 0
        %1916 = vmatprep.mubr.bf16.mxu0 0
        %1917 = vmatmul.mubr.bf16.gmra.mrb[0].mxu0 %v1876
        %v1918 = vpop.f32.mrb[0].mxu0
        %v1919 = vadd.f32 0.0, %v1918
        %v1920 = vpop.f32.mrb[0].mxu0
        %v1921 = vpop.f32.mrb[0].mxu0
        %v1922 = vadd.f32 0.0, %v1921
        %v1923 = vpop.f32.mrb[0].mxu0
        %1924 = vmatprep.mubr.bf16.mxu0 0
        %1925 = vmatmul.mubr.bf16.gmra.mrb[0].mxu0 %v1879
        %v1926 = vpop.f32.mrb[0].mxu0
        %v1927 = vadd.f32 0.0, %v1926
        %v1928 = vpop.f32.mrb[0].mxu0
        %v1929 = vpop.f32.mrb[0].mxu0
        %v1930 = vpop.f32.mrb[0].mxu0
        %1931 = vdwg.mxu0
        %v1932 = vadd.f32 %v1699, %v1919
        %v1933 = vadd.f32 %v1700, %v1922
        %v1934 = vadd.f32 %v1701, %v1927
        %v1935 = vadd.f32 %v814, %v1932
        %v1936 = vadd.f32 %v817, %v1933
        %v1937 = vadd.f32 %v822, %v1934
        %v1938 = vld [vmem:[%s10] sm:$0x1]
        %v1939 = vld [vmem:[%s11] sm:$0x1]
        %v1940 = vsel %vm851, %v1935, 0.0
        %1941 = vadd.xlane.f32.xlu0 %v1940
        %v1942 = vpop.xlane.xlu0 %1941
        %v1943 = vsel %vm851, %v1936, 0.0
        %1944 = vadd.xlane.f32.xlu0 %v1943
        %v1945 = vpop.xlane.xlu0 %1944
        %v1946 = vsel %vm851, %v1937, 0.0
        %1947 = vadd.xlane.f32.xlu0 %v1946
        %v1948 = vpop.xlane.xlu0 %1947
        %v1949 = vmul.f32 %v1942, %v861
        %v1950 = vmul.f32 %v1945, %v861
        %v1951 = vmul.f32 %v1948, %v861
        %v1952 = vsub.f32 %v1935, %v1949
        %v1953 = vsub.f32 %v1936, %v1950
        %v1954 = vsub.f32 %v1937, %v1951
        %v1955 = vmul.f32 %v1952, %v1952
        %v1956 = vmul.f32 %v1953, %v1953
        %v1957 = vmul.f32 %v1954, %v1954
        %v1958 = vsel %vm851, %v1955, 0.0
        %1959 = vadd.xlane.f32.xlu0 %v1958
        %v1960 = vpop.xlane.xlu0 %1959
        %v1961 = vsel %vm851, %v1956, 0.0
        %1962 = vadd.xlane.f32.xlu0 %v1961
        %v1963 = vpop.xlane.xlu0 %1962
        %v1964 = vsel %vm851, %v1957, 0.0
        %1965 = vadd.xlane.f32.xlu0 %v1964
        %v1966 = vpop.xlane.xlu0 %1965
        %v1967 = vmul.f32 %v1960, %v861
        %v1968 = vmul.f32 %v1963, %v861
        %v1969 = vmul.f32 %v1966, %v861
        %v1970 = vadd.f32 %v1967, 1e-05
        %v1971 = vadd.f32 %v1968, 1e-05
        %v1972 = vadd.f32 %v1969, 1e-05
        %v1973 = vrsqrt.pop %v1970
        %v1974 = vrsqrt.pop %v1971
        %v1975 = vrsqrt.pop %v1972
        %v1976 = vmul.f32 %v1952, %v1973
        %v1977 = vmul.f32 %v1953, %v1974
        %v1978 = vmul.f32 %v1954, %v1975
        %v1980 = vlaneseq
        %v1981 = vshrl.u32 %v1980, 7
        %v1982 = vsub.s32 0, %v1981
        %v1983 = vrot.slane %v1938, %v1982
        %v1985 = vmul.f32 %v1976, %v1983
        %v1986 = vmul.f32 %v1977, %v1983
        %v1987 = vmul.f32 %v1978, %v1983
        %v1989 = vlaneseq
        %v1990 = vshrl.u32 %v1989, 7
        %v1991 = vsub.s32 0, %v1990
        %v1992 = vrot.slane %v1939, %v1991
        %v1994 = vadd.f32 %v1985, %v1992
        %v1995 = vadd.f32 %v1986, %v1992
        %v1996 = vadd.f32 %v1987, %v1992
        %v1997 = vld [vmem:[%s12] sm:$0xf]
        %v1998 = vld [vmem:[%s12 + $0x4] sm:$0xf]
        %v1999 = vld [vmem:[%s12 + $0x8] sm:$0xf]
        %v2000 = vld [vmem:[%s12 + $0xc] sm:$0xf]
        %v2001 = vpack.c.bf16 %v1995, %v1994
        %v2002 = vpack.c.bf16 %v1996, %v1996
        %v2003 = vld [vmem:[%s13] sm:$0x1]
        %v2005 = vlaneseq
        %v2006 = vshrl.u32 %v2005, 7
        %v2007 = vsub.s32 0, %v2006
        %v2008 = vrot.slane %v2003, %v2007
        %v2014 = vunpack.c.l.b16 %v1997
        %v2015 = vunpack.c.l.b16 %v1998
        %v2016 = vunpack.c.l.b16 %v1999
        %v2017 = vunpack.c.l.b16 %v2000
        %v2018 = vpack.c.b16 %v2015, %v2014
        %v2019 = vpack.c.b16 %v2017, %v2016
        %v2023 = vsel %vm851, %v2001, 0
        %v2026 = vsel %vm851, %v2002, 0
        %2028 = vmatprep.subr.bf16.mxu0 0
        %2029 = vmatpush1.bf16.msra.mxu0 %v2018
        %2030 = vmatprep.subr.bf16.mxu0 0
        %2031 = vmatpush1.bf16.msra.mxu0 %v2019
        %2032 = vmatprep.subr.bf16.mxu0 0
        %2033 = vmatpush1.bf16.msra.mxu0 0
        %2034 = vmatprep.subr.bf16.mxu0 0
        %2035 = vmatpush1.bf16.msra.mxu0 0
        %2036 = vmatprep.subr.bf16.mxu0 0
        %2037 = vmatpush1.bf16.msra.mxu0 0
        %2038 = vmatprep.subr.bf16.mxu0 0
        %2039 = vmatpush1.bf16.msra.mxu0 0
        %2040 = vmatprep.subr.bf16.mxu0 0
        %2041 = vmatpush1.bf16.msra.mxu0 0
        %2042 = vmatprep.subr.bf16.mxu0 0
        %2043 = vmatpush1.bf16.msra.mxu0 0
        %2044 = vmatprep.subr.bf16.mxu0 0
        %2045 = vmatpush1.bf16.msra.mxu0 0
        %2046 = vmatprep.subr.bf16.mxu0 0
        %2047 = vmatpush1.bf16.msra.mxu0 0
        %2048 = vmatprep.subr.bf16.mxu0 0
        %2049 = vmatpush1.bf16.msra.mxu0 0
        %2050 = vmatprep.subr.bf16.mxu0 0
        %2051 = vmatpush1.bf16.msra.mxu0 0
        %2052 = vmatprep.subr.bf16.mxu0 0
        %2053 = vmatpush1.bf16.msra.mxu0 0
        %2054 = vmatprep.subr.bf16.mxu0 0
        %2055 = vmatpush1.bf16.msra.mxu0 0
        %2056 = vmatprep.subr.bf16.mxu0 0
        %2057 = vmatpush1.bf16.msra.mxu0 0
        %2058 = vmatprep.subr.bf16.mxu0 0
        %2059 = vmatpush1.bf16.msra.mxu0 0
        %2060 = vmatprep.mubr.bf16.mxu0 0
        %2061 = vmatmul.mubr.bf16.gmra.mrb[0].mxu0 %v2023
        %v2062 = vpop.f32.mrb[0].mxu0
        %v2063 = vadd.f32 %v2008, %v2062
        %v2064 = vpop.f32.mrb[0].mxu0
        %v2065 = vpop.f32.mrb[0].mxu0
        %v2066 = vadd.f32 %v2008, %v2065
        %v2067 = vpop.f32.mrb[0].mxu0
        %2068 = vmatprep.mubr.bf16.mxu0 0
        %2069 = vmatmul.mubr.bf16.gmra.mrb[0].mxu0 %v2026
        %v2070 = vpop.f32.mrb[0].mxu0
        %v2071 = vadd.f32 %v2008, %v2070
        %v2072 = vpop.f32.mrb[0].mxu0
        %v2073 = vpop.f32.mrb[0].mxu0
        %v2074 = vpop.f32.mrb[0].mxu0
        %2075 = vdwg.mxu0
        %v2076 = vmul.f32 %v2063, 0.5
        %v2077 = vmul.f32 %v2066, 0.5
        %v2078 = vmul.f32 %v2071, 0.5
        %v2079 = vmul.f32 %v2063, 0.044715
        %v2080 = vmul.f32 %v2066, 0.044715
        %v2081 = vmul.f32 %v2071, 0.044715
        %v2082 = vmul.f32 %v2079, %v2063
        %v2083 = vmul.f32 %v2080, %v2066
        %v2084 = vmul.f32 %v2081, %v2071
        %v2085 = vmul.f32 %v2082, %v2063
        %v2086 = vmul.f32 %v2083, %v2066
        %v2087 = vmul.f32 %v2084, %v2071
        %v2088 = vadd.f32 %v2063, %v2085
        %v2089 = vadd.f32 %v2066, %v2086
        %v2090 = vadd.f32 %v2071, %v2087
        %v2091 = vmul.f32 %v2088, 0.7978846
        %v2092 = vmul.f32 %v2089, 0.7978846
        %v2093 = vmul.f32 %v2090, 0.7978846
        %v2094 = vtanh.pop %v2091
        %v2095 = vtanh.pop %v2092
        %v2096 = vtanh.pop %v2093
        %v2097 = vadd.f32 %v2094, 1.0
        %v2098 = vadd.f32 %v2095, 1.0
        %v2099 = vadd.f32 %v2096, 1.0
        %v2100 = vmul.f32 %v2076, %v2097
        %v2101 = vmul.f32 %v2077, %v2098
        %v2102 = vmul.f32 %v2078, %v2099
        %v2103 = vld [vmem:[%s14] sm:$0xf]
        %v2104 = vld [vmem:[%s14 + $0x4] sm:$0xf]
        %v2105 = vld [vmem:[%s14 + $0x8] sm:$0xf]
        %v2106 = vld [vmem:[%s14 + $0xc] sm:$0xf]
        %v2107 = vld [vmem:[%s14 + $0x10] sm:$0xf]
        %v2108 = vld [vmem:[%s14 + $0x14] sm:$0xf]
        %v2109 = vld [vmem:[%s14 + $0x18] sm:$0xf]
        %v2110 = vld [vmem:[%s14 + $0x1c] sm:$0xf]
        %v2111 = vld [vmem:[%s14 + $0x20] sm:$0xf]
        %v2112 = vld [vmem:[%s14 + $0x24] sm:$0xf]
        %v2113 = vld [vmem:[%s14 + $0x28] sm:$0xf]
        %v2114 = vld [vmem:[%s14 + $0x2c] sm:$0xf]
        %v2115 = vld [vmem:[%s14 + $0x30] sm:$0xf]
        %v2116 = vld [vmem:[%s14 + $0x34] sm:$0xf]
        %v2117 = vld [vmem:[%s14 + $0x38] sm:$0xf]
        %v2118 = vld [vmem:[%s14 + $0x3c] sm:$0xf]
        %v2119 = vpack.c.bf16 %v2101, %v2100
        %v2120 = vpack.c.bf16 %v2102, %v2102
        %v2137 = vunpack.c.l.b16 %v2103
        %v2138 = vunpack.c.l.b16 %v2104
        %v2139 = vunpack.c.l.b16 %v2105
        %v2140 = vunpack.c.l.b16 %v2106
        %v2141 = vunpack.c.l.b16 %v2107
        %v2142 = vunpack.c.l.b16 %v2108
        %v2143 = vunpack.c.l.b16 %v2109
        %v2144 = vunpack.c.l.b16 %v2110
        %v2145 = vunpack.c.l.b16 %v2111
        %v2146 = vunpack.c.l.b16 %v2112
        %v2147 = vunpack.c.l.b16 %v2113
        %v2148 = vunpack.c.l.b16 %v2114
        %v2149 = vunpack.c.l.b16 %v2115
        %v2150 = vunpack.c.l.b16 %v2116
        %v2151 = vunpack.c.l.b16 %v2117
        %v2152 = vunpack.c.l.b16 %v2118
        %v2153 = vpack.c.b16 %v2138, %v2137
        %v2154 = vpack.c.b16 %v2140, %v2139
        %v2155 = vpack.c.b16 %v2142, %v2141
        %v2156 = vpack.c.b16 %v2144, %v2143
        %v2157 = vpack.c.b16 %v2146, %v2145
        %v2158 = vpack.c.b16 %v2148, %v2147
        %v2159 = vpack.c.b16 %v2150, %v2149
        %v2160 = vpack.c.b16 %v2152, %v2151
        %2169 = vmatprep.subr.bf16.mxu0 0
        %2170 = vmatpush1.bf16.msra.mxu0 %v2153
        %2171 = vmatprep.subr.bf16.mxu0 0
        %2172 = vmatpush1.bf16.msra.mxu0 %v2154
        %2173 = vmatprep.subr.bf16.mxu0 0
        %2174 = vmatpush1.bf16.msra.mxu0 %v2155
        %2175 = vmatprep.subr.bf16.mxu0 0
        %2176 = vmatpush1.bf16.msra.mxu0 %v2156
        %2177 = vmatprep.subr.bf16.mxu0 0
        %2178 = vmatpush1.bf16.msra.mxu0 %v2157
        %2179 = vmatprep.subr.bf16.mxu0 0
        %2180 = vmatpush1.bf16.msra.mxu0 %v2158
        %2181 = vmatprep.subr.bf16.mxu0 0
        %2182 = vmatpush1.bf16.msra.mxu0 %v2159
        %2183 = vmatprep.subr.bf16.mxu0 0
        %2184 = vmatpush1.bf16.msra.mxu0 %v2160
        %2185 = vmatprep.subr.bf16.mxu0 0
        %2186 = vmatpush1.bf16.msra.mxu0 0
        %2187 = vmatprep.subr.bf16.mxu0 0
        %2188 = vmatpush1.bf16.msra.mxu0 0
        %2189 = vmatprep.subr.bf16.mxu0 0
        %2190 = vmatpush1.bf16.msra.mxu0 0
        %2191 = vmatprep.subr.bf16.mxu0 0
        %2192 = vmatpush1.bf16.msra.mxu0 0
        %2193 = vmatprep.subr.bf16.mxu0 0
        %2194 = vmatpush1.bf16.msra.mxu0 0
        %2195 = vmatprep.subr.bf16.mxu0 0
        %2196 = vmatpush1.bf16.msra.mxu0 0
        %2197 = vmatprep.subr.bf16.mxu0 0
        %2198 = vmatpush1.bf16.msra.mxu0 0
        %2199 = vmatprep.subr.bf16.mxu0 0
        %2200 = vmatpush1.bf16.msra.mxu0 0
        %2201 = vmatprep.mubr.bf16.mxu0 0
        %2202 = vmatmul.mubr.bf16.gmra.mrb[0].mxu0 %v2119
        %v2203 = vpop.f32.mrb[0].mxu0
        %v2204 = vadd.f32 0.0, %v2203
        %v2205 = vpop.f32.mrb[0].mxu0
        %v2206 = vpop.f32.mrb[0].mxu0
        %v2207 = vadd.f32 0.0, %v2206
        %v2208 = vpop.f32.mrb[0].mxu0
        %2209 = vmatprep.mubr.bf16.mxu0 0
        %2210 = vmatmul.mubr.bf16.gmra.mrb[0].mxu0 %v2120
        %v2211 = vpop.f32.mrb[0].mxu0
        %v2212 = vadd.f32 0.0, %v2211
        %v2213 = vpop.f32.mrb[0].mxu0
        %v2214 = vpop.f32.mrb[0].mxu0
        %v2215 = vpop.f32.mrb[0].mxu0
        %2216 = vdwg.mxu0
        %v2217 = vadd.f32 %v1935, %v2204
        %v2218 = vadd.f32 %v1936, %v2207
        %v2219 = vadd.f32 %v1937, %v2212
        %v2220 = vld [vmem:[%s15] sm:$0x1]
        %v2222 = vlaneseq
        %v2223 = vshrl.u32 %v2222, 7
        %v2224 = vsub.s32 0, %v2223
        %v2225 = vrot.slane %v2220, %v2224
        %v2227 = vadd.f32 %v2217, %v2225
        %v2228 = vadd.f32 %v2218, %v2225
        %v2229 = vadd.f32 %v2219, %v2225
        %s2230 = scalar_lea.vmem %s4, 1
        %v2231 = vld [vmem:[%s2230] sm:$0x1]
        %s2232 = scalar_lea.vmem %s5, 1
        %v2233 = vld [vmem:[%s2232] sm:$0x1]
        %v2234 = vsel %vm851, %v2227, 0.0
        %2235 = vadd.xlane.f32.xlu0 %v2234
        %v2236 = vpop.xlane.xlu0 %2235
        %v2237 = vsel %vm851, %v2228, 0.0
        %2238 = vadd.xlane.f32.xlu0 %v2237
        %v2239 = vpop.xlane.xlu0 %2238
        %v2240 = vsel %vm851, %v2229, 0.0
        %2241 = vadd.xlane.f32.xlu0 %v2240
        %v2242 = vpop.xlane.xlu0 %2241
        %v2243 = vmul.f32 %v2236, %v861
        %v2244 = vmul.f32 %v2239, %v861
        %v2245 = vmul.f32 %v2242, %v861
        %v2246 = vsub.f32 %v2227, %v2243
        %v2247 = vsub.f32 %v2228, %v2244
        %v2248 = vsub.f32 %v2229, %v2245
        %v2249 = vmul.f32 %v2246, %v2246
        %v2250 = vmul.f32 %v2247, %v2247
        %v2251 = vmul.f32 %v2248, %v2248
        %v2252 = vsel %vm851, %v2249, 0.0
        %2253 = vadd.xlane.f32.xlu0 %v2252
        %v2254 = vpop.xlane.xlu0 %2253
        %v2255 = vsel %vm851, %v2250, 0.0
        %2256 = vadd.xlane.f32.xlu0 %v2255
        %v2257 = vpop.xlane.xlu0 %2256
        %v2258 = vsel %vm851, %v2251, 0.0
        %2259 = vadd.xlane.f32.xlu0 %v2258
        %v2260 = vpop.xlane.xlu0 %2259
        %v2261 = vmul.f32 %v2254, %v861
        %v2262 = vmul.f32 %v2257, %v861
        %v2263 = vmul.f32 %v2260, %v861
        %v2264 = vadd.f32 %v2261, 1e-05
        %v2265 = vadd.f32 %v2262, 1e-05
        %v2266 = vadd.f32 %v2263, 1e-05
        %v2267 = vrsqrt.pop %v2264
        %v2268 = vrsqrt.pop %v2265
        %v2269 = vrsqrt.pop %v2266
        %v2270 = vmul.f32 %v2246, %v2267
        %v2271 = vmul.f32 %v2247, %v2268
        %v2272 = vmul.f32 %v2248, %v2269
        %v2274 = vlaneseq
        %v2275 = vshrl.u32 %v2274, 7
        %v2276 = vsub.s32 0, %v2275
        %v2277 = vrot.slane %v2231, %v2276
        %v2279 = vmul.f32 %v2270, %v2277
        %v2280 = vmul.f32 %v2271, %v2277
        %v2281 = vmul.f32 %v2272, %v2277
        %v2283 = vlaneseq
        %v2284 = vshrl.u32 %v2283, 7
        %v2285 = vsub.s32 0, %v2284
        %v2286 = vrot.slane %v2233, %v2285
        %v2288 = vadd.f32 %v2279, %v2286
        %v2289 = vadd.f32 %v2280, %v2286
        %v2290 = vadd.f32 %v2281, %v2286
        %s2291 = scalar_lea.vmem %s6, 16
        %v2292 = vld [vmem:[%s2291] sm:$0xf]
        %v2293 = vld [vmem:[%s2291 + $0x4] sm:$0xf]
        %v2294 = vld [vmem:[%s2291 + $0x8] sm:$0xf]
        %v2295 = vld [vmem:[%s2291 + $0xc] sm:$0xf]
        %v2296 = vpack.c.bf16 %v2289, %v2288
        %v2297 = vpack.c.bf16 %v2290, %v2290
        %s2298 = scalar_lea.vmem %s7, 1
        %v2299 = vld [vmem:[%s2298] sm:$0x1]
        %v2301 = vlaneseq
        %v2302 = vshrl.u32 %v2301, 7
        %v2303 = vsub.s32 0, %v2302
        %v2304 = vrot.slane %v2299, %v2303
        %v2310 = vunpack.c.l.b16 %v2292
        %v2311 = vunpack.c.l.b16 %v2293
        %v2312 = vunpack.c.l.b16 %v2294
        %v2313 = vunpack.c.l.b16 %v2295
        %v2314 = vpack.c.b16 %v2311, %v2310
        %v2315 = vpack.c.b16 %v2313, %v2312
        %v2319 = vsel %vm851, %v2296, 0
        %v2322 = vsel %vm851, %v2297, 0
        %2324 = vmatprep.subr.bf16.mxu0 0
        %2325 = vmatpush1.bf16.msra.mxu0 %v2314
        %2326 = vmatprep.subr.bf16.mxu0 0
        %2327 = vmatpush1.bf16.msra.mxu0 %v2315
        %2328 = vmatprep.subr.bf16.mxu0 0
        %2329 = vmatpush1.bf16.msra.mxu0 0
        %2330 = vmatprep.subr.bf16.mxu0 0
        %2331 = vmatpush1.bf16.msra.mxu0 0
        %2332 = vmatprep.subr.bf16.mxu0 0
        %2333 = vmatpush1.bf16.msra.mxu0 0
        %2334 = vmatprep.subr.bf16.mxu0 0
        %2335 = vmatpush1.bf16.msra.mxu0 0
        %2336 = vmatprep.subr.bf16.mxu0 0
        %2337 = vmatpush1.bf16.msra.mxu0 0
        %2338 = vmatprep.subr.bf16.mxu0 0
        %2339 = vmatpush1.bf16.msra.mxu0 0
        %2340 = vmatprep.subr.bf16.mxu0 0
        %2341 = vmatpush1.bf16.msra.mxu0 0
        %2342 = vmatprep.subr.bf16.mxu0 0
        %2343 = vmatpush1.bf16.msra.mxu0 0
        %2344 = vmatprep.subr.bf16.mxu0 0
        %2345 = vmatpush1.bf16.msra.mxu0 0
        %2346 = vmatprep.subr.bf16.mxu0 0
        %2347 = vmatpush1.bf16.msra.mxu0 0
        %2348 = vmatprep.subr.bf16.mxu0 0
        %2349 = vmatpush1.bf16.msra.mxu0 0
        %2350 = vmatprep.subr.bf16.mxu0 0
        %2351 = vmatpush1.bf16.msra.mxu0 0
        %2352 = vmatprep.subr.bf16.mxu0 0
        %2353 = vmatpush1.bf16.msra.mxu0 0
        %2354 = vmatprep.subr.bf16.mxu0 0
        %2355 = vmatpush1.bf16.msra.mxu0 0
        %2356 = vmatprep.mubr.bf16.mxu0 0
        %2357 = vmatmul.mubr.bf16.gmra.mrb[0].mxu0 %v2319
        %v2358 = vpop.f32.mrb[0].mxu0
        %v2359 = vadd.f32 %v2304, %v2358
        %v2360 = vpop.f32.mrb[0].mxu0
        %v2361 = vpop.f32.mrb[0].mxu0
        %v2362 = vadd.f32 %v2304, %v2361
        %v2363 = vpop.f32.mrb[0].mxu0
        %2364 = vmatprep.mubr.bf16.mxu0 0
        %2365 = vmatmul.mubr.bf16.gmra.mrb[0].mxu0 %v2322
        %v2366 = vpop.f32.mrb[0].mxu0
        %v2367 = vadd.f32 %v2304, %v2366
        %v2368 = vpop.f32.mrb[0].mxu0
        %v2369 = vpop.f32.mrb[0].mxu0
        %v2370 = vpop.f32.mrb[0].mxu0
        %2371 = vdwg.mxu0
        %s2372 = scalar_lea.vmem %s8, 16
        %v2373 = vld [vmem:[%s2372] sm:$0xf]
        %v2374 = vld [vmem:[%s2372 + $0x4] sm:$0xf]
        %v2375 = vld [vmem:[%s2372 + $0x8] sm:$0xf]
        %v2376 = vld [vmem:[%s2372 + $0xc] sm:$0xf]
        %s2377 = scalar_lea.vmem %s9, 1
        %v2378 = vld [vmem:[%s2377] sm:$0x1]
        %v2379 = vpack.c.bf16 %v2362, %v2359
        %v2380 = vpack.c.bf16 %v2367, %v2367
        %2383 = vrot.lane.b32.xlu0 %v2379, 96
        %v2384 = vpop.permute.xlu0 %2383
        %2385 = vrot.lane.b32.xlu0 %v2380, 96
        %v2386 = vpop.permute.xlu0 %2385
        %v2388 = vsel %vm1002, %v2379, 0
        %v2391 = vsel %vm1002, %v2380, 0
        %v2394 = vsel %vm1002, %v2384, 0
        %v2397 = vsel %vm1002, %v2386, 0
        %2399 = vmatprep.subr.bf16.mxu0 0
        %2400 = vmatpush1.bf16.xpose.msra.mxu0 %v2394
        %2401 = vmatprep.subr.bf16.mxu0 0
        %2402 = vmatpush1.bf16.xpose.msra.mxu0 %v2397
        %2403 = vmatprep.subr.bf16.mxu0 0
        %2404 = vmatpush1.bf16.xpose.msra.mxu0 0
        %2405 = vmatprep.subr.bf16.mxu0 0
        %2406 = vmatpush1.bf16.xpose.msra.mxu0 0
        %2407 = vmatprep.subr.bf16.mxu0 0
        %2408 = vmatpush1.bf16.xpose.msra.mxu0 0
        %2409 = vmatprep.subr.bf16.mxu0 0
        %2410 = vmatpush1.bf16.xpose.msra.mxu0 0
        %2411 = vmatprep.subr.bf16.mxu0 0
        %2412 = vmatpush1.bf16.xpose.msra.mxu0 0
        %2413 = vmatprep.subr.bf16.mxu0 0
        %2414 = vmatpush1.bf16.xpose.msra.mxu0 0
        %2415 = vmatprep.subr.bf16.mxu0 0
        %2416 = vmatpush1.bf16.xpose.msra.mxu0 0
        %2417 = vmatprep.subr.bf16.mxu0 0
        %2418 = vmatpush1.bf16.xpose.msra.mxu0 0
        %2419 = vmatprep.subr.bf16.mxu0 0
        %2420 = vmatpush1.bf16.xpose.msra.mxu0 0
        %2421 = vmatprep.subr.bf16.mxu0 0
        %2422 = vmatpush1.bf16.xpose.msra.mxu0 0
        %2423 = vmatprep.subr.bf16.mxu0 0
        %2424 = vmatpush1.bf16.xpose.msra.mxu0 0
        %2425 = vmatprep.subr.bf16.mxu0 0
        %2426 = vmatpush1.bf16.xpose.msra.mxu0 0
        %2427 = vmatprep.subr.bf16.mxu0 0
        %2428 = vmatpush1.bf16.xpose.msra.mxu0 0
        %2429 = vmatprep.subr.bf16.mxu0 0
        %2430 = vmatpush1.bf16.xpose.msra.mxu0 0
        %2431 = vmatprep.mubr.bf16.mxu0 0
        %2432 = vmatmul.mubr.bf16.gmra.mrb[0].mxu0 %v2388
        %v2433 = vpop.f32.mrb[0].mxu0
        %v2434 = vadd.f32 0.0, %v2433
        %v2435 = vpop.f32.mrb[0].mxu0
        %v2436 = vpop.f32.mrb[0].mxu0
        %v2437 = vadd.f32 0.0, %v2436
        %v2438 = vpop.f32.mrb[0].mxu0
        %2439 = vmatprep.mubr.bf16.mxu0 0
        %2440 = vmatmul.mubr.bf16.gmra.mrb[0].mxu0 %v2391
        %v2441 = vpop.f32.mrb[0].mxu0
        %v2442 = vadd.f32 0.0, %v2441
        %v2443 = vpop.f32.mrb[0].mxu0
        %v2444 = vpop.f32.mrb[0].mxu0
        %v2445 = vpop.f32.mrb[0].mxu0
        %2446 = vdwg.mxu0
        %v2447 = vmul.f32 %v2434, 0.35355338
        %v2448 = vmul.f32 %v2437, 0.35355338
        %v2449 = vmul.f32 %v2442, 0.35355338
        %v2450 = vadd.f32 %v2447, %v846
        %v2451 = vadd.f32 %v2448, %v847
        %v2452 = vadd.f32 %v2449, %v848
        %v2453 = vsel %vm1069, %v2450, -inf
        %2454 = vmax.xlane.f32.xlu0 %v2453
        %v2455 = vpop.xlane.xlu0 %2454
        %v2456 = vsel %vm1069, %v2451, -inf
        %2457 = vmax.xlane.f32.xlu0 %v2456
        %v2458 = vpop.xlane.xlu0 %2457
        %v2459 = vsel %vm1069, %v2452, -inf
        %2460 = vmax.xlane.f32.xlu0 %v2459
        %v2461 = vpop.xlane.xlu0 %2460
        %v2462 = vsub.f32 %v2450, %v2455
        %v2463 = vsub.f32 %v2451, %v2458
        %v2464 = vsub.f32 %v2452, %v2461
        %v2465 = vmul.f32 %v2462, 1.442695
        %v2466 = vpow.pop %v2465
        %v2467 = vmul.f32 %v2463, 1.442695
        %v2468 = vpow.pop %v2467
        %v2469 = vmul.f32 %v2464, 1.442695
        %v2470 = vpow.pop %v2469
        %v2471 = vsel %vm1069, %v2466, 0.0
        %2472 = vadd.xlane.f32.xlu0 %v2471
        %v2473 = vpop.xlane.xlu0 %2472
        %v2474 = vsel %vm1069, %v2468, 0.0
        %2475 = vadd.xlane.f32.xlu0 %v2474
        %v2476 = vpop.xlane.xlu0 %2475
        %v2477 = vsel %vm1069, %v2470, 0.0
        %2478 = vadd.xlane.f32.xlu0 %v2477
        %v2479 = vpop.xlane.xlu0 %2478
        %v2480 = vrcp.pop %v2473
        %v2481 = vrcp.pop %v2476
        %v2482 = vrcp.pop %v2479
        %v2483 = vmul.f32 %v2466, %v2480
        %v2484 = vmul.f32 %v2468, %v2481
        %v2485 = vmul.f32 %v2470, %v2482
        %v2486 = vpack.c.bf16 %v2484, %v2483
        %v2487 = vpack.c.bf16 %v2485, %v2485
        %2488 = vrot.lane.b32.xlu0 %v2379, 64
        %v2489 = vpop.permute.xlu0 %2488
        %2490 = vrot.lane.b32.xlu0 %v2380, 64
        %v2491 = vpop.permute.xlu0 %2490
        %v2494 = vsel %vm1069, %v2486, 0
        %v2497 = vsel %vm1069, %v2487, 0
        %v2500 = vsel %vm1116, %v2491, 0
        %2502 = vmatprep.subr.bf16.mxu0 0
        %2503 = vmatpush1.bf16.msra.mxu0 %v2489
        %2504 = vmatprep.subr.bf16.mxu0 0
        %2505 = vmatpush1.bf16.msra.mxu0 %v2500
        %2506 = vmatprep.subr.bf16.mxu0 0
        %2507 = vmatpush1.bf16.msra.mxu0 0
        %2508 = vmatprep.subr.bf16.mxu0 0
        %2509 = vmatpush1.bf16.msra.mxu0 0
        %2510 = vmatprep.subr.bf16.mxu0 0
        %2511 = vmatpush1.bf16.msra.mxu0 0
        %2512 = vmatprep.subr.bf16.mxu0 0
        %2513 = vmatpush1.bf16.msra.mxu0 0
        %2514 = vmatprep.subr.bf16.mxu0 0
        %2515 = vmatpush1.bf16.msra.mxu0 0
        %2516 = vmatprep.subr.bf16.mxu0 0
        %2517 = vmatpush1.bf16.msra.mxu0 0
        %2518 = vmatprep.subr.bf16.mxu0 0
        %2519 = vmatpush1.bf16.msra.mxu0 0
        %2520 = vmatprep.subr.bf16.mxu0 0
        %2521 = vmatpush1.bf16.msra.mxu0 0
        %2522 = vmatprep.subr.bf16.mxu0 0
        %2523 = vmatpush1.bf16.msra.mxu0 0
        %2524 = vmatprep.subr.bf16.mxu0 0
        %2525 = vmatpush1.bf16.msra.mxu0 0
        %2526 = vmatprep.subr.bf16.mxu0 0
        %2527 = vmatpush1.bf16.msra.mxu0 0
        %2528 = vmatprep.subr.bf16.mxu0 0
        %2529 = vmatpush1.bf16.msra.mxu0 0
        %2530 = vmatprep.subr.bf16.mxu0 0
        %2531 = vmatpush1.bf16.msra.mxu0 0
        %2532 = vmatprep.subr.bf16.mxu0 0
        %2533 = vmatpush1.bf16.msra.mxu0 0
        %2534 = vmatprep.mubr.bf16.mxu0 0
        %2535 = vmatmul.mubr.bf16.gmra.mrb[0].mxu0 %v2494
        %v2536 = vpop.f32.mrb[0].mxu0
        %v2537 = vadd.f32 0.0, %v2536
        %v2538 = vpop.f32.mrb[0].mxu0
        %v2539 = vpop.f32.mrb[0].mxu0
        %v2540 = vadd.f32 0.0, %v2539
        %v2541 = vpop.f32.mrb[0].mxu0
        %2542 = vmatprep.mubr.bf16.mxu0 0
        %2543 = vmatmul.mubr.bf16.gmra.mrb[0].mxu0 %v2497
        %v2544 = vpop.f32.mrb[0].mxu0
        %v2545 = vadd.f32 0.0, %v2544
        %v2546 = vpop.f32.mrb[0].mxu0
        %v2547 = vpop.f32.mrb[0].mxu0
        %v2548 = vpop.f32.mrb[0].mxu0
        %2549 = vdwg.mxu0
        %v2550 = vpack.c.bf16 %v2540, %v2537
        %v2551 = vpack.c.bf16 %v2545, %v2545
        %v2553 = vsel %vm1002, %v2550, 0
        %v2556 = vsel %vm1002, %v2551, 0
        %v2559 = vsel %vm1116, %v2373, 0
        %2561 = vmatprep.subr.bf16.mxu0 0
        %2562 = vmatpush1.bf16.msra.mxu0 %v2559
        %2563 = vmatprep.subr.bf16.mxu0 0
        %2564 = vmatpush1.bf16.msra.mxu0 0
        %2565 = vmatprep.subr.bf16.mxu0 0
        %2566 = vmatpush1.bf16.msra.mxu0 0
        %2567 = vmatprep.subr.bf16.mxu0 0
        %2568 = vmatpush1.bf16.msra.mxu0 0
        %2569 = vmatprep.subr.bf16.mxu0 0
        %2570 = vmatpush1.bf16.msra.mxu0 0
        %2571 = vmatprep.subr.bf16.mxu0 0
        %2572 = vmatpush1.bf16.msra.mxu0 0
        %2573 = vmatprep.subr.bf16.mxu0 0
        %2574 = vmatpush1.bf16.msra.mxu0 0
        %2575 = vmatprep.subr.bf16.mxu0 0
        %2576 = vmatpush1.bf16.msra.mxu0 0
        %2577 = vmatprep.subr.bf16.mxu0 0
        %2578 = vmatpush1.bf16.msra.mxu0 0
        %2579 = vmatprep.subr.bf16.mxu0 0
        %2580 = vmatpush1.bf16.msra.mxu0 0
        %2581 = vmatprep.subr.bf16.mxu0 0
        %2582 = vmatpush1.bf16.msra.mxu0 0
        %2583 = vmatprep.subr.bf16.mxu0 0
        %2584 = vmatpush1.bf16.msra.mxu0 0
        %2585 = vmatprep.subr.bf16.mxu0 0
        %2586 = vmatpush1.bf16.msra.mxu0 0
        %2587 = vmatprep.subr.bf16.mxu0 0
        %2588 = vmatpush1.bf16.msra.mxu0 0
        %2589 = vmatprep.subr.bf16.mxu0 0
        %2590 = vmatpush1.bf16.msra.mxu0 0
        %2591 = vmatprep.subr.bf16.mxu0 0
        %2592 = vmatpush1.bf16.msra.mxu0 0
        %2593 = vmatprep.mubr.bf16.mxu0 0
        %2594 = vmatmul.mubr.bf16.gmra.mrb[0].mxu0 %v2553
        %v2595 = vpop.f32.mrb[0].mxu0
        %v2596 = vadd.f32 0.0, %v2595
        %v2597 = vpop.f32.mrb[0].mxu0
        %v2598 = vpop.f32.mrb[0].mxu0
        %v2599 = vadd.f32 0.0, %v2598
        %v2600 = vpop.f32.mrb[0].mxu0
        %2601 = vmatprep.mubr.bf16.mxu0 0
        %2602 = vmatmul.mubr.bf16.gmra.mrb[0].mxu0 %v2556
        %v2603 = vpop.f32.mrb[0].mxu0
        %v2604 = vadd.f32 0.0, %v2603
        %v2605 = vpop.f32.mrb[0].mxu0
        %v2606 = vpop.f32.mrb[0].mxu0
        %v2607 = vpop.f32.mrb[0].mxu0
        %2608 = vdwg.mxu0
        %v2610 = vlaneseq
        %v2611 = vshrl.u32 %v2610, 7
        %v2612 = vsub.s32 0, %v2611
        %v2613 = vrot.slane %v2378, %v2612
        %v2615 = vadd.f32 %v2613, %v2596
        %v2616 = vadd.f32 %v2613, %v2599
        %v2617 = vadd.f32 %v2613, %v2604
        %2618 = vrot.lane.b32.xlu0 %v2379, 120
        %v2619 = vpop.permute.xlu0 %2618
        %2620 = vrot.lane.b32.xlu0 %v2380, 120
        %v2621 = vpop.permute.xlu0 %2620
        %2622 = vrot.lane.b32.xlu0 %v2379, 88
        %v2623 = vpop.permute.xlu0 %2622
        %2624 = vrot.lane.b32.xlu0 %v2380, 88
        %v2625 = vpop.permute.xlu0 %2624
        %v2627 = vsel %vm1002, %v2619, 0
        %v2630 = vsel %vm1002, %v2621, 0
        %v2633 = vsel %vm1002, %v2623, 0
        %v2636 = vsel %vm1002, %v2625, 0
        %2638 = vmatprep.subr.bf16.mxu0 0
        %2639 = vmatpush1.bf16.xpose.msra.mxu0 %v2633
        %2640 = vmatprep.subr.bf16.mxu0 0
        %2641 = vmatpush1.bf16.xpose.msra.mxu0 %v2636
        %2642 = vmatprep.subr.bf16.mxu0 0
        %2643 = vmatpush1.bf16.xpose.msra.mxu0 0
        %2644 = vmatprep.subr.bf16.mxu0 0
        %2645 = vmatpush1.bf16.xpose.msra.mxu0 0
        %2646 = vmatprep.subr.bf16.mxu0 0
        %2647 = vmatpush1.bf16.xpose.msra.mxu0 0
        %2648 = vmatprep.subr.bf16.mxu0 0
        %2649 = vmatpush1.bf16.xpose.msra.mxu0 0
        %2650 = vmatprep.subr.bf16.mxu0 0
        %2651 = vmatpush1.bf16.xpose.msra.mxu0 0
        %2652 = vmatprep.subr.bf16.mxu0 0
        %2653 = vmatpush1.bf16.xpose.msra.mxu0 0
        %2654 = vmatprep.subr.bf16.mxu0 0
        %2655 = vmatpush1.bf16.xpose.msra.mxu0 0
        %2656 = vmatprep.subr.bf16.mxu0 0
        %2657 = vmatpush1.bf16.xpose.msra.mxu0 0
        %2658 = vmatprep.subr.bf16.mxu0 0
        %2659 = vmatpush1.bf16.xpose.msra.mxu0 0
        %2660 = vmatprep.subr.bf16.mxu0 0
        %2661 = vmatpush1.bf16.xpose.msra.mxu0 0
        %2662 = vmatprep.subr.bf16.mxu0 0
        %2663 = vmatpush1.bf16.xpose.msra.mxu0 0
        %2664 = vmatprep.subr.bf16.mxu0 0
        %2665 = vmatpush1.bf16.xpose.msra.mxu0 0
        %2666 = vmatprep.subr.bf16.mxu0 0
        %2667 = vmatpush1.bf16.xpose.msra.mxu0 0
        %2668 = vmatprep.subr.bf16.mxu0 0
        %2669 = vmatpush1.bf16.xpose.msra.mxu0 0
        %2670 = vmatprep.mubr.bf16.mxu0 0
        %2671 = vmatmul.mubr.bf16.gmra.mrb[0].mxu0 %v2627
        %v2672 = vpop.f32.mrb[0].mxu0
        %v2673 = vadd.f32 0.0, %v2672
        %v2674 = vpop.f32.mrb[0].mxu0
        %v2675 = vpop.f32.mrb[0].mxu0
        %v2676 = vadd.f32 0.0, %v2675
        %v2677 = vpop.f32.mrb[0].mxu0
        %2678 = vmatprep.mubr.bf16.mxu0 0
        %2679 = vmatmul.mubr.bf16.gmra.mrb[0].mxu0 %v2630
        %v2680 = vpop.f32.mrb[0].mxu0
        %v2681 = vadd.f32 0.0, %v2680
        %v2682 = vpop.f32.mrb[0].mxu0
        %v2683 = vpop.f32.mrb[0].mxu0
        %v2684 = vpop.f32.mrb[0].mxu0
        %2685 = vdwg.mxu0
        %v2686 = vmul.f32 %v2673, 0.35355338
        %v2687 = vmul.f32 %v2676, 0.35355338
        %v2688 = vmul.f32 %v2681, 0.35355338
        %v2689 = vadd.f32 %v2686, %v846
        %v2690 = vadd.f32 %v2687, %v847
        %v2691 = vadd.f32 %v2688, %v848
        %v2692 = vsel %vm1069, %v2689, -inf
        %2693 = vmax.xlane.f32.xlu0 %v2692
        %v2694 = vpop.xlane.xlu0 %2693
        %v2695 = vsel %vm1069, %v2690, -inf
        %2696 = vmax.xlane.f32.xlu0 %v2695
        %v2697 = vpop.xlane.xlu0 %2696
        %v2698 = vsel %vm1069, %v2691, -inf
        %2699 = vmax.xlane.f32.xlu0 %v2698
        %v2700 = vpop.xlane.xlu0 %2699
        %v2701 = vsub.f32 %v2689, %v2694
        %v2702 = vsub.f32 %v2690, %v2697
        %v2703 = vsub.f32 %v2691, %v2700
        %v2704 = vmul.f32 %v2701, 1.442695
        %v2705 = vpow.pop %v2704
        %v2706 = vmul.f32 %v2702, 1.442695
        %v2707 = vpow.pop %v2706
        %v2708 = vmul.f32 %v2703, 1.442695
        %v2709 = vpow.pop %v2708
        %v2710 = vsel %vm1069, %v2705, 0.0
        %2711 = vadd.xlane.f32.xlu0 %v2710
        %v2712 = vpop.xlane.xlu0 %2711
        %v2713 = vsel %vm1069, %v2707, 0.0
        %2714 = vadd.xlane.f32.xlu0 %v2713
        %v2715 = vpop.xlane.xlu0 %2714
        %v2716 = vsel %vm1069, %v2709, 0.0
        %2717 = vadd.xlane.f32.xlu0 %v2716
        %v2718 = vpop.xlane.xlu0 %2717
        %v2719 = vrcp.pop %v2712
        %v2720 = vrcp.pop %v2715
        %v2721 = vrcp.pop %v2718
        %v2722 = vmul.f32 %v2705, %v2719
        %v2723 = vmul.f32 %v2707, %v2720
        %v2724 = vmul.f32 %v2709, %v2721
        %v2725 = vpack.c.bf16 %v2723, %v2722
        %v2726 = vpack.c.bf16 %v2724, %v2724
        %2727 = vrot.lane.b32.xlu0 %v2379, 56
        %v2728 = vpop.permute.xlu0 %2727
        %2729 = vrot.lane.b32.xlu0 %v2380, 56
        %v2730 = vpop.permute.xlu0 %2729
        %v2733 = vsel %vm1069, %v2725, 0
        %v2736 = vsel %vm1069, %v2726, 0
        %v2739 = vsel %vm1116, %v2730, 0
        %2741 = vmatprep.subr.bf16.mxu0 0
        %2742 = vmatpush1.bf16.msra.mxu0 %v2728
        %2743 = vmatprep.subr.bf16.mxu0 0
        %2744 = vmatpush1.bf16.msra.mxu0 %v2739
        %2745 = vmatprep.subr.bf16.mxu0 0
        %2746 = vmatpush1.bf16.msra.mxu0 0
        %2747 = vmatprep.subr.bf16.mxu0 0
        %2748 = vmatpush1.bf16.msra.mxu0 0
        %2749 = vmatprep.subr.bf16.mxu0 0
        %2750 = vmatpush1.bf16.msra.mxu0 0
        %2751 = vmatprep.subr.bf16.mxu0 0
        %2752 = vmatpush1.bf16.msra.mxu0 0
        %2753 = vmatprep.subr.bf16.mxu0 0
        %2754 = vmatpush1.bf16.msra.mxu0 0
        %2755 = vmatprep.subr.bf16.mxu0 0
        %2756 = vmatpush1.bf16.msra.mxu0 0
        %2757 = vmatprep.subr.bf16.mxu0 0
        %2758 = vmatpush1.bf16.msra.mxu0 0
        %2759 = vmatprep.subr.bf16.mxu0 0
        %2760 = vmatpush1.bf16.msra.mxu0 0
        %2761 = vmatprep.subr.bf16.mxu0 0
        %2762 = vmatpush1.bf16.msra.mxu0 0
        %2763 = vmatprep.subr.bf16.mxu0 0
        %2764 = vmatpush1.bf16.msra.mxu0 0
        %2765 = vmatprep.subr.bf16.mxu0 0
        %2766 = vmatpush1.bf16.msra.mxu0 0
        %2767 = vmatprep.subr.bf16.mxu0 0
        %2768 = vmatpush1.bf16.msra.mxu0 0
        %2769 = vmatprep.subr.bf16.mxu0 0
        %2770 = vmatpush1.bf16.msra.mxu0 0
        %2771 = vmatprep.subr.bf16.mxu0 0
        %2772 = vmatpush1.bf16.msra.mxu0 0
        %2773 = vmatprep.mubr.bf16.mxu0 0
        %2774 = vmatmul.mubr.bf16.gmra.mrb[0].mxu0 %v2733
        %v2775 = vpop.f32.mrb[0].mxu0
        %v2776 = vadd.f32 0.0, %v2775
        %v2777 = vpop.f32.mrb[0].mxu0
        %v2778 = vpop.f32.mrb[0].mxu0
        %v2779 = vadd.f32 0.0, %v2778
        %v2780 = vpop.f32.mrb[0].mxu0
        %2781 = vmatprep.mubr.bf16.mxu0 0
        %2782 = vmatmul.mubr.bf16.gmra.mrb[0].mxu0 %v2736
        %v2783 = vpop.f32.mrb[0].mxu0
        %v2784 = vadd.f32 0.0, %v2783
        %v2785 = vpop.f32.mrb[0].mxu0
        %v2786 = vpop.f32.mrb[0].mxu0
        %v2787 = vpop.f32.mrb[0].mxu0
        %2788 = vdwg.mxu0
        %v2789 = vpack.c.bf16 %v2779, %v2776
        %v2790 = vpack.c.bf16 %v2784, %v2784
        %v2792 = vsel %vm1002, %v2789, 0
        %v2795 = vsel %vm1002, %v2790, 0
        %v2798 = vsel %vm1116, %v2374, 0
        %2800 = vmatprep.subr.bf16.mxu0 0
        %2801 = vmatpush1.bf16.msra.mxu0 %v2798
        %2802 = vmatprep.subr.bf16.mxu0 0
        %2803 = vmatpush1.bf16.msra.mxu0 0
        %2804 = vmatprep.subr.bf16.mxu0 0
        %2805 = vmatpush1.bf16.msra.mxu0 0
        %2806 = vmatprep.subr.bf16.mxu0 0
        %2807 = vmatpush1.bf16.msra.mxu0 0
        %2808 = vmatprep.subr.bf16.mxu0 0
        %2809 = vmatpush1.bf16.msra.mxu0 0
        %2810 = vmatprep.subr.bf16.mxu0 0
        %2811 = vmatpush1.bf16.msra.mxu0 0
        %2812 = vmatprep.subr.bf16.mxu0 0
        %2813 = vmatpush1.bf16.msra.mxu0 0
        %2814 = vmatprep.subr.bf16.mxu0 0
        %2815 = vmatpush1.bf16.msra.mxu0 0
        %2816 = vmatprep.subr.bf16.mxu0 0
        %2817 = vmatpush1.bf16.msra.mxu0 0
        %2818 = vmatprep.subr.bf16.mxu0 0
        %2819 = vmatpush1.bf16.msra.mxu0 0
        %2820 = vmatprep.subr.bf16.mxu0 0
        %2821 = vmatpush1.bf16.msra.mxu0 0
        %2822 = vmatprep.subr.bf16.mxu0 0
        %2823 = vmatpush1.bf16.msra.mxu0 0
        %2824 = vmatprep.subr.bf16.mxu0 0
        %2825 = vmatpush1.bf16.msra.mxu0 0
        %2826 = vmatprep.subr.bf16.mxu0 0
        %2827 = vmatpush1.bf16.msra.mxu0 0
        %2828 = vmatprep.subr.bf16.mxu0 0
        %2829 = vmatpush1.bf16.msra.mxu0 0
        %2830 = vmatprep.subr.bf16.mxu0 0
        %2831 = vmatpush1.bf16.msra.mxu0 0
        %2832 = vmatprep.mubr.bf16.mxu0 0
        %2833 = vmatmul.mubr.bf16.gmra.mrb[0].mxu0 %v2792
        %v2834 = vpop.f32.mrb[0].mxu0
        %v2835 = vadd.f32 0.0, %v2834
        %v2836 = vpop.f32.mrb[0].mxu0
        %v2837 = vpop.f32.mrb[0].mxu0
        %v2838 = vadd.f32 0.0, %v2837
        %v2839 = vpop.f32.mrb[0].mxu0
        %2840 = vmatprep.mubr.bf16.mxu0 0
        %2841 = vmatmul.mubr.bf16.gmra.mrb[0].mxu0 %v2795
        %v2842 = vpop.f32.mrb[0].mxu0
        %v2843 = vadd.f32 0.0, %v2842
        %v2844 = vpop.f32.mrb[0].mxu0
        %v2845 = vpop.f32.mrb[0].mxu0
        %v2846 = vpop.f32.mrb[0].mxu0
        %2847 = vdwg.mxu0
        %v2848 = vadd.f32 %v2615, %v2835
        %v2849 = vadd.f32 %v2616, %v2838
        %v2850 = vadd.f32 %v2617, %v2843
        %2851 = vrot.lane.b32.xlu0 %v2379, 112
        %v2852 = vpop.permute.xlu0 %2851
        %2853 = vrot.lane.b32.xlu0 %v2380, 112
        %v2854 = vpop.permute.xlu0 %2853
        %2855 = vrot.lane.b32.xlu0 %v2379, 80
        %v2856 = vpop.permute.xlu0 %2855
        %2857 = vrot.lane.b32.xlu0 %v2380, 80
        %v2858 = vpop.permute.xlu0 %2857
        %v2860 = vsel %vm1002, %v2852, 0
        %v2863 = vsel %vm1002, %v2854, 0
        %v2866 = vsel %vm1002, %v2856, 0
        %v2869 = vsel %vm1002, %v2858, 0
        %2871 = vmatprep.subr.bf16.mxu0 0
        %2872 = vmatpush1.bf16.xpose.msra.mxu0 %v2866
        %2873 = vmatprep.subr.bf16.mxu0 0
        %2874 = vmatpush1.bf16.xpose.msra.mxu0 %v2869
        %2875 = vmatprep.subr.bf16.mxu0 0
        %2876 = vmatpush1.bf16.xpose.msra.mxu0 0
        %2877 = vmatprep.subr.bf16.mxu0 0
        %2878 = vmatpush1.bf16.xpose.msra.mxu0 0
        %2879 = vmatprep.subr.bf16.mxu0 0
        %2880 = vmatpush1.bf16.xpose.msra.mxu0 0
        %2881 = vmatprep.subr.bf16.mxu0 0
        %2882 = vmatpush1.bf16.xpose.msra.mxu0 0
        %2883 = vmatprep.subr.bf16.mxu0 0
        %2884 = vmatpush1.bf16.xpose.msra.mxu0 0
        %2885 = vmatprep.subr.bf16.mxu0 0
        %2886 = vmatpush1.bf16.xpose.msra.mxu0 0
        %2887 = vmatprep.subr.bf16.mxu0 0
        %2888 = vmatpush1.bf16.xpose.msra.mxu0 0
        %2889 = vmatprep.subr.bf16.mxu0 0
        %2890 = vmatpush1.bf16.xpose.msra.mxu0 0
        %2891 = vmatprep.subr.bf16.mxu0 0
        %2892 = vmatpush1.bf16.xpose.msra.mxu0 0
        %2893 = vmatprep.subr.bf16.mxu0 0
        %2894 = vmatpush1.bf16.xpose.msra.mxu0 0
        %2895 = vmatprep.subr.bf16.mxu0 0
        %2896 = vmatpush1.bf16.xpose.msra.mxu0 0
        %2897 = vmatprep.subr.bf16.mxu0 0
        %2898 = vmatpush1.bf16.xpose.msra.mxu0 0
        %2899 = vmatprep.subr.bf16.mxu0 0
        %2900 = vmatpush1.bf16.xpose.msra.mxu0 0
        %2901 = vmatprep.subr.bf16.mxu0 0
        %2902 = vmatpush1.bf16.xpose.msra.mxu0 0
        %2903 = vmatprep.mubr.bf16.mxu0 0
        %2904 = vmatmul.mubr.bf16.gmra.mrb[0].mxu0 %v2860
        %v2905 = vpop.f32.mrb[0].mxu0
        %v2906 = vadd.f32 0.0, %v2905
        %v2907 = vpop.f32.mrb[0].mxu0
        %v2908 = vpop.f32.mrb[0].mxu0
        %v2909 = vadd.f32 0.0, %v2908
        %v2910 = vpop.f32.mrb[0].mxu0
        %2911 = vmatprep.mubr.bf16.mxu0 0
        %2912 = vmatmul.mubr.bf16.gmra.mrb[0].mxu0 %v2863
        %v2913 = vpop.f32.mrb[0].mxu0
        %v2914 = vadd.f32 0.0, %v2913
        %v2915 = vpop.f32.mrb[0].mxu0
        %v2916 = vpop.f32.mrb[0].mxu0
        %v2917 = vpop.f32.mrb[0].mxu0
        %2918 = vdwg.mxu0
        %v2919 = vmul.f32 %v2906, 0.35355338
        %v2920 = vmul.f32 %v2909, 0.35355338
        %v2921 = vmul.f32 %v2914, 0.35355338
        %v2922 = vadd.f32 %v2919, %v846
        %v2923 = vadd.f32 %v2920, %v847
        %v2924 = vadd.f32 %v2921, %v848
        %v2925 = vsel %vm1069, %v2922, -inf
        %2926 = vmax.xlane.f32.xlu0 %v2925
        %v2927 = vpop.xlane.xlu0 %2926
        %v2928 = vsel %vm1069, %v2923, -inf
        %2929 = vmax.xlane.f32.xlu0 %v2928
        %v2930 = vpop.xlane.xlu0 %2929
        %v2931 = vsel %vm1069, %v2924, -inf
        %2932 = vmax.xlane.f32.xlu0 %v2931
        %v2933 = vpop.xlane.xlu0 %2932
        %v2934 = vsub.f32 %v2922, %v2927
        %v2935 = vsub.f32 %v2923, %v2930
        %v2936 = vsub.f32 %v2924, %v2933
        %v2937 = vmul.f32 %v2934, 1.442695
        %v2938 = vpow.pop %v2937
        %v2939 = vmul.f32 %v2935, 1.442695
        %v2940 = vpow.pop %v2939
        %v2941 = vmul.f32 %v2936, 1.442695
        %v2942 = vpow.pop %v2941
        %v2943 = vsel %vm1069, %v2938, 0.0
        %2944 = vadd.xlane.f32.xlu0 %v2943
        %v2945 = vpop.xlane.xlu0 %2944
        %v2946 = vsel %vm1069, %v2940, 0.0
        %2947 = vadd.xlane.f32.xlu0 %v2946
        %v2948 = vpop.xlane.xlu0 %2947
        %v2949 = vsel %vm1069, %v2942, 0.0
        %2950 = vadd.xlane.f32.xlu0 %v2949
        %v2951 = vpop.xlane.xlu0 %2950
        %v2952 = vrcp.pop %v2945
        %v2953 = vrcp.pop %v2948
        %v2954 = vrcp.pop %v2951
        %v2955 = vmul.f32 %v2938, %v2952
        %v2956 = vmul.f32 %v2940, %v2953
        %v2957 = vmul.f32 %v2942, %v2954
        %v2958 = vpack.c.bf16 %v2956, %v2955
        %v2959 = vpack.c.bf16 %v2957, %v2957
        %2960 = vrot.lane.b32.xlu0 %v2379, 48
        %v2961 = vpop.permute.xlu0 %2960
        %2962 = vrot.lane.b32.xlu0 %v2380, 48
        %v2963 = vpop.permute.xlu0 %2962
        %v2966 = vsel %vm1069, %v2958, 0
        %v2969 = vsel %vm1069, %v2959, 0
        %v2972 = vsel %vm1116, %v2963, 0
        %2974 = vmatprep.subr.bf16.mxu0 0
        %2975 = vmatpush1.bf16.msra.mxu0 %v2961
        %2976 = vmatprep.subr.bf16.mxu0 0
        %2977 = vmatpush1.bf16.msra.mxu0 %v2972
        %2978 = vmatprep.subr.bf16.mxu0 0
        %2979 = vmatpush1.bf16.msra.mxu0 0
        %2980 = vmatprep.subr.bf16.mxu0 0
        %2981 = vmatpush1.bf16.msra.mxu0 0
        %2982 = vmatprep.subr.bf16.mxu0 0
        %2983 = vmatpush1.bf16.msra.mxu0 0
        %2984 = vmatprep.subr.bf16.mxu0 0
        %2985 = vmatpush1.bf16.msra.mxu0 0
        %2986 = vmatprep.subr.bf16.mxu0 0
        %2987 = vmatpush1.bf16.msra.mxu0 0
        %2988 = vmatprep.subr.bf16.mxu0 0
        %2989 = vmatpush1.bf16.msra.mxu0 0
        %2990 = vmatprep.subr.bf16.mxu0 0
        %2991 = vmatpush1.bf16.msra.mxu0 0
        %2992 = vmatprep.subr.bf16.mxu0 0
        %2993 = vmatpush1.bf16.msra.mxu0 0
        %2994 = vmatprep.subr.bf16.mxu0 0
        %2995 = vmatpush1.bf16.msra.mxu0 0
        %2996 = vmatprep.subr.bf16.mxu0 0
        %2997 = vmatpush1.bf16.msra.mxu0 0
        %2998 = vmatprep.subr.bf16.mxu0 0
        %2999 = vmatpush1.bf16.msra.mxu0 0
        %3000 = vmatprep.subr.bf16.mxu0 0
        %3001 = vmatpush1.bf16.msra.mxu0 0
        %3002 = vmatprep.subr.bf16.mxu0 0
        %3003 = vmatpush1.bf16.msra.mxu0 0
        %3004 = vmatprep.subr.bf16.mxu0 0
        %3005 = vmatpush1.bf16.msra.mxu0 0
        %3006 = vmatprep.mubr.bf16.mxu0 0
        %3007 = vmatmul.mubr.bf16.gmra.mrb[0].mxu0 %v2966
        %v3008 = vpop.f32.mrb[0].mxu0
        %v3009 = vadd.f32 0.0, %v3008
        %v3010 = vpop.f32.mrb[0].mxu0
        %v3011 = vpop.f32.mrb[0].mxu0
        %v3012 = vadd.f32 0.0, %v3011
        %v3013 = vpop.f32.mrb[0].mxu0
        %3014 = vmatprep.mubr.bf16.mxu0 0
        %3015 = vmatmul.mubr.bf16.gmra.mrb[0].mxu0 %v2969
        %v3016 = vpop.f32.mrb[0].mxu0
        %v3017 = vadd.f32 0.0, %v3016
        %v3018 = vpop.f32.mrb[0].mxu0
        %v3019 = vpop.f32.mrb[0].mxu0
        %v3020 = vpop.f32.mrb[0].mxu0
        %3021 = vdwg.mxu0
        %v3022 = vpack.c.bf16 %v3012, %v3009
        %v3023 = vpack.c.bf16 %v3017, %v3017
        %v3025 = vsel %vm1002, %v3022, 0
        %v3028 = vsel %vm1002, %v3023, 0
        %v3031 = vsel %vm1116, %v2375, 0
        %3033 = vmatprep.subr.bf16.mxu0 0
        %3034 = vmatpush1.bf16.msra.mxu0 %v3031
        %3035 = vmatprep.subr.bf16.mxu0 0
        %3036 = vmatpush1.bf16.msra.mxu0 0
        %3037 = vmatprep.subr.bf16.mxu0 0
        %3038 = vmatpush1.bf16.msra.mxu0 0
        %3039 = vmatprep.subr.bf16.mxu0 0
        %3040 = vmatpush1.bf16.msra.mxu0 0
        %3041 = vmatprep.subr.bf16.mxu0 0
        %3042 = vmatpush1.bf16.msra.mxu0 0
        %3043 = vmatprep.subr.bf16.mxu0 0
        %3044 = vmatpush1.bf16.msra.mxu0 0
        %3045 = vmatprep.subr.bf16.mxu0 0
        %3046 = vmatpush1.bf16.msra.mxu0 0
        %3047 = vmatprep.subr.bf16.mxu0 0
        %3048 = vmatpush1.bf16.msra.mxu0 0
        %3049 = vmatprep.subr.bf16.mxu0 0
        %3050 = vmatpush1.bf16.msra.mxu0 0
        %3051 = vmatprep.subr.bf16.mxu0 0
        %3052 = vmatpush1.bf16.msra.mxu0 0
        %3053 = vmatprep.subr.bf16.mxu0 0
        %3054 = vmatpush1.bf16.msra.mxu0 0
        %3055 = vmatprep.subr.bf16.mxu0 0
        %3056 = vmatpush1.bf16.msra.mxu0 0
        %3057 = vmatprep.subr.bf16.mxu0 0
        %3058 = vmatpush1.bf16.msra.mxu0 0
        %3059 = vmatprep.subr.bf16.mxu0 0
        %3060 = vmatpush1.bf16.msra.mxu0 0
        %3061 = vmatprep.subr.bf16.mxu0 0
        %3062 = vmatpush1.bf16.msra.mxu0 0
        %3063 = vmatprep.subr.bf16.mxu0 0
        %3064 = vmatpush1.bf16.msra.mxu0 0
        %3065 = vmatprep.mubr.bf16.mxu0 0
        %3066 = vmatmul.mubr.bf16.gmra.mrb[0].mxu0 %v3025
        %v3067 = vpop.f32.mrb[0].mxu0
        %v3068 = vadd.f32 0.0, %v3067
        %v3069 = vpop.f32.mrb[0].mxu0
        %v3070 = vpop.f32.mrb[0].mxu0
        %v3071 = vadd.f32 0.0, %v3070
        %v3072 = vpop.f32.mrb[0].mxu0
        %3073 = vmatprep.mubr.bf16.mxu0 0
        %3074 = vmatmul.mubr.bf16.gmra.mrb[0].mxu0 %v3028
        %v3075 = vpop.f32.mrb[0].mxu0
        %v3076 = vadd.f32 0.0, %v3075
        %v3077 = vpop.f32.mrb[0].mxu0
        %v3078 = vpop.f32.mrb[0].mxu0
        %v3079 = vpop.f32.mrb[0].mxu0
        %3080 = vdwg.mxu0
        %v3081 = vadd.f32 %v2848, %v3068
        %v3082 = vadd.f32 %v2849, %v3071
        %v3083 = vadd.f32 %v2850, %v3076
        %3084 = vrot.lane.b32.xlu0 %v2379, 104
        %v3085 = vpop.permute.xlu0 %3084
        %3086 = vrot.lane.b32.xlu0 %v2380, 104
        %v3087 = vpop.permute.xlu0 %3086
        %3088 = vrot.lane.b32.xlu0 %v2379, 72
        %v3089 = vpop.permute.xlu0 %3088
        %3090 = vrot.lane.b32.xlu0 %v2380, 72
        %v3091 = vpop.permute.xlu0 %3090
        %v3093 = vsel %vm1002, %v3085, 0
        %v3096 = vsel %vm1002, %v3087, 0
        %v3099 = vsel %vm1002, %v3089, 0
        %v3102 = vsel %vm1002, %v3091, 0
        %3104 = vmatprep.subr.bf16.mxu0 0
        %3105 = vmatpush1.bf16.xpose.msra.mxu0 %v3099
        %3106 = vmatprep.subr.bf16.mxu0 0
        %3107 = vmatpush1.bf16.xpose.msra.mxu0 %v3102
        %3108 = vmatprep.subr.bf16.mxu0 0
        %3109 = vmatpush1.bf16.xpose.msra.mxu0 0
        %3110 = vmatprep.subr.bf16.mxu0 0
        %3111 = vmatpush1.bf16.xpose.msra.mxu0 0
        %3112 = vmatprep.subr.bf16.mxu0 0
        %3113 = vmatpush1.bf16.xpose.msra.mxu0 0
        %3114 = vmatprep.subr.bf16.mxu0 0
        %3115 = vmatpush1.bf16.xpose.msra.mxu0 0
        %3116 = vmatprep.subr.bf16.mxu0 0
        %3117 = vmatpush1.bf16.xpose.msra.mxu0 0
        %3118 = vmatprep.subr.bf16.mxu0 0
        %3119 = vmatpush1.bf16.xpose.msra.mxu0 0
        %3120 = vmatprep.subr.bf16.mxu0 0
        %3121 = vmatpush1.bf16.xpose.msra.mxu0 0
        %3122 = vmatprep.subr.bf16.mxu0 0
        %3123 = vmatpush1.bf16.xpose.msra.mxu0 0
        %3124 = vmatprep.subr.bf16.mxu0 0
        %3125 = vmatpush1.bf16.xpose.msra.mxu0 0
        %3126 = vmatprep.subr.bf16.mxu0 0
        %3127 = vmatpush1.bf16.xpose.msra.mxu0 0
        %3128 = vmatprep.subr.bf16.mxu0 0
        %3129 = vmatpush1.bf16.xpose.msra.mxu0 0
        %3130 = vmatprep.subr.bf16.mxu0 0
        %3131 = vmatpush1.bf16.xpose.msra.mxu0 0
        %3132 = vmatprep.subr.bf16.mxu0 0
        %3133 = vmatpush1.bf16.xpose.msra.mxu0 0
        %3134 = vmatprep.subr.bf16.mxu0 0
        %3135 = vmatpush1.bf16.xpose.msra.mxu0 0
        %3136 = vmatprep.mubr.bf16.mxu0 0
        %3137 = vmatmul.mubr.bf16.gmra.mrb[0].mxu0 %v3093
        %v3138 = vpop.f32.mrb[0].mxu0
        %v3139 = vadd.f32 0.0, %v3138
        %v3140 = vpop.f32.mrb[0].mxu0
        %v3141 = vpop.f32.mrb[0].mxu0
        %v3142 = vadd.f32 0.0, %v3141
        %v3143 = vpop.f32.mrb[0].mxu0
        %3144 = vmatprep.mubr.bf16.mxu0 0
        %3145 = vmatmul.mubr.bf16.gmra.mrb[0].mxu0 %v3096
        %v3146 = vpop.f32.mrb[0].mxu0
        %v3147 = vadd.f32 0.0, %v3146
        %v3148 = vpop.f32.mrb[0].mxu0
        %v3149 = vpop.f32.mrb[0].mxu0
        %v3150 = vpop.f32.mrb[0].mxu0
        %3151 = vdwg.mxu0
        %v3152 = vmul.f32 %v3139, 0.35355338
        %v3153 = vmul.f32 %v3142, 0.35355338
        %v3154 = vmul.f32 %v3147, 0.35355338
        %v3155 = vadd.f32 %v3152, %v846
        %v3156 = vadd.f32 %v3153, %v847
        %v3157 = vadd.f32 %v3154, %v848
        %v3158 = vsel %vm1069, %v3155, -inf
        %3159 = vmax.xlane.f32.xlu0 %v3158
        %v3160 = vpop.xlane.xlu0 %3159
        %v3161 = vsel %vm1069, %v3156, -inf
        %3162 = vmax.xlane.f32.xlu0 %v3161
        %v3163 = vpop.xlane.xlu0 %3162
        %v3164 = vsel %vm1069, %v3157, -inf
        %3165 = vmax.xlane.f32.xlu0 %v3164
        %v3166 = vpop.xlane.xlu0 %3165
        %v3167 = vsub.f32 %v3155, %v3160
        %v3168 = vsub.f32 %v3156, %v3163
        %v3169 = vsub.f32 %v3157, %v3166
        %v3170 = vmul.f32 %v3167, 1.442695
        %v3171 = vpow.pop %v3170
        %v3172 = vmul.f32 %v3168, 1.442695
        %v3173 = vpow.pop %v3172
        %v3174 = vmul.f32 %v3169, 1.442695
        %v3175 = vpow.pop %v3174
        %v3176 = vsel %vm1069, %v3171, 0.0
        %3177 = vadd.xlane.f32.xlu0 %v3176
        %v3178 = vpop.xlane.xlu0 %3177
        %v3179 = vsel %vm1069, %v3173, 0.0
        %3180 = vadd.xlane.f32.xlu0 %v3179
        %v3181 = vpop.xlane.xlu0 %3180
        %v3182 = vsel %vm1069, %v3175, 0.0
        %3183 = vadd.xlane.f32.xlu0 %v3182
        %v3184 = vpop.xlane.xlu0 %3183
        %v3185 = vrcp.pop %v3178
        %v3186 = vrcp.pop %v3181
        %v3187 = vrcp.pop %v3184
        %v3188 = vmul.f32 %v3171, %v3185
        %v3189 = vmul.f32 %v3173, %v3186
        %v3190 = vmul.f32 %v3175, %v3187
        %v3191 = vpack.c.bf16 %v3189, %v3188
        %v3192 = vpack.c.bf16 %v3190, %v3190
        %3193 = vrot.lane.b32.xlu0 %v2379, 40
        %v3194 = vpop.permute.xlu0 %3193
        %3195 = vrot.lane.b32.xlu0 %v2380, 40
        %v3196 = vpop.permute.xlu0 %3195
        %v3199 = vsel %vm1069, %v3191, 0
        %v3202 = vsel %vm1069, %v3192, 0
        %v3205 = vsel %vm1116, %v3196, 0
        %3207 = vmatprep.subr.bf16.mxu0 0
        %3208 = vmatpush1.bf16.msra.mxu0 %v3194
        %3209 = vmatprep.subr.bf16.mxu0 0
        %3210 = vmatpush1.bf16.msra.mxu0 %v3205
        %3211 = vmatprep.subr.bf16.mxu0 0
        %3212 = vmatpush1.bf16.msra.mxu0 0
        %3213 = vmatprep.subr.bf16.mxu0 0
        %3214 = vmatpush1.bf16.msra.mxu0 0
        %3215 = vmatprep.subr.bf16.mxu0 0
        %3216 = vmatpush1.bf16.msra.mxu0 0
        %3217 = vmatprep.subr.bf16.mxu0 0
        %3218 = vmatpush1.bf16.msra.mxu0 0
        %3219 = vmatprep.subr.bf16.mxu0 0
        %3220 = vmatpush1.bf16.msra.mxu0 0
        %3221 = vmatprep.subr.bf16.mxu0 0
        %3222 = vmatpush1.bf16.msra.mxu0 0
        %3223 = vmatprep.subr.bf16.mxu0 0
        %3224 = vmatpush1.bf16.msra.mxu0 0
        %3225 = vmatprep.subr.bf16.mxu0 0
        %3226 = vmatpush1.bf16.msra.mxu0 0
        %3227 = vmatprep.subr.bf16.mxu0 0
        %3228 = vmatpush1.bf16.msra.mxu0 0
        %3229 = vmatprep.subr.bf16.mxu0 0
        %3230 = vmatpush1.bf16.msra.mxu0 0
        %3231 = vmatprep.subr.bf16.mxu0 0
        %3232 = vmatpush1.bf16.msra.mxu0 0
        %3233 = vmatprep.subr.bf16.mxu0 0
        %3234 = vmatpush1.bf16.msra.mxu0 0
        %3235 = vmatprep.subr.bf16.mxu0 0
        %3236 = vmatpush1.bf16.msra.mxu0 0
        %3237 = vmatprep.subr.bf16.mxu0 0
        %3238 = vmatpush1.bf16.msra.mxu0 0
        %3239 = vmatprep.mubr.bf16.mxu0 0
        %3240 = vmatmul.mubr.bf16.gmra.mrb[0].mxu0 %v3199
        %v3241 = vpop.f32.mrb[0].mxu0
        %v3242 = vadd.f32 0.0, %v3241
        %v3243 = vpop.f32.mrb[0].mxu0
        %v3244 = vpop.f32.mrb[0].mxu0
        %v3245 = vadd.f32 0.0, %v3244
        %v3246 = vpop.f32.mrb[0].mxu0
        %3247 = vmatprep.mubr.bf16.mxu0 0
        %3248 = vmatmul.mubr.bf16.gmra.mrb[0].mxu0 %v3202
        %v3249 = vpop.f32.mrb[0].mxu0
        %v3250 = vadd.f32 0.0, %v3249
        %v3251 = vpop.f32.mrb[0].mxu0
        %v3252 = vpop.f32.mrb[0].mxu0
        %v3253 = vpop.f32.mrb[0].mxu0
        %3254 = vdwg.mxu0
        %v3255 = vpack.c.bf16 %v3245, %v3242
        %v3256 = vpack.c.bf16 %v3250, %v3250
        %v3258 = vsel %vm1002, %v3255, 0
        %v3261 = vsel %vm1002, %v3256, 0
        %v3264 = vsel %vm1116, %v2376, 0
        %3266 = vmatprep.subr.bf16.mxu0 0
        %3267 = vmatpush1.bf16.msra.mxu0 %v3264
        %3268 = vmatprep.subr.bf16.mxu0 0
        %3269 = vmatpush1.bf16.msra.mxu0 0
        %3270 = vmatprep.subr.bf16.mxu0 0
        %3271 = vmatpush1.bf16.msra.mxu0 0
        %3272 = vmatprep.subr.bf16.mxu0 0
        %3273 = vmatpush1.bf16.msra.mxu0 0
        %3274 = vmatprep.subr.bf16.mxu0 0
        %3275 = vmatpush1.bf16.msra.mxu0 0
        %3276 = vmatprep.subr.bf16.mxu0 0
        %3277 = vmatpush1.bf16.msra.mxu0 0
        %3278 = vmatprep.subr.bf16.mxu0 0
        %3279 = vmatpush1.bf16.msra.mxu0 0
        %3280 = vmatprep.subr.bf16.mxu0 0
        %3281 = vmatpush1.bf16.msra.mxu0 0
        %3282 = vmatprep.subr.bf16.mxu0 0
        %3283 = vmatpush1.bf16.msra.mxu0 0
        %3284 = vmatprep.subr.bf16.mxu0 0
        %3285 = vmatpush1.bf16.msra.mxu0 0
        %3286 = vmatprep.subr.bf16.mxu0 0
        %3287 = vmatpush1.bf16.msra.mxu0 0
        %3288 = vmatprep.subr.bf16.mxu0 0
        %3289 = vmatpush1.bf16.msra.mxu0 0
        %3290 = vmatprep.subr.bf16.mxu0 0
        %3291 = vmatpush1.bf16.msra.mxu0 0
        %3292 = vmatprep.subr.bf16.mxu0 0
        %3293 = vmatpush1.bf16.msra.mxu0 0
        %3294 = vmatprep.subr.bf16.mxu0 0
        %3295 = vmatpush1.bf16.msra.mxu0 0
        %3296 = vmatprep.subr.bf16.mxu0 0
        %3297 = vmatpush1.bf16.msra.mxu0 0
        %3298 = vmatprep.mubr.bf16.mxu0 0
        %3299 = vmatmul.mubr.bf16.gmra.mrb[0].mxu0 %v3258
        %v3300 = vpop.f32.mrb[0].mxu0
        %v3301 = vadd.f32 0.0, %v3300
        %v3302 = vpop.f32.mrb[0].mxu0
        %v3303 = vpop.f32.mrb[0].mxu0
        %v3304 = vadd.f32 0.0, %v3303
        %v3305 = vpop.f32.mrb[0].mxu0
        %3306 = vmatprep.mubr.bf16.mxu0 0
        %3307 = vmatmul.mubr.bf16.gmra.mrb[0].mxu0 %v3261
        %v3308 = vpop.f32.mrb[0].mxu0
        %v3309 = vadd.f32 0.0, %v3308
        %v3310 = vpop.f32.mrb[0].mxu0
        %v3311 = vpop.f32.mrb[0].mxu0
        %v3312 = vpop.f32.mrb[0].mxu0
        %3313 = vdwg.mxu0
        %v3314 = vadd.f32 %v3081, %v3301
        %v3315 = vadd.f32 %v3082, %v3304
        %v3316 = vadd.f32 %v3083, %v3309
        %v3317 = vadd.f32 %v2227, %v3314
        %v3318 = vadd.f32 %v2228, %v3315
        %v3319 = vadd.f32 %v2229, %v3316
        %s3320 = scalar_lea.vmem %s10, 1
        %v3321 = vld [vmem:[%s3320] sm:$0x1]
        %s3322 = scalar_lea.vmem %s11, 1
        %v3323 = vld [vmem:[%s3322] sm:$0x1]
        %v3324 = vsel %vm851, %v3317, 0.0
        %3325 = vadd.xlane.f32.xlu0 %v3324
        %v3326 = vpop.xlane.xlu0 %3325
        %v3327 = vsel %vm851, %v3318, 0.0
        %3328 = vadd.xlane.f32.xlu0 %v3327
        %v3329 = vpop.xlane.xlu0 %3328
        %v3330 = vsel %vm851, %v3319, 0.0
        %3331 = vadd.xlane.f32.xlu0 %v3330
        %v3332 = vpop.xlane.xlu0 %3331
        %v3333 = vmul.f32 %v3326, %v861
        %v3334 = vmul.f32 %v3329, %v861
        %v3335 = vmul.f32 %v3332, %v861
        %v3336 = vsub.f32 %v3317, %v3333
        %v3337 = vsub.f32 %v3318, %v3334
        %v3338 = vsub.f32 %v3319, %v3335
        %v3339 = vmul.f32 %v3336, %v3336
        %v3340 = vmul.f32 %v3337, %v3337
        %v3341 = vmul.f32 %v3338, %v3338
        %v3342 = vsel %vm851, %v3339, 0.0
        %3343 = vadd.xlane.f32.xlu0 %v3342
        %v3344 = vpop.xlane.xlu0 %3343
        %v3345 = vsel %vm851, %v3340, 0.0
        %3346 = vadd.xlane.f32.xlu0 %v3345
        %v3347 = vpop.xlane.xlu0 %3346
        %v3348 = vsel %vm851, %v3341, 0.0
        %3349 = vadd.xlane.f32.xlu0 %v3348
        %v3350 = vpop.xlane.xlu0 %3349
        %v3351 = vmul.f32 %v3344, %v861
        %v3352 = vmul.f32 %v3347, %v861
        %v3353 = vmul.f32 %v3350, %v861
        %v3354 = vadd.f32 %v3351, 1e-05
        %v3355 = vadd.f32 %v3352, 1e-05
        %v3356 = vadd.f32 %v3353, 1e-05
        %v3357 = vrsqrt.pop %v3354
        %v3358 = vrsqrt.pop %v3355
        %v3359 = vrsqrt.pop %v3356
        %v3360 = vmul.f32 %v3336, %v3357
        %v3361 = vmul.f32 %v3337, %v3358
        %v3362 = vmul.f32 %v3338, %v3359
        %v3364 = vlaneseq
        %v3365 = vshrl.u32 %v3364, 7
        %v3366 = vsub.s32 0, %v3365
        %v3367 = vrot.slane %v3321, %v3366
        %v3369 = vmul.f32 %v3360, %v3367
        %v3370 = vmul.f32 %v3361, %v3367
        %v3371 = vmul.f32 %v3362, %v3367
        %v3373 = vlaneseq
        %v3374 = vshrl.u32 %v3373, 7
        %v3375 = vsub.s32 0, %v3374
        %v3376 = vrot.slane %v3323, %v3375
        %v3378 = vadd.f32 %v3369, %v3376
        %v3379 = vadd.f32 %v3370, %v3376
        %v3380 = vadd.f32 %v3371, %v3376
        %s3381 = scalar_lea.vmem %s12, 16
        %v3382 = vld [vmem:[%s3381] sm:$0xf]
        %v3383 = vld [vmem:[%s3381 + $0x4] sm:$0xf]
        %v3384 = vld [vmem:[%s3381 + $0x8] sm:$0xf]
        %v3385 = vld [vmem:[%s3381 + $0xc] sm:$0xf]
        %v3386 = vpack.c.bf16 %v3379, %v3378
        %v3387 = vpack.c.bf16 %v3380, %v3380
        %s3388 = scalar_lea.vmem %s13, 1
        %v3389 = vld [vmem:[%s3388] sm:$0x1]
        %v3391 = vlaneseq
        %v3392 = vshrl.u32 %v3391, 7
        %v3393 = vsub.s32 0, %v3392
        %v3394 = vrot.slane %v3389, %v3393
        %v3400 = vunpack.c.l.b16 %v3382
        %v3401 = vunpack.c.l.b16 %v3383
        %v3402 = vunpack.c.l.b16 %v3384
        %v3403 = vunpack.c.l.b16 %v3385
        %v3404 = vpack.c.b16 %v3401, %v3400
        %v3405 = vpack.c.b16 %v3403, %v3402
        %v3409 = vsel %vm851, %v3386, 0
        %v3412 = vsel %vm851, %v3387, 0
        %3414 = vmatprep.subr.bf16.mxu0 0
        %3415 = vmatpush1.bf16.msra.mxu0 %v3404
        %3416 = vmatprep.subr.bf16.mxu0 0
        %3417 = vmatpush1.bf16.msra.mxu0 %v3405
        %3418 = vmatprep.subr.bf16.mxu0 0
        %3419 = vmatpush1.bf16.msra.mxu0 0
        %3420 = vmatprep.subr.bf16.mxu0 0
        %3421 = vmatpush1.bf16.msra.mxu0 0
        %3422 = vmatprep.subr.bf16.mxu0 0
        %3423 = vmatpush1.bf16.msra.mxu0 0
        %3424 = vmatprep.subr.bf16.mxu0 0
        %3425 = vmatpush1.bf16.msra.mxu0 0
        %3426 = vmatprep.subr.bf16.mxu0 0
        %3427 = vmatpush1.bf16.msra.mxu0 0
        %3428 = vmatprep.subr.bf16.mxu0 0
        %3429 = vmatpush1.bf16.msra.mxu0 0
        %3430 = vmatprep.subr.bf16.mxu0 0
        %3431 = vmatpush1.bf16.msra.mxu0 0
        %3432 = vmatprep.subr.bf16.mxu0 0
        %3433 = vmatpush1.bf16.msra.mxu0 0
        %3434 = vmatprep.subr.bf16.mxu0 0
        %3435 = vmatpush1.bf16.msra.mxu0 0
        %3436 = vmatprep.subr.bf16.mxu0 0
        %3437 = vmatpush1.bf16.msra.mxu0 0
        %3438 = vmatprep.subr.bf16.mxu0 0
        %3439 = vmatpush1.bf16.msra.mxu0 0
        %3440 = vmatprep.subr.bf16.mxu0 0
        %3441 = vmatpush1.bf16.msra.mxu0 0
        %3442 = vmatprep.subr.bf16.mxu0 0
        %3443 = vmatpush1.bf16.msra.mxu0 0
        %3444 = vmatprep.subr.bf16.mxu0 0
        %3445 = vmatpush1.bf16.msra.mxu0 0
        %3446 = vmatprep.mubr.bf16.mxu0 0
        %3447 = vmatmul.mubr.bf16.gmra.mrb[0].mxu0 %v3409
        %v3448 = vpop.f32.mrb[0].mxu0
        %v3449 = vadd.f32 %v3394, %v3448
        %v3450 = vpop.f32.mrb[0].mxu0
        %v3451 = vpop.f32.mrb[0].mxu0
        %v3452 = vadd.f32 %v3394, %v3451
        %v3453 = vpop.f32.mrb[0].mxu0
        %3454 = vmatprep.mubr.bf16.mxu0 0
        %3455 = vmatmul.mubr.bf16.gmra.mrb[0].mxu0 %v3412
        %v3456 = vpop.f32.mrb[0].mxu0
        %v3457 = vadd.f32 %v3394, %v3456
        %v3458 = vpop.f32.mrb[0].mxu0
        %v3459 = vpop.f32.mrb[0].mxu0
        %v3460 = vpop.f32.mrb[0].mxu0
        %3461 = vdwg.mxu0
        %v3462 = vmul.f32 %v3449, 0.5
        %v3463 = vmul.f32 %v3452, 0.5
        %v3464 = vmul.f32 %v3457, 0.5
        %v3465 = vmul.f32 %v3449, 0.044715
        %v3466 = vmul.f32 %v3452, 0.044715
        %v3467 = vmul.f32 %v3457, 0.044715
        %v3468 = vmul.f32 %v3465, %v3449
        %v3469 = vmul.f32 %v3466, %v3452
        %v3470 = vmul.f32 %v3467, %v3457
        %v3471 = vmul.f32 %v3468, %v3449
        %v3472 = vmul.f32 %v3469, %v3452
        %v3473 = vmul.f32 %v3470, %v3457
        %v3474 = vadd.f32 %v3449, %v3471
        %v3475 = vadd.f32 %v3452, %v3472
        %v3476 = vadd.f32 %v3457, %v3473
        %v3477 = vmul.f32 %v3474, 0.7978846
        %v3478 = vmul.f32 %v3475, 0.7978846
        %v3479 = vmul.f32 %v3476, 0.7978846
        %v3480 = vtanh.pop %v3477
        %v3481 = vtanh.pop %v3478
        %v3482 = vtanh.pop %v3479
        %v3483 = vadd.f32 %v3480, 1.0
        %v3484 = vadd.f32 %v3481, 1.0
        %v3485 = vadd.f32 %v3482, 1.0
        %v3486 = vmul.f32 %v3462, %v3483
        %v3487 = vmul.f32 %v3463, %v3484
        %v3488 = vmul.f32 %v3464, %v3485
        %s3489 = scalar_lea.vmem %s14, 64
        %v3490 = vld [vmem:[%s3489] sm:$0xf]
        %v3491 = vld [vmem:[%s3489 + $0x4] sm:$0xf]
        %v3492 = vld [vmem:[%s3489 + $0x8] sm:$0xf]
        %v3493 = vld [vmem:[%s3489 + $0xc] sm:$0xf]
        %v3494 = vld [vmem:[%s3489 + $0x10] sm:$0xf]
        %v3495 = vld [vmem:[%s3489 + $0x14] sm:$0xf]
        %v3496 = vld [vmem:[%s3489 + $0x18] sm:$0xf]
        %v3497 = vld [vmem:[%s3489 + $0x1c] sm:$0xf]
        %v3498 = vld [vmem:[%s3489 + $0x20] sm:$0xf]
        %v3499 = vld [vmem:[%s3489 + $0x24] sm:$0xf]
        %v3500 = vld [vmem:[%s3489 + $0x28] sm:$0xf]
        %v3501 = vld [vmem:[%s3489 + $0x2c] sm:$0xf]
        %v3502 = vld [vmem:[%s3489 + $0x30] sm:$0xf]
        %v3503 = vld [vmem:[%s3489 + $0x34] sm:$0xf]
        %v3504 = vld [vmem:[%s3489 + $0x38] sm:$0xf]
        %v3505 = vld [vmem:[%s3489 + $0x3c] sm:$0xf]
        %v3506 = vpack.c.bf16 %v3487, %v3486
        %v3507 = vpack.c.bf16 %v3488, %v3488
        %v3524 = vunpack.c.l.b16 %v3490
        %v3525 = vunpack.c.l.b16 %v3491
        %v3526 = vunpack.c.l.b16 %v3492
        %v3527 = vunpack.c.l.b16 %v3493
        %v3528 = vunpack.c.l.b16 %v3494
        %v3529 = vunpack.c.l.b16 %v3495
        %v3530 = vunpack.c.l.b16 %v3496
        %v3531 = vunpack.c.l.b16 %v3497
        %v3532 = vunpack.c.l.b16 %v3498
        %v3533 = vunpack.c.l.b16 %v3499
        %v3534 = vunpack.c.l.b16 %v3500
        %v3535 = vunpack.c.l.b16 %v3501
        %v3536 = vunpack.c.l.b16 %v3502
        %v3537 = vunpack.c.l.b16 %v3503
        %v3538 = vunpack.c.l.b16 %v3504
        %v3539 = vunpack.c.l.b16 %v3505
        %v3540 = vpack.c.b16 %v3525, %v3524
        %v3541 = vpack.c.b16 %v3527, %v3526
        %v3542 = vpack.c.b16 %v3529, %v3528
        %v3543 = vpack.c.b16 %v3531, %v3530
        %v3544 = vpack.c.b16 %v3533, %v3532
        %v3545 = vpack.c.b16 %v3535, %v3534
        %v3546 = vpack.c.b16 %v3537, %v3536
        %v3547 = vpack.c.b16 %v3539, %v3538
        %3556 = vmatprep.subr.bf16.mxu0 0
        %3557 = vmatpush1.bf16.msra.mxu0 %v3540
        %3558 = vmatprep.subr.bf16.mxu0 0
        %3559 = vmatpush1.bf16.msra.mxu0 %v3541
        %3560 = vmatprep.subr.bf16.mxu0 0
        %3561 = vmatpush1.bf16.msra.mxu0 %v3542
        %3562 = vmatprep.subr.bf16.mxu0 0
        %3563 = vmatpush1.bf16.msra.mxu0 %v3543
        %3564 = vmatprep.subr.bf16.mxu0 0
        %3565 = vmatpush1.bf16.msra.mxu0 %v3544
        %3566 = vmatprep.subr.bf16.mxu0 0
        %3567 = vmatpush1.bf16.msra.mxu0 %v3545
        %3568 = vmatprep.subr.bf16.mxu0 0
        %3569 = vmatpush1.bf16.msra.mxu0 %v3546
        %3570 = vmatprep.subr.bf16.mxu0 0
        %3571 = vmatpush1.bf16.msra.mxu0 %v3547
        %3572 = vmatprep.subr.bf16.mxu0 0
        %3573 = vmatpush1.bf16.msra.mxu0 0
        %3574 = vmatprep.subr.bf16.mxu0 0
        %3575 = vmatpush1.bf16.msra.mxu0 0
        %3576 = vmatprep.subr.bf16.mxu0 0
        %3577 = vmatpush1.bf16.msra.mxu0 0
        %3578 = vmatprep.subr.bf16.mxu0 0
        %3579 = vmatpush1.bf16.msra.mxu0 0
        %3580 = vmatprep.subr.bf16.mxu0 0
        %3581 = vmatpush1.bf16.msra.mxu0 0
        %3582 = vmatprep.subr.bf16.mxu0 0
        %3583 = vmatpush1.bf16.msra.mxu0 0
        %3584 = vmatprep.subr.bf16.mxu0 0
        %3585 = vmatpush1.bf16.msra.mxu0 0
        %3586 = vmatprep.subr.bf16.mxu0 0
        %3587 = vmatpush1.bf16.msra.mxu0 0
        %3588 = vmatprep.mubr.bf16.mxu0 0
        %3589 = vmatmul.mubr.bf16.gmra.mrb[0].mxu0 %v3506
        %v3590 = vpop.f32.mrb[0].mxu0
        %v3591 = vpop.f32.mrb[0].mxu0
        %v3592 = vpop.f32.mrb[0].mxu0
        %v3593 = vpop.f32.mrb[0].mxu0
        %3594 = vmatprep.mubr.bf16.mxu0 0
        %3595 = vmatmul.mubr.bf16.gmra.mrb[0].mxu0 %v3507
        %v3596 = vpop.f32.mrb[0].mxu0
        %v3597 = vadd.f32 0.0, %v3596
        %v3598 = vpop.f32.mrb[0].mxu0
        %v3599 = vpop.f32.mrb[0].mxu0
        %v3600 = vpop.f32.mrb[0].mxu0
        %3601 = vdwg.mxu0
        %v3602 = vadd.f32 %v3319, %v3597
        %s3603 = scalar_lea.vmem %s15, 1
        %v3604 = vld [vmem:[%s3603] sm:$0x1]
        %v3606 = vlaneseq
        %v3607 = vshrl.u32 %v3606, 7
        %v3608 = vsub.s32 0, %v3607
        %v3609 = vrot.slane %v3604, %v3608
        %v3611 = vadd.f32 %v3602, %v3609
        %v3612 = vld [vmem:[%s16] sm:$0x1]
        %v3613 = vld [vmem:[%s17] sm:$0x1]
        %v3614 = vsel %vm851, %v3611, 0.0
        %3615 = vadd.xlane.f32.xlu0 %v3614
        %v3616 = vpop.xlane.xlu0 %3615
        %v3617 = vmul.f32 %v3616, %v861
        %v3618 = vsub.f32 %v3611, %v3617
        %v3619 = vmul.f32 %v3618, %v3618
        %v3620 = vsel %vm851, %v3619, 0.0
        %3621 = vadd.xlane.f32.xlu0 %v3620
        %v3622 = vpop.xlane.xlu0 %3621
        %v3623 = vmul.f32 %v3622, %v861
        %v3624 = vadd.f32 %v3623, 1e-05
        %v3625 = vrsqrt.pop %v3624
        %v3626 = vmul.f32 %v3618, %v3625
        %v3628 = vlaneseq
        %v3629 = vshrl.u32 %v3628, 7
        %v3630 = vsub.s32 0, %v3629
        %v3631 = vrot.slane %v3612, %v3630
        %v3633 = vmul.f32 %v3626, %v3631
        %v3635 = vlaneseq
        %v3636 = vshrl.u32 %v3635, 7
        %v3637 = vsub.s32 0, %v3636
        %v3638 = vrot.slane %v3613, %v3637
        %v3640 = vadd.f32 %v3633, %v3638
        %v3641 = vld [vmem:[%s18] sm:$0xf]
        %v3642 = vld [vmem:[%s18 + $0x4] sm:$0xf]
        %v3643 = vld [vmem:[%s18 + $0x8] sm:$0xf]
        %v3644 = vld [vmem:[%s18 + $0xc] sm:$0xf]
        %v3645 = vpack.c.bf16 %v3640, %v3640
        %v3646 = vld [vmem:[%s19] sm:$0x1]
        %v3648 = vshrl.u32 %v3645, 16
        %v3650 = vrot.slane %v3648, 2
        %v3655 = vunpack.c.l.b16 %v3641
        %v3656 = vunpack.c.l.b16 %v3642
        %v3657 = vunpack.c.l.b16 %v3643
        %v3658 = vunpack.c.l.b16 %v3644
        %v3659 = vpack.c.b16 %v3656, %v3655
        %v3660 = vpack.c.b16 %v3658, %v3657
        %v3664 = vsel %vm851, %v3650, 0
        %3666 = vmatprep.subr.bf16.mxu0 0
        %3667 = vmatpush1.bf16.msra.mxu0 %v3659
        %3668 = vmatprep.subr.bf16.mxu0 0
        %3669 = vmatpush1.bf16.msra.mxu0 %v3660
        %3670 = vmatprep.subr.bf16.mxu0 0
        %3671 = vmatpush1.bf16.msra.mxu0 0
        %3672 = vmatprep.subr.bf16.mxu0 0
        %3673 = vmatpush1.bf16.msra.mxu0 0
        %3674 = vmatprep.subr.bf16.mxu0 0
        %3675 = vmatpush1.bf16.msra.mxu0 0
        %3676 = vmatprep.subr.bf16.mxu0 0
        %3677 = vmatpush1.bf16.msra.mxu0 0
        %3678 = vmatprep.subr.bf16.mxu0 0
        %3679 = vmatpush1.bf16.msra.mxu0 0
        %3680 = vmatprep.subr.bf16.mxu0 0
        %3681 = vmatpush1.bf16.msra.mxu0 0
        %3682 = vmatprep.subr.bf16.mxu0 0
        %3683 = vmatpush1.bf16.msra.mxu0 0
        %3684 = vmatprep.subr.bf16.mxu0 0
        %3685 = vmatpush1.bf16.msra.mxu0 0
        %3686 = vmatprep.subr.bf16.mxu0 0
        %3687 = vmatpush1.bf16.msra.mxu0 0
        %3688 = vmatprep.subr.bf16.mxu0 0
        %3689 = vmatpush1.bf16.msra.mxu0 0
        %3690 = vmatprep.subr.bf16.mxu0 0
        %3691 = vmatpush1.bf16.msra.mxu0 0
        %3692 = vmatprep.subr.bf16.mxu0 0
        %3693 = vmatpush1.bf16.msra.mxu0 0
        %3694 = vmatprep.subr.bf16.mxu0 0
        %3695 = vmatpush1.bf16.msra.mxu0 0
        %3696 = vmatprep.subr.bf16.mxu0 0
        %3697 = vmatpush1.bf16.msra.mxu0 0
        %3698 = vmatprep.mubr.bf16.mxu0 0
        %3699 = vmatmul.mubr.bf16.gmra.mrb[0].mxu0 %v3664
        %v3700 = vpop.f32.mrb[0].mxu0
        %v3701 = vadd.f32 %v3646, %v3700
        %v3702 = vpop.f32.mrb[0].mxu0
        %v3703 = vpop.f32.mrb[0].mxu0
        %v3704 = vpop.f32.mrb[0].mxu0
        %3705 = vdwg.mxu0
        %v3706 = vmax.f32 %v3701, 0.0
        %v3707 = vld [vmem:[%s20] sm:$0xf]
        %v3708 = vld [vmem:[%s20 + $0x4] sm:$0xf]
        %v3709 = vld [vmem:[%s20 + $0x8] sm:$0xf]
        %v3710 = vld [vmem:[%s20 + $0xc] sm:$0xf]
        %v3711 = vpack.c.bf16 %v3706, %v3706
        %v3712 = vld [vmem:[%s21] sm:$0x1]
        %v3717 = vunpack.c.l.b16 %v3707
        %v3718 = vunpack.c.l.b16 %v3708
        %v3719 = vunpack.c.l.b16 %v3709
        %v3720 = vunpack.c.l.b16 %v3710
        %v3721 = vpack.c.b16 %v3718, %v3717
        %v3722 = vpack.c.b16 %v3720, %v3719
        %v3726 = vsel %vm851, %v3711, 0
        %3728 = vmatprep.subr.bf16.mxu0 0
        %3729 = vmatpush1.bf16.msra.mxu0 %v3721
        %3730 = vmatprep.subr.bf16.mxu0 0
        %3731 = vmatpush1.bf16.msra.mxu0 %v3722
        %3732 = vmatprep.subr.bf16.mxu0 0
        %3733 = vmatpush1.bf16.msra.mxu0 0
        %3734 = vmatprep.subr.bf16.mxu0 0
        %3735 = vmatpush1.bf16.msra.mxu0 0
        %3736 = vmatprep.subr.bf16.mxu0 0
        %3737 = vmatpush1.bf16.msra.mxu0 0
        %3738 = vmatprep.subr.bf16.mxu0 0
        %3739 = vmatpush1.bf16.msra.mxu0 0
        %3740 = vmatprep.subr.bf16.mxu0 0
        %3741 = vmatpush1.bf16.msra.mxu0 0
        %3742 = vmatprep.subr.bf16.mxu0 0
        %3743 = vmatpush1.bf16.msra.mxu0 0
        %3744 = vmatprep.subr.bf16.mxu0 0
        %3745 = vmatpush1.bf16.msra.mxu0 0
        %3746 = vmatprep.subr.bf16.mxu0 0
        %3747 = vmatpush1.bf16.msra.mxu0 0
        %3748 = vmatprep.subr.bf16.mxu0 0
        %3749 = vmatpush1.bf16.msra.mxu0 0
        %3750 = vmatprep.subr.bf16.mxu0 0
        %3751 = vmatpush1.bf16.msra.mxu0 0
        %3752 = vmatprep.subr.bf16.mxu0 0
        %3753 = vmatpush1.bf16.msra.mxu0 0
        %3754 = vmatprep.subr.bf16.mxu0 0
        %3755 = vmatpush1.bf16.msra.mxu0 0
        %3756 = vmatprep.subr.bf16.mxu0 0
        %3757 = vmatpush1.bf16.msra.mxu0 0
        %3758 = vmatprep.subr.bf16.mxu0 0
        %3759 = vmatpush1.bf16.msra.mxu0 0
        %3760 = vmatprep.mubr.bf16.mxu0 0
        %3761 = vmatmul.mubr.bf16.gmra.mrb[0].mxu0 %v3726
        %v3762 = vpop.f32.mrb[0].mxu0
        %v3763 = vadd.f32 %v3712, %v3762
        %v3764 = vpop.f32.mrb[0].mxu0
        %v3765 = vpop.f32.mrb[0].mxu0
        %v3766 = vpop.f32.mrb[0].mxu0
        %3767 = vdwg.mxu0
        %vm3768 = vcmask 32768
        %3769 = vst.msk [vmem:[%s729] sm:$0x1] %vm3768, %v3763
        %v3770 = vsel %vm3768, %v3763, -inf
        %3771 = vmax.xlane.f32.xlu0 %v3770
        %v3772 = vpop.xlane.xlu0 %3771
        %v3773 = vsub.f32 %v3763, %v3772
        %v3774 = vmul.f32 %v3773, 1.442695
        %v3775 = vpow.pop %v3774
        %v3776 = vsel %vm3768, %v3775, 0.0
        %3777 = vadd.xlane.f32.xlu0 %v3776
        %v3778 = vpop.xlane.xlu0 %3777
        %v3779 = vlog2.pop %v3778
        %v3780 = vmul.f32 %v3779, 0.6931472
        %v3781 = vadd.f32 %v3772, %v3780
        %v3782 = vsub.f32 %v3763, %v3781
        %v3783 = vcvt.f32.s32.to.zero.pseudo %v754
        %3784 = vset.pattern.permute.xlu0 6
        %3785 = vperm.xlu0 %3784, %v3783
        %v3786 = vpop.permute.xlu0 %3785
        %vm3787 = vcmp.eq.s32.totalorder %v832, %v3786
        %v3788 = vsel %vm3787, 1, 0
        %v3789 = vcvt.s32.f32 %v3788
        %v3791 = vrot.slane %v3782, 2
        %v3793 = vmul.f32 %v3789, %v3791
        %vm3794 = vcmask 38918
        %v3795 = vsel %vm3794, %v3793, 0.0
        %3796 = vadd.xlane.f32.xlu0 %v3795
        %v3797 = vpop.xlane.xlu0 %3796
        %v3798 = vsub.f32 0.0, %v3797
        %vm3799 = vcmask 6150
        %3800 = vst.msk [vmem:[%s750 - $0x6] sm:$0x40] %vm3799, %v3798
        %s3801 = sand.u32 %s523, 1
        %s3802 = scalar_lea.sflag [#allocation3], %s3801
        %s3803 = sand.u32 %s523, 1
        %s3804 = scalar_lea.vmem [#allocation2], %s3803
        %p3805 = scmp.lt.s32.totalorder %s38, 1
        %s3806 = scalar_select %p3805, %s38, 1
        %s3807 = scalar_lea.vmem %s23, %s3806
        // Predicated region
        $region109: #{_lambda_.1} parent=107 // pred_check
          %p3808 = pneg %p533
        $region110: #{_lambda_.1} parent=107 // pred_check_branch
          %3810 = sbr.rel (%p3808) target = $region112
        $region111: #{_lambda_.1} parent=107 // pred_region
          %s3812 = ssub.s32 16, 16
          %3813 = vsyncadd %s3802, %s3812
          %s3814 = smul.addr %s38, 16
          %s3815 = scalar_lea.hbm %s22, %s3814
          %s3817 = sshll.u32 %s3804, 4
          %s3818 = int_to_ptr.vmem [resolvable:$true] %s3817
          %3820 = dma.vmem_to_hbm [thread:$0]  %s3818, 16, %s3815, %s3802
        $region112: #{_lambda_.1} parent=107 // pred_fallthru
          _
        // Predicated region
        $region113: #{_lambda_.1} parent=107 // pred_check
          %p3821 = pneg %p559
        $region114: #{_lambda_.1} parent=107 // pred_check_branch
          %3823 = sbr.rel (%p3821) target = $region116
        $region115: #{_lambda_.1} parent=107 // pred_region
          _
        $region116: #{_lambda_.1} parent=107 // pred_fallthru
          _
      $region108: #{_lambda_.1} parent=5 // pred_fallthru
        _
      %p3824 = scmp.le.s32.totalorder 2, %s33
      // Predicated region
      $region117: #{_lambda_.1} parent=5 // pred_check
        %p3825 = pneg %p3824
      $region118: #{_lambda_.1} parent=5 // pred_check_branch
        %3827 = sbr.rel (%p3825) target = $region120
      $region119: #{_lambda_.1} parent=5 // pred_region
        %s3828 = ssub.s32 %s33, 2
        // Predicated region
        $region121: #{_lambda_.1} parent=119 // pred_check
          %p3829 = pneg %p539
        $region122: #{_lambda_.1} parent=119 // pred_check_branch
          %3831 = sbr.rel (%p3829) target = $region124
        $region123: #{_lambda_.1} parent=119 // pred_region
          %s3832 = sand.u32 %s524, 1
          %s3833 = scalar_lea.sflag [#allocation3], %s3832
          %s3834 = sand.u32 %s524, 1
          %s3835 = scalar_lea.vmem [#allocation2], %s3834
          %3836 = dma.done %s3833, 16
        $region124: #{_lambda_.1} parent=119 // pred_fallthru
          _
        // Predicated region
        $region125: #{_lambda_.1} parent=119 // pred_check
          %p3837 = pneg %p565
        $region126: #{_lambda_.1} parent=119 // pred_check_branch
          %3839 = sbr.rel (%p3837) target = $region128
        $region127: #{_lambda_.1} parent=119 // pred_region
          %p3840 = scmp.lt.s32.totalorder %s39, 1
          %s3841 = scalar_select %p3840, %s39, 1
          %s3842 = scalar_lea.vmem %s23, %s3841
        $region128: #{_lambda_.1} parent=119 // pred_fallthru
          _
      $region120: #{_lambda_.1} parent=5 // pred_fallthru
        _
    $region6: #{_lambda_.1} parent=1 // loop_footer
      %s37 = sadd.s32 1, %s33
    $region7: #{_lambda_.1} parent=1 // loop_footer_branch
      %32 = sbr.rel target = $region3
    $region8: #{_lambda_.1} parent=1 // loop_exit
      _
    %3843 = vsyncpa [#allocation3], 1
    %s3844 = scalar_lea.sflag [#allocation3], 1
    %3845 = vsyncpa %s3844, 1

</llo_original>
